<compile_context>
chip_gen: v6e
topology: v6e:2x2x1
jax: 0.10.0
libtpu: 0.0.40
codegen_flags: <defaults>
</compile_context>

<pallas_src>
import functools

import jax
import jax.numpy as jnp
from jax.experimental import pallas as pl
from jax.experimental.pallas import tpu as pltpu


# ------------------------------ fused kernel --------------------------------

def _block_kernel(
    xq_ref, xkv_ref, ctx_ref, vecd_ref, vecf_ref,
    wq1_ref, wk1_ref, wv1_ref, wo1_ref,
    wq2_ref, wk2_ref, wv2_ref, wo2_ref,
    wh_ref, wg_ref, w2_ref,
    o_ref, *, heads):
    f32 = jnp.float32
    cdt = xq_ref.dtype            # native MXU operand dtype (f32 or bf16)

    xq = xq_ref[0]                # (tq, D)  residual rows for this query tile
    xkv = xkv_ref[0]              # (S,  D)  full sequence (self-attn K/V source)
    ctx = ctx_ref[0].astype(cdt)  # (Sc, Dc) cross-attention context

    # Stacked per-channel vectors (f32, broadcast rows):
    #   rows: ln1_g, ln1_b, ln2_g, ln2_b, ln3_g, ln3_b, bo1, bo2, b2(ff)
    g1, b1 = vecd_ref[0:1, :], vecd_ref[1:2, :]
    g2, b2 = vecd_ref[2:3, :], vecd_ref[3:4, :]
    g3, b3 = vecd_ref[4:5, :], vecd_ref[5:6, :]
    bo1, bo2, bff2 = vecd_ref[6:7, :], vecd_ref[7:8, :], vecd_ref[8:9, :]
    bh, bg = vecf_ref[0:1, :], vecf_ref[1:2, :]

    def layer_norm(v, g, b):
        # statistics in f32; result cast to the native matmul dtype
        v = v.astype(f32)
        mu = jnp.mean(v, axis=-1, keepdims=True)
        var = jnp.mean((v - mu) ** 2, axis=-1, keepdims=True)
        return ((v - mu) * jax.lax.rsqrt(var + 1e-5) * g + b).astype(cdt)

    def attention(nq_c, kv_c, wq_ref, wk_ref, wv_ref, wo_ref, bo):
        # Full-width projections: contraction over D / Dc -> good MXU fill.
        # (softmax scale is pre-folded into wq at trace time)
        q = jnp.dot(nq_c, wq_ref[...], preferred_element_type=f32).astype(cdt)  # (tq, HD)
        k = jnp.dot(kv_c, wk_ref[...], preferred_element_type=f32).astype(cdt)  # (Sk, HD)
        v = jnp.dot(kv_c, wv_ref[...], preferred_element_type=f32).astype(cdt)  # (Sk, HD)
        hd = q.shape[-1]
        dh = hd // heads
        ohs = []
        # Static unroll over heads (small head count at these shapes).
        for h in range(heads):
            lo = h * dh
            s = jax.lax.dot_general(q[:, lo:lo + dh], k[:, lo:lo + dh],
                                    (((1,), (1,)), ((), ())),
                                    preferred_element_type=f32)     # (tq, Sk)
            m = jnp.max(s, axis=-1, keepdims=True)
            e = jnp.exp(s - m)
            p = e * pl.reciprocal(jnp.sum(e, axis=-1, keepdims=True), approx=True)
            ohs.append(jnp.dot(p.astype(cdt), v[:, lo:lo + dh],
                               preferred_element_type=f32).astype(cdt))  # (tq, dh)
        oh = jnp.concatenate(ohs, axis=-1)                           # (tq, HD)
        # ONE full-width output projection: contraction over HD, not dh.
        return jnp.dot(oh, wo_ref[...], preferred_element_type=f32) + bo

    h = xq.astype(f32)            # residual stream kept in f32

    # --- attn1 (self-attention over the full sequence) + residual ---
    n1q = layer_norm(xq, g1, b1)
    n1kv = layer_norm(xkv, g1, b1)
    h = attention(n1q, n1kv, wq1_ref, wk1_ref, wv1_ref, wo1_ref, bo1) + h

    # --- attn2 (cross-attention over context) + residual ---
    n2 = layer_norm(h, g2, b2)
    h = attention(n2, ctx, wq2_ref, wk2_ref, wv2_ref, wo2_ref, bo2) + h

    # --- FF: LN3 -> split-W1 GEGLU (exact-erf GELU) -> W2 + residual ---
    n3 = layer_norm(h, g3, b3)
    hh = jnp.dot(n3, wh_ref[...], preferred_element_type=f32) + bh
    gg = jnp.dot(n3, wg_ref[...], preferred_element_type=f32) + bg
    act = (hh * (0.5 * gg * (1.0 + jax.lax.erf(gg * 0.7071067811865476)))).astype(cdt)
    h = jnp.dot(act, w2_ref[...], preferred_element_type=f32) + bff2 + h

    o_ref[0] = h.astype(o_ref.dtype)


# ------------------------------ wrapper --------------------------------------

def basic_transformer_block(x, context, params, heads, dim_head, q_tile=None):
    B, S, D = x.shape
    Sc, Dc = context.shape[1], context.shape[2]
    HD = heads * dim_head
    a1, a2, ff = params["attn1"], params["attn2"], params["ff"]
    ffin = ff["w2"].shape[0]
    scale = dim_head ** -0.5
    cdt = x.dtype
    f32 = jnp.float32

    if q_tile is None:
        q_tile = S if S <= 512 else 512
    assert S % q_tile == 0, "sequence length must be divisible by q_tile"
    nq = S // q_tile

    # Trace-time prep: fold softmax scale into Wq, split GEGLU W1, cast all
    # matmul weights to the input's native dtype (bf16 inputs -> full-rate MXU).
    wcast = lambda w: w.astype(cdt)
    wq1, wk1, wv1, wo1 = wcast(a1["wq"] * scale), wcast(a1["wk"]), wcast(a1["wv"]), wcast(a1["wo"])
    wq2, wk2, wv2, wo2 = wcast(a2["wq"] * scale), wcast(a2["wk"]), wcast(a2["wv"]), wcast(a2["wo"])
    wh, wg, w2 = wcast(ff["w1"][:, :ffin]), wcast(ff["w1"][:, ffin:]), wcast(ff["w2"])

    # Consolidated small vectors (kept in f32; added post-accumulation).
    vecd = jnp.stack([
        params["ln1_g"], params["ln1_b"], params["ln2_g"], params["ln2_b"],
        params["ln3_g"], params["ln3_b"], a1["bo"], a2["bo"], ff["b2"],
    ]).astype(f32)                                        # (9, D)
    vecf = jnp.stack([ff["b1"][:ffin], ff["b1"][ffin:]]).astype(f32)   # (2, ffin)

    inputs = (x, x, context, vecd, vecf,
              wq1, wk1, wv1, wo1, wq2, wk2, wv2, wo2, wh, wg, w2)

    def rep(shape):
        # replicated (grid-invariant) operand -> stays resident across steps
        return pl.BlockSpec(shape, lambda b, qi: (0,) * len(shape))

    in_specs = [
        pl.BlockSpec((1, q_tile, D), lambda b, qi: (b, qi, 0)),   # query/residual tile
        pl.BlockSpec((1, S, D), lambda b, qi: (b, 0, 0)),         # full seq (self-attn K/V)
        pl.BlockSpec((1, Sc, Dc), lambda b, qi: (b, 0, 0)),       # context
        rep((9, D)), rep((2, ffin)),
        rep((D, HD)), rep((D, HD)), rep((D, HD)), rep((HD, D)),
        rep((D, HD)), rep((Dc, HD)), rep((Dc, HD)), rep((HD, D)),
        rep((D, ffin)), rep((D, ffin)), rep((ffin, D)),
    ]

    kern = functools.partial(_block_kernel, heads=heads)
    return pl.pallas_call(
        kern,
        out_shape=jax.ShapeDtypeStruct((B, S, D), x.dtype),
        grid=(B, nq),
        in_specs=in_specs,
        out_specs=pl.BlockSpec((1, q_tile, D), lambda b, qi: (b, qi, 0)),
        compiler_params=pltpu.CompilerParams(
            dimension_semantics=("parallel", "parallel"),   # batch x query-tile
            vmem_limit_bytes=48 * 1024 * 1024),              # headroom under v7x 64 MiB
    )(*inputs)


# --------------------------- pure-JAX reference ------------------------------

def _heads_to_batch(t, heads):
    B, S, D = t.shape
    dh = D // heads
    return t.reshape(B, S, heads, dh).transpose(0, 2, 1, 3).reshape(B * heads, S, dh)


def _batch_to_heads(t, heads):
    BH, S, dh = t.shape
    B = BH // heads
    return t.reshape(B, heads, S, dh).transpose(0, 2, 1, 3).reshape(B, S, heads * dh)


def _ref_ln(x, g, b):
    mean = jnp.mean(x, axis=-1, keepdims=True)
    var = jnp.mean((x - mean) ** 2, axis=-1, keepdims=True)
    return (x - mean) / jnp.sqrt(var + 1e-5) * g + b


def _ref_attn(x, ctx, p, heads, dim_head):
    scale = dim_head ** -0.5
    q = x @ p["wq"]
    k = ctx @ p["wk"]
    v = ctx @ p["wv"]
    q, k, v = (_heads_to_batch(t, heads) for t in (q, k, v))
    s = jnp.einsum("bqd,bkd->bqk", q, k) * scale
    pat = jax.nn.softmax(s, axis=-1)
    o = jnp.einsum("bqk,bkd->bqd", pat, v)
    o = _batch_to_heads(o, heads)
    return o @ p["wo"] + p["bo"]


def _ref_ff(x, p):
    proj = x @ p["w1"] + p["b1"]
    inner = proj.shape[-1] // 2
    h, g = proj[..., :inner], proj[..., inner:]
    act = h * (0.5 * g * (1.0 + jax.lax.erf(g / jnp.sqrt(2.0))))
    return act @ p["w2"] + p["b2"]


def reference_block(x, ctx, params, heads, dim_head):
    h = x
    n1 = _ref_ln(h, params["ln1_g"], params["ln1_b"])
    h = _ref_attn(n1, n1, params["attn1"], heads, dim_head) + h
    n2 = _ref_ln(h, params["ln2_g"], params["ln2_b"])
    h = _ref_attn(n2, ctx, params["attn2"], heads, dim_head) + h
    n3 = _ref_ln(h, params["ln3_g"], params["ln3_b"])
    h = _ref_ff(n3, params["ff"]) + h
    return h


# --------------------------------- main --------------------------------------

if __name__ == "__main__":
    B = 2            # batch
    S = 16           # query sequence length
    Sc = 8           # context sequence length
    dim = 32         # channels (query_dim)
    heads = 4
    dim_head = 8
    inner_dim = heads * dim_head            # == dim here
    cross_dim = 24                          # cross_attention_dim for attn2
    ff_inner = 4 * dim                      # FeedForward mult=4

    key = jax.random.PRNGKey(0)
    ks = iter(jax.random.split(key, 32))

    def w(shape, scale=0.05):
        return jax.random.normal(next(ks), shape, jnp.float32) * scale

    params = {
        "ln1_g": jnp.ones((dim,), jnp.float32), "ln1_b": jnp.zeros((dim,), jnp.float32),
        "ln2_g": jnp.ones((dim,), jnp.float32), "ln2_b": jnp.zeros((dim,), jnp.float32),
        "ln3_g": jnp.ones((dim,), jnp.float32), "ln3_b": jnp.zeros((dim,), jnp.float32),
        "attn1": {
            "wq": w((dim, inner_dim)), "wk": w((dim, inner_dim)), "wv": w((dim, inner_dim)),
            "wo": w((inner_dim, dim)), "bo": w((dim,), 0.01),
        },
        "attn2": {
            "wq": w((dim, inner_dim)), "wk": w((cross_dim, inner_dim)), "wv": w((cross_dim, inner_dim)),
            "wo": w((inner_dim, dim)), "bo": w((dim,), 0.01),
        },
        "ff": {
            "w1": w((dim, 2 * ff_inner)), "b1": w((2 * ff_inner,), 0.01),
            "w2": w((ff_inner, dim)), "b2": w((dim,), 0.01),
        },
    }

    kx, kc = jax.random.split(next(ks))
    hidden_states = jax.random.normal(kx, (B, S, dim), jnp.float32)
    context = jax.random.normal(kc, (B, Sc, cross_dim), jnp.float32)

    # --- f32 run, two query tiles per batch (exercises the q-tile grid axis) ---
    out = basic_transformer_block(hidden_states, context, params, heads, dim_head,
                                  q_tile=8)
    out = jax.block_until_ready(out)
    ref = reference_block(hidden_states, context, params, heads, dim_head)
    assert out.shape == (B, S, dim)
    # approx reciprocal in the softmax denominator -> small relaxed tolerance
    assert jnp.allclose(out, ref, atol=3e-3, rtol=3e-3), "f32 mismatch vs JAX reference"

    # --- bf16 run (native-dtype MXU path), single query tile ---
    hs_bf = hidden_states.astype(jnp.bfloat16)
    ctx_bf = context.astype(jnp.bfloat16)
    out_bf = basic_transformer_block(hs_bf, ctx_bf, params, heads, dim_head)
    out_bf = jax.block_until_ready(out_bf)
    ref_bf = reference_block(hs_bf.astype(jnp.float32), ctx_bf.astype(jnp.float32),
                             params, heads, dim_head)
    assert out_bf.shape == (B, S, dim) and out_bf.dtype == jnp.bfloat16
    assert jnp.allclose(out_bf.astype(jnp.float32), ref_bf, atol=1e-1, rtol=1e-1), \
        "bf16 mismatch vs JAX reference"

    print("KERNEL_OK")
</pallas_src>

<mosaic_0001>
module attributes {stable_mosaic.version = 11 : i64} {
  func.func @_block_kernel(%arg0: i32, %arg1: i32, %arg2: memref<1x8x32xf32, #tpu.memory_space<vmem>>, %arg3: memref<1x16x32xf32, #tpu.memory_space<vmem>>, %arg4: memref<1x8x24xf32, #tpu.memory_space<vmem>>, %arg5: memref<9x32xf32, #tpu.memory_space<vmem>>, %arg6: memref<2x128xf32, #tpu.memory_space<vmem>>, %arg7: memref<32x32xf32, #tpu.memory_space<vmem>>, %arg8: memref<32x32xf32, #tpu.memory_space<vmem>>, %arg9: memref<32x32xf32, #tpu.memory_space<vmem>>, %arg10: memref<32x32xf32, #tpu.memory_space<vmem>>, %arg11: memref<32x32xf32, #tpu.memory_space<vmem>>, %arg12: memref<24x32xf32, #tpu.memory_space<vmem>>, %arg13: memref<24x32xf32, #tpu.memory_space<vmem>>, %arg14: memref<32x32xf32, #tpu.memory_space<vmem>>, %arg15: memref<32x128xf32, #tpu.memory_space<vmem>>, %arg16: memref<32x128xf32, #tpu.memory_space<vmem>>, %arg17: memref<128x32xf32, #tpu.memory_space<vmem>>, %arg18: memref<1x8x32xf32, #tpu.memory_space<vmem>>) attributes {dimension_semantics = [#tpu.dimension_semantics<parallel>, #tpu.dimension_semantics<parallel>], iteration_bounds = array<i64: 2, 2>, scalar_prefetch = 0 : i64, scratch_operands = 0 : i64, tpu.core_type = #tpu.core_type<tc>, window_params = [{transform_indices = @transform_0, window_bounds = array<i64: 1, 8, 32>}, {transform_indices = @transform_1, window_bounds = array<i64: 1, 16, 32>}, {transform_indices = @transform_2, window_bounds = array<i64: 1, 8, 24>}, {pipeline_mode = #tpu.pipeline_mode<synchronous>, transform_indices = @transform_3, window_bounds = array<i64: 9, 32>}, {pipeline_mode = #tpu.pipeline_mode<synchronous>, transform_indices = @transform_4, window_bounds = array<i64: 2, 128>}, {pipeline_mode = #tpu.pipeline_mode<synchronous>, transform_indices = @transform_5, window_bounds = array<i64: 32, 32>}, {pipeline_mode = #tpu.pipeline_mode<synchronous>, transform_indices = @transform_6, window_bounds = array<i64: 32, 32>}, {pipeline_mode = #tpu.pipeline_mode<synchronous>, transform_indices = @transform_7, window_bounds = array<i64: 32, 32>}, {pipeline_mode = #tpu.pipeline_mode<synchronous>, transform_indices = @transform_8, window_bounds = array<i64: 32, 32>}, {pipeline_mode = #tpu.pipeline_mode<synchronous>, transform_indices = @transform_9, window_bounds = array<i64: 32, 32>}, {pipeline_mode = #tpu.pipeline_mode<synchronous>, transform_indices = @transform_10, window_bounds = array<i64: 24, 32>}, {pipeline_mode = #tpu.pipeline_mode<synchronous>, transform_indices = @transform_11, window_bounds = array<i64: 24, 32>}, {pipeline_mode = #tpu.pipeline_mode<synchronous>, transform_indices = @transform_12, window_bounds = array<i64: 32, 32>}, {pipeline_mode = #tpu.pipeline_mode<synchronous>, transform_indices = @transform_13, window_bounds = array<i64: 32, 128>}, {pipeline_mode = #tpu.pipeline_mode<synchronous>, transform_indices = @transform_14, window_bounds = array<i64: 32, 128>}, {pipeline_mode = #tpu.pipeline_mode<synchronous>, transform_indices = @transform_15, window_bounds = array<i64: 128, 32>}, {transform_indices = @transform_16, window_bounds = array<i64: 1, 8, 32>}]} {
    %c0 = arith.constant 0 : index
    %c0_0 = arith.constant 0 : index
    %c0_1 = arith.constant 0 : index
    %0 = vector.load %arg2[%c0, %c0_0, %c0_1] : memref<1x8x32xf32, #tpu.memory_space<vmem>>, vector<1x8x32xf32>
    %1 = vector.shape_cast %0 : vector<1x8x32xf32> to vector<8x32xf32>
    %c0_2 = arith.constant 0 : index
    %c0_3 = arith.constant 0 : index
    %c0_4 = arith.constant 0 : index
    %2 = vector.load %arg3[%c0_2, %c0_3, %c0_4] : memref<1x16x32xf32, #tpu.memory_space<vmem>>, vector<1x16x32xf32>
    %3 = vector.shape_cast %2 : vector<1x16x32xf32> to vector<16x32xf32>
    %c0_5 = arith.constant 0 : index
    %c0_6 = arith.constant 0 : index
    %c0_7 = arith.constant 0 : index
    %4 = vector.load %arg4[%c0_5, %c0_6, %c0_7] : memref<1x8x24xf32, #tpu.memory_space<vmem>>, vector<1x8x24xf32>
    %5 = vector.shape_cast %4 : vector<1x8x24xf32> to vector<8x24xf32>
    %c0_8 = arith.constant 0 : index
    %c0_9 = arith.constant 0 : index
    %6 = vector.load %arg5[%c0_8, %c0_9] : memref<9x32xf32, #tpu.memory_space<vmem>>, vector<1x32xf32>
    %c1 = arith.constant 1 : index
    %c0_10 = arith.constant 0 : index
    %7 = vector.load %arg5[%c1, %c0_10] : memref<9x32xf32, #tpu.memory_space<vmem>>, vector<1x32xf32>
    %c2 = arith.constant 2 : index
    %c0_11 = arith.constant 0 : index
    %8 = vector.load %arg5[%c2, %c0_11] : memref<9x32xf32, #tpu.memory_space<vmem>>, vector<1x32xf32>
    %c3 = arith.constant 3 : index
    %c0_12 = arith.constant 0 : index
    %9 = vector.load %arg5[%c3, %c0_12] : memref<9x32xf32, #tpu.memory_space<vmem>>, vector<1x32xf32>
    %c4 = arith.constant 4 : index
    %c0_13 = arith.constant 0 : index
    %10 = vector.load %arg5[%c4, %c0_13] : memref<9x32xf32, #tpu.memory_space<vmem>>, vector<1x32xf32>
    %c5 = arith.constant 5 : index
    %c0_14 = arith.constant 0 : index
    %11 = vector.load %arg5[%c5, %c0_14] : memref<9x32xf32, #tpu.memory_space<vmem>>, vector<1x32xf32>
    %c6 = arith.constant 6 : index
    %c0_15 = arith.constant 0 : index
    %12 = vector.load %arg5[%c6, %c0_15] : memref<9x32xf32, #tpu.memory_space<vmem>>, vector<1x32xf32>
    %c7 = arith.constant 7 : index
    %c0_16 = arith.constant 0 : index
    %13 = vector.load %arg5[%c7, %c0_16] : memref<9x32xf32, #tpu.memory_space<vmem>>, vector<1x32xf32>
    %c8 = arith.constant 8 : index
    %c0_17 = arith.constant 0 : index
    %14 = vector.load %arg5[%c8, %c0_17] : memref<9x32xf32, #tpu.memory_space<vmem>>, vector<1x32xf32>
    %c0_18 = arith.constant 0 : index
    %c0_19 = arith.constant 0 : index
    %15 = vector.load %arg6[%c0_18, %c0_19] : memref<2x128xf32, #tpu.memory_space<vmem>>, vector<1x128xf32>
    %c1_20 = arith.constant 1 : index
    %c0_21 = arith.constant 0 : index
    %16 = vector.load %arg6[%c1_20, %c0_21] : memref<2x128xf32, #tpu.memory_space<vmem>>, vector<1x128xf32>
    %cst = arith.constant dense<0.000000e+00> : vector<8xf32>
    %17 = vector.multi_reduction <add>, %1, %cst [1] : vector<8x32xf32> to vector<8xf32>
    %18 = vector.shape_cast %17 : vector<8xf32> to vector<8x1xf32>
    %cst_22 = arith.constant 3.200000e+01 : f32
    %19 = vector.broadcast %cst_22 : f32 to vector<8x1xf32>
    %20 = arith.divf %18, %19 : vector<8x1xf32>
    %21 = vector.broadcast %20 : vector<8x1xf32> to vector<8x32xf32>
    %22 = arith.subf %1, %21 : vector<8x32xf32>
    %23 = arith.mulf %22, %22 : vector<8x32xf32>
    %cst_23 = arith.constant dense<0.000000e+00> : vector<8xf32>
    %24 = vector.multi_reduction <add>, %23, %cst_23 [1] : vector<8x32xf32> to vector<8xf32>
    %25 = vector.shape_cast %24 : vector<8xf32> to vector<8x1xf32>
    %cst_24 = arith.constant 3.200000e+01 : f32
    %26 = vector.broadcast %cst_24 : f32 to vector<8x1xf32>
    %27 = arith.divf %25, %26 : vector<8x1xf32>
    %28 = vector.broadcast %20 : vector<8x1xf32> to vector<8x32xf32>
    %29 = arith.subf %1, %28 : vector<8x32xf32>
    %cst_25 = arith.constant 9.99999974E-6 : f32
    %30 = vector.broadcast %cst_25 : f32 to vector<8x1xf32>
    %31 = arith.addf %27, %30 : vector<8x1xf32>
    %32 = math.rsqrt %31 : vector<8x1xf32>
    %33 = vector.broadcast %32 : vector<8x1xf32> to vector<8x32xf32>
    %34 = arith.mulf %29, %33 : vector<8x32xf32>
    %35 = vector.broadcast %6 : vector<1x32xf32> to vector<8x32xf32>
    %36 = arith.mulf %34, %35 : vector<8x32xf32>
    %37 = vector.broadcast %7 : vector<1x32xf32> to vector<8x32xf32>
    %38 = arith.addf %36, %37 : vector<8x32xf32>
    %cst_26 = arith.constant dense<0.000000e+00> : vector<16xf32>
    %39 = vector.multi_reduction <add>, %3, %cst_26 [1] : vector<16x32xf32> to vector<16xf32>
    %40 = vector.shape_cast %39 : vector<16xf32> to vector<16x1xf32>
    %cst_27 = arith.constant 3.200000e+01 : f32
    %41 = vector.broadcast %cst_27 : f32 to vector<16x1xf32>
    %42 = arith.divf %40, %41 : vector<16x1xf32>
    %43 = vector.broadcast %42 : vector<16x1xf32> to vector<16x32xf32>
    %44 = arith.subf %3, %43 : vector<16x32xf32>
    %45 = arith.mulf %44, %44 : vector<16x32xf32>
    %cst_28 = arith.constant dense<0.000000e+00> : vector<16xf32>
    %46 = vector.multi_reduction <add>, %45, %cst_28 [1] : vector<16x32xf32> to vector<16xf32>
    %47 = vector.shape_cast %46 : vector<16xf32> to vector<16x1xf32>
    %cst_29 = arith.constant 3.200000e+01 : f32
    %48 = vector.broadcast %cst_29 : f32 to vector<16x1xf32>
    %49 = arith.divf %47, %48 : vector<16x1xf32>
    %50 = vector.broadcast %42 : vector<16x1xf32> to vector<16x32xf32>
    %51 = arith.subf %3, %50 : vector<16x32xf32>
    %cst_30 = arith.constant 9.99999974E-6 : f32
    %52 = vector.broadcast %cst_30 : f32 to vector<16x1xf32>
    %53 = arith.addf %49, %52 : vector<16x1xf32>
    %54 = math.rsqrt %53 : vector<16x1xf32>
    %55 = vector.broadcast %54 : vector<16x1xf32> to vector<16x32xf32>
    %56 = arith.mulf %51, %55 : vector<16x32xf32>
    %57 = vector.broadcast %6 : vector<1x32xf32> to vector<16x32xf32>
    %58 = arith.mulf %56, %57 : vector<16x32xf32>
    %59 = vector.broadcast %7 : vector<1x32xf32> to vector<16x32xf32>
    %60 = arith.addf %58, %59 : vector<16x32xf32>
    %c0_31 = arith.constant 0 : index
    %c0_32 = arith.constant 0 : index
    %61 = vector.load %arg7[%c0_31, %c0_32] : memref<32x32xf32, #tpu.memory_space<vmem>>, vector<32x32xf32>
    %cst_33 = arith.constant dense<0.000000e+00> : vector<8x32xf32>
    %62 = tpu.matmul %38, %61, %cst_33 {dimension_numbers = #tpu.dot_dimension_numbers<[1], [0], [0], [1], [0, 0, 1, 1], [], []>} : vector<8x32xf32>, vector<32x32xf32>, vector<8x32xf32> -> vector<8x32xf32>
    %c0_34 = arith.constant 0 : index
    %c0_35 = arith.constant 0 : index
    %63 = vector.load %arg8[%c0_34, %c0_35] : memref<32x32xf32, #tpu.memory_space<vmem>>, vector<32x32xf32>
    %cst_36 = arith.constant dense<0.000000e+00> : vector<16x32xf32>
    %64 = tpu.matmul %60, %63, %cst_36 {dimension_numbers = #tpu.dot_dimension_numbers<[1], [0], [0], [1], [0, 0, 1, 1], [], []>} : vector<16x32xf32>, vector<32x32xf32>, vector<16x32xf32> -> vector<16x32xf32>
    %c0_37 = arith.constant 0 : index
    %c0_38 = arith.constant 0 : index
    %65 = vector.load %arg9[%c0_37, %c0_38] : memref<32x32xf32, #tpu.memory_space<vmem>>, vector<32x32xf32>
    %cst_39 = arith.constant dense<0.000000e+00> : vector<16x32xf32>
    %66 = tpu.matmul %60, %65, %cst_39 {dimension_numbers = #tpu.dot_dimension_numbers<[1], [0], [0], [1], [0, 0, 1, 1], [], []>} : vector<16x32xf32>, vector<32x32xf32>, vector<16x32xf32> -> vector<16x32xf32>
    %67 = vector.extract_strided_slice %62 {offsets = [0, 0], sizes = [8, 8], strides = [1, 1]} : vector<8x32xf32> to vector<8x8xf32>
    %68 = vector.extract_strided_slice %64 {offsets = [0, 0], sizes = [16, 8], strides = [1, 1]} : vector<16x32xf32> to vector<16x8xf32>
    %cst_40 = arith.constant dense<0.000000e+00> : vector<8x16xf32>
    %69 = tpu.matmul %67, %68, %cst_40 {dimension_numbers = #tpu.dot_dimension_numbers<[1], [1], [0], [0], [0, 0, 1, 0], [], []>} : vector<8x8xf32>, vector<16x8xf32>, vector<8x16xf32> -> vector<8x16xf32>
    %cst_41 = arith.constant dense<0xFF800000> : vector<8xf32>
    %70 = vector.multi_reduction <maximumf>, %69, %cst_41 [1] : vector<8x16xf32> to vector<8xf32>
    %71 = vector.shape_cast %70 : vector<8xf32> to vector<8x1xf32>
    %72 = vector.broadcast %71 : vector<8x1xf32> to vector<8x16xf32>
    %73 = arith.subf %69, %72 : vector<8x16xf32>
    %74 = math.exp %73 : vector<8x16xf32>
    %cst_42 = arith.constant dense<0.000000e+00> : vector<8xf32>
    %75 = vector.multi_reduction <add>, %74, %cst_42 [1] : vector<8x16xf32> to vector<8xf32>
    %76 = vector.shape_cast %75 : vector<8xf32> to vector<8x1xf32>
    %77 = tpu.reciprocal %76 {approx = true} : vector<8x1xf32> -> vector<8x1xf32>
    %78 = vector.broadcast %77 : vector<8x1xf32> to vector<8x16xf32>
    %79 = arith.mulf %74, %78 : vector<8x16xf32>
    %80 = vector.extract_strided_slice %66 {offsets = [0, 0], sizes = [16, 8], strides = [1, 1]} : vector<16x32xf32> to vector<16x8xf32>
    %cst_43 = arith.constant dense<0.000000e+00> : vector<8x8xf32>
    %81 = tpu.matmul %79, %80, %cst_43 {dimension_numbers = #tpu.dot_dimension_numbers<[1], [0], [0], [1], [0, 0, 1, 1], [], []>} : vector<8x16xf32>, vector<16x8xf32>, vector<8x8xf32> -> vector<8x8xf32>
    %82 = vector.extract_strided_slice %62 {offsets = [0, 8], sizes = [8, 8], strides = [1, 1]} : vector<8x32xf32> to vector<8x8xf32>
    %83 = vector.extract_strided_slice %64 {offsets = [0, 8], sizes = [16, 8], strides = [1, 1]} : vector<16x32xf32> to vector<16x8xf32>
    %cst_44 = arith.constant dense<0.000000e+00> : vector<8x16xf32>
    %84 = tpu.matmul %82, %83, %cst_44 {dimension_numbers = #tpu.dot_dimension_numbers<[1], [1], [0], [0], [0, 0, 1, 0], [], []>} : vector<8x8xf32>, vector<16x8xf32>, vector<8x16xf32> -> vector<8x16xf32>
    %cst_45 = arith.constant dense<0xFF800000> : vector<8xf32>
    %85 = vector.multi_reduction <maximumf>, %84, %cst_45 [1] : vector<8x16xf32> to vector<8xf32>
    %86 = vector.shape_cast %85 : vector<8xf32> to vector<8x1xf32>
    %87 = vector.broadcast %86 : vector<8x1xf32> to vector<8x16xf32>
    %88 = arith.subf %84, %87 : vector<8x16xf32>
    %89 = math.exp %88 : vector<8x16xf32>
    %cst_46 = arith.constant dense<0.000000e+00> : vector<8xf32>
    %90 = vector.multi_reduction <add>, %89, %cst_46 [1] : vector<8x16xf32> to vector<8xf32>
    %91 = vector.shape_cast %90 : vector<8xf32> to vector<8x1xf32>
    %92 = tpu.reciprocal %91 {approx = true} : vector<8x1xf32> -> vector<8x1xf32>
    %93 = vector.broadcast %92 : vector<8x1xf32> to vector<8x16xf32>
    %94 = arith.mulf %89, %93 : vector<8x16xf32>
    %95 = vector.extract_strided_slice %66 {offsets = [0, 8], sizes = [16, 8], strides = [1, 1]} : vector<16x32xf32> to vector<16x8xf32>
    %cst_47 = arith.constant dense<0.000000e+00> : vector<8x8xf32>
    %96 = tpu.matmul %94, %95, %cst_47 {dimension_numbers = #tpu.dot_dimension_numbers<[1], [0], [0], [1], [0, 0, 1, 1], [], []>} : vector<8x16xf32>, vector<16x8xf32>, vector<8x8xf32> -> vector<8x8xf32>
    %97 = vector.extract_strided_slice %62 {offsets = [0, 16], sizes = [8, 8], strides = [1, 1]} : vector<8x32xf32> to vector<8x8xf32>
    %98 = vector.extract_strided_slice %64 {offsets = [0, 16], sizes = [16, 8], strides = [1, 1]} : vector<16x32xf32> to vector<16x8xf32>
    %cst_48 = arith.constant dense<0.000000e+00> : vector<8x16xf32>
    %99 = tpu.matmul %97, %98, %cst_48 {dimension_numbers = #tpu.dot_dimension_numbers<[1], [1], [0], [0], [0, 0, 1, 0], [], []>} : vector<8x8xf32>, vector<16x8xf32>, vector<8x16xf32> -> vector<8x16xf32>
    %cst_49 = arith.constant dense<0xFF800000> : vector<8xf32>
    %100 = vector.multi_reduction <maximumf>, %99, %cst_49 [1] : vector<8x16xf32> to vector<8xf32>
    %101 = vector.shape_cast %100 : vector<8xf32> to vector<8x1xf32>
    %102 = vector.broadcast %101 : vector<8x1xf32> to vector<8x16xf32>
    %103 = arith.subf %99, %102 : vector<8x16xf32>
    %104 = math.exp %103 : vector<8x16xf32>
    %cst_50 = arith.constant dense<0.000000e+00> : vector<8xf32>
    %105 = vector.multi_reduction <add>, %104, %cst_50 [1] : vector<8x16xf32> to vector<8xf32>
    %106 = vector.shape_cast %105 : vector<8xf32> to vector<8x1xf32>
    %107 = tpu.reciprocal %106 {approx = true} : vector<8x1xf32> -> vector<8x1xf32>
    %108 = vector.broadcast %107 : vector<8x1xf32> to vector<8x16xf32>
    %109 = arith.mulf %104, %108 : vector<8x16xf32>
    %110 = vector.extract_strided_slice %66 {offsets = [0, 16], sizes = [16, 8], strides = [1, 1]} : vector<16x32xf32> to vector<16x8xf32>
    %cst_51 = arith.constant dense<0.000000e+00> : vector<8x8xf32>
    %111 = tpu.matmul %109, %110, %cst_51 {dimension_numbers = #tpu.dot_dimension_numbers<[1], [0], [0], [1], [0, 0, 1, 1], [], []>} : vector<8x16xf32>, vector<16x8xf32>, vector<8x8xf32> -> vector<8x8xf32>
    %112 = vector.extract_strided_slice %62 {offsets = [0, 24], sizes = [8, 8], strides = [1, 1]} : vector<8x32xf32> to vector<8x8xf32>
    %113 = vector.extract_strided_slice %64 {offsets = [0, 24], sizes = [16, 8], strides = [1, 1]} : vector<16x32xf32> to vector<16x8xf32>
    %cst_52 = arith.constant dense<0.000000e+00> : vector<8x16xf32>
    %114 = tpu.matmul %112, %113, %cst_52 {dimension_numbers = #tpu.dot_dimension_numbers<[1], [1], [0], [0], [0, 0, 1, 0], [], []>} : vector<8x8xf32>, vector<16x8xf32>, vector<8x16xf32> -> vector<8x16xf32>
    %cst_53 = arith.constant dense<0xFF800000> : vector<8xf32>
    %115 = vector.multi_reduction <maximumf>, %114, %cst_53 [1] : vector<8x16xf32> to vector<8xf32>
    %116 = vector.shape_cast %115 : vector<8xf32> to vector<8x1xf32>
    %117 = vector.broadcast %116 : vector<8x1xf32> to vector<8x16xf32>
    %118 = arith.subf %114, %117 : vector<8x16xf32>
    %119 = math.exp %118 : vector<8x16xf32>
    %cst_54 = arith.constant dense<0.000000e+00> : vector<8xf32>
    %120 = vector.multi_reduction <add>, %119, %cst_54 [1] : vector<8x16xf32> to vector<8xf32>
    %121 = vector.shape_cast %120 : vector<8xf32> to vector<8x1xf32>
    %122 = tpu.reciprocal %121 {approx = true} : vector<8x1xf32> -> vector<8x1xf32>
    %123 = vector.broadcast %122 : vector<8x1xf32> to vector<8x16xf32>
    %124 = arith.mulf %119, %123 : vector<8x16xf32>
    %125 = vector.extract_strided_slice %66 {offsets = [0, 24], sizes = [16, 8], strides = [1, 1]} : vector<16x32xf32> to vector<16x8xf32>
    %cst_55 = arith.constant dense<0.000000e+00> : vector<8x8xf32>
    %126 = tpu.matmul %124, %125, %cst_55 {dimension_numbers = #tpu.dot_dimension_numbers<[1], [0], [0], [1], [0, 0, 1, 1], [], []>} : vector<8x16xf32>, vector<16x8xf32>, vector<8x8xf32> -> vector<8x8xf32>
    %127 = tpu.concatenate %81, %96, %111, %126 in 1 : vector<8x8xf32>, vector<8x8xf32>, vector<8x8xf32>, vector<8x8xf32> -> vector<8x32xf32>
    %c0_56 = arith.constant 0 : index
    %c0_57 = arith.constant 0 : index
    %128 = vector.load %arg10[%c0_56, %c0_57] : memref<32x32xf32, #tpu.memory_space<vmem>>, vector<32x32xf32>
    %cst_58 = arith.constant dense<0.000000e+00> : vector<8x32xf32>
    %129 = tpu.matmul %127, %128, %cst_58 {dimension_numbers = #tpu.dot_dimension_numbers<[1], [0], [0], [1], [0, 0, 1, 1], [], []>} : vector<8x32xf32>, vector<32x32xf32>, vector<8x32xf32> -> vector<8x32xf32>
    %130 = vector.broadcast %12 : vector<1x32xf32> to vector<8x32xf32>
    %131 = arith.addf %129, %130 : vector<8x32xf32>
    %132 = arith.addf %131, %1 : vector<8x32xf32>
    %cst_59 = arith.constant dense<0.000000e+00> : vector<8xf32>
    %133 = vector.multi_reduction <add>, %132, %cst_59 [1] : vector<8x32xf32> to vector<8xf32>
    %134 = vector.shape_cast %133 : vector<8xf32> to vector<8x1xf32>
    %cst_60 = arith.constant 3.200000e+01 : f32
    %135 = vector.broadcast %cst_60 : f32 to vector<8x1xf32>
    %136 = arith.divf %134, %135 : vector<8x1xf32>
    %137 = vector.broadcast %136 : vector<8x1xf32> to vector<8x32xf32>
    %138 = arith.subf %132, %137 : vector<8x32xf32>
    %139 = arith.mulf %138, %138 : vector<8x32xf32>
    %cst_61 = arith.constant dense<0.000000e+00> : vector<8xf32>
    %140 = vector.multi_reduction <add>, %139, %cst_61 [1] : vector<8x32xf32> to vector<8xf32>
    %141 = vector.shape_cast %140 : vector<8xf32> to vector<8x1xf32>
    %cst_62 = arith.constant 3.200000e+01 : f32
    %142 = vector.broadcast %cst_62 : f32 to vector<8x1xf32>
    %143 = arith.divf %141, %142 : vector<8x1xf32>
    %144 = vector.broadcast %136 : vector<8x1xf32> to vector<8x32xf32>
    %145 = arith.subf %132, %144 : vector<8x32xf32>
    %cst_63 = arith.constant 9.99999974E-6 : f32
    %146 = vector.broadcast %cst_63 : f32 to vector<8x1xf32>
    %147 = arith.addf %143, %146 : vector<8x1xf32>
    %148 = math.rsqrt %147 : vector<8x1xf32>
    %149 = vector.broadcast %148 : vector<8x1xf32> to vector<8x32xf32>
    %150 = arith.mulf %145, %149 : vector<8x32xf32>
    %151 = vector.broadcast %8 : vector<1x32xf32> to vector<8x32xf32>
    %152 = arith.mulf %150, %151 : vector<8x32xf32>
    %153 = vector.broadcast %9 : vector<1x32xf32> to vector<8x32xf32>
    %154 = arith.addf %152, %153 : vector<8x32xf32>
    %c0_64 = arith.constant 0 : index
    %c0_65 = arith.constant 0 : index
    %155 = vector.load %arg11[%c0_64, %c0_65] : memref<32x32xf32, #tpu.memory_space<vmem>>, vector<32x32xf32>
    %cst_66 = arith.constant dense<0.000000e+00> : vector<8x32xf32>
    %156 = tpu.matmul %154, %155, %cst_66 {dimension_numbers = #tpu.dot_dimension_numbers<[1], [0], [0], [1], [0, 0, 1, 1], [], []>} : vector<8x32xf32>, vector<32x32xf32>, vector<8x32xf32> -> vector<8x32xf32>
    %c0_67 = arith.constant 0 : index
    %c0_68 = arith.constant 0 : index
    %157 = vector.load %arg12[%c0_67, %c0_68] : memref<24x32xf32, #tpu.memory_space<vmem>>, vector<24x32xf32>
    %cst_69 = arith.constant dense<0.000000e+00> : vector<8x32xf32>
    %158 = tpu.matmul %5, %157, %cst_69 {dimension_numbers = #tpu.dot_dimension_numbers<[1], [0], [0], [1], [0, 0, 1, 1], [], []>} : vector<8x24xf32>, vector<24x32xf32>, vector<8x32xf32> -> vector<8x32xf32>
    %c0_70 = arith.constant 0 : index
    %c0_71 = arith.constant 0 : index
    %159 = vector.load %arg13[%c0_70, %c0_71] : memref<24x32xf32, #tpu.memory_space<vmem>>, vector<24x32xf32>
    %cst_72 = arith.constant dense<0.000000e+00> : vector<8x32xf32>
    %160 = tpu.matmul %5, %159, %cst_72 {dimension_numbers = #tpu.dot_dimension_numbers<[1], [0], [0], [1], [0, 0, 1, 1], [], []>} : vector<8x24xf32>, vector<24x32xf32>, vector<8x32xf32> -> vector<8x32xf32>
    %161 = vector.extract_strided_slice %156 {offsets = [0, 0], sizes = [8, 8], strides = [1, 1]} : vector<8x32xf32> to vector<8x8xf32>
    %162 = vector.extract_strided_slice %158 {offsets = [0, 0], sizes = [8, 8], strides = [1, 1]} : vector<8x32xf32> to vector<8x8xf32>
    %cst_73 = arith.constant dense<0.000000e+00> : vector<8x8xf32>
    %163 = tpu.matmul %161, %162, %cst_73 {dimension_numbers = #tpu.dot_dimension_numbers<[1], [1], [0], [0], [0, 0, 1, 0], [], []>} : vector<8x8xf32>, vector<8x8xf32>, vector<8x8xf32> -> vector<8x8xf32>
    %cst_74 = arith.constant dense<0xFF800000> : vector<8xf32>
    %164 = vector.multi_reduction <maximumf>, %163, %cst_74 [1] : vector<8x8xf32> to vector<8xf32>
    %165 = vector.shape_cast %164 : vector<8xf32> to vector<8x1xf32>
    %166 = vector.broadcast %165 : vector<8x1xf32> to vector<8x8xf32>
    %167 = arith.subf %163, %166 : vector<8x8xf32>
    %168 = math.exp %167 : vector<8x8xf32>
    %cst_75 = arith.constant dense<0.000000e+00> : vector<8xf32>
    %169 = vector.multi_reduction <add>, %168, %cst_75 [1] : vector<8x8xf32> to vector<8xf32>
    %170 = vector.shape_cast %169 : vector<8xf32> to vector<8x1xf32>
    %171 = tpu.reciprocal %170 {approx = true} : vector<8x1xf32> -> vector<8x1xf32>
    %172 = vector.broadcast %171 : vector<8x1xf32> to vector<8x8xf32>
    %173 = arith.mulf %168, %172 : vector<8x8xf32>
    %174 = vector.extract_strided_slice %160 {offsets = [0, 0], sizes = [8, 8], strides = [1, 1]} : vector<8x32xf32> to vector<8x8xf32>
    %cst_76 = arith.constant dense<0.000000e+00> : vector<8x8xf32>
    %175 = tpu.matmul %173, %174, %cst_76 {dimension_numbers = #tpu.dot_dimension_numbers<[1], [0], [0], [1], [0, 0, 1, 1], [], []>} : vector<8x8xf32>, vector<8x8xf32>, vector<8x8xf32> -> vector<8x8xf32>
    %176 = vector.extract_strided_slice %156 {offsets = [0, 8], sizes = [8, 8], strides = [1, 1]} : vector<8x32xf32> to vector<8x8xf32>
    %177 = vector.extract_strided_slice %158 {offsets = [0, 8], sizes = [8, 8], strides = [1, 1]} : vector<8x32xf32> to vector<8x8xf32>
    %cst_77 = arith.constant dense<0.000000e+00> : vector<8x8xf32>
    %178 = tpu.matmul %176, %177, %cst_77 {dimension_numbers = #tpu.dot_dimension_numbers<[1], [1], [0], [0], [0, 0, 1, 0], [], []>} : vector<8x8xf32>, vector<8x8xf32>, vector<8x8xf32> -> vector<8x8xf32>
    %cst_78 = arith.constant dense<0xFF800000> : vector<8xf32>
    %179 = vector.multi_reduction <maximumf>, %178, %cst_78 [1] : vector<8x8xf32> to vector<8xf32>
    %180 = vector.shape_cast %179 : vector<8xf32> to vector<8x1xf32>
    %181 = vector.broadcast %180 : vector<8x1xf32> to vector<8x8xf32>
    %182 = arith.subf %178, %181 : vector<8x8xf32>
    %183 = math.exp %182 : vector<8x8xf32>
    %cst_79 = arith.constant dense<0.000000e+00> : vector<8xf32>
    %184 = vector.multi_reduction <add>, %183, %cst_79 [1] : vector<8x8xf32> to vector<8xf32>
    %185 = vector.shape_cast %184 : vector<8xf32> to vector<8x1xf32>
    %186 = tpu.reciprocal %185 {approx = true} : vector<8x1xf32> -> vector<8x1xf32>
    %187 = vector.broadcast %186 : vector<8x1xf32> to vector<8x8xf32>
    %188 = arith.mulf %183, %187 : vector<8x8xf32>
    %189 = vector.extract_strided_slice %160 {offsets = [0, 8], sizes = [8, 8], strides = [1, 1]} : vector<8x32xf32> to vector<8x8xf32>
    %cst_80 = arith.constant dense<0.000000e+00> : vector<8x8xf32>
    %190 = tpu.matmul %188, %189, %cst_80 {dimension_numbers = #tpu.dot_dimension_numbers<[1], [0], [0], [1], [0, 0, 1, 1], [], []>} : vector<8x8xf32>, vector<8x8xf32>, vector<8x8xf32> -> vector<8x8xf32>
    %191 = vector.extract_strided_slice %156 {offsets = [0, 16], sizes = [8, 8], strides = [1, 1]} : vector<8x32xf32> to vector<8x8xf32>
    %192 = vector.extract_strided_slice %158 {offsets = [0, 16], sizes = [8, 8], strides = [1, 1]} : vector<8x32xf32> to vector<8x8xf32>
    %cst_81 = arith.constant dense<0.000000e+00> : vector<8x8xf32>
    %193 = tpu.matmul %191, %192, %cst_81 {dimension_numbers = #tpu.dot_dimension_numbers<[1], [1], [0], [0], [0, 0, 1, 0], [], []>} : vector<8x8xf32>, vector<8x8xf32>, vector<8x8xf32> -> vector<8x8xf32>
    %cst_82 = arith.constant dense<0xFF800000> : vector<8xf32>
    %194 = vector.multi_reduction <maximumf>, %193, %cst_82 [1] : vector<8x8xf32> to vector<8xf32>
    %195 = vector.shape_cast %194 : vector<8xf32> to vector<8x1xf32>
    %196 = vector.broadcast %195 : vector<8x1xf32> to vector<8x8xf32>
    %197 = arith.subf %193, %196 : vector<8x8xf32>
    %198 = math.exp %197 : vector<8x8xf32>
    %cst_83 = arith.constant dense<0.000000e+00> : vector<8xf32>
    %199 = vector.multi_reduction <add>, %198, %cst_83 [1] : vector<8x8xf32> to vector<8xf32>
    %200 = vector.shape_cast %199 : vector<8xf32> to vector<8x1xf32>
    %201 = tpu.reciprocal %200 {approx = true} : vector<8x1xf32> -> vector<8x1xf32>
    %202 = vector.broadcast %201 : vector<8x1xf32> to vector<8x8xf32>
    %203 = arith.mulf %198, %202 : vector<8x8xf32>
    %204 = vector.extract_strided_slice %160 {offsets = [0, 16], sizes = [8, 8], strides = [1, 1]} : vector<8x32xf32> to vector<8x8xf32>
    %cst_84 = arith.constant dense<0.000000e+00> : vector<8x8xf32>
    %205 = tpu.matmul %203, %204, %cst_84 {dimension_numbers = #tpu.dot_dimension_numbers<[1], [0], [0], [1], [0, 0, 1, 1], [], []>} : vector<8x8xf32>, vector<8x8xf32>, vector<8x8xf32> -> vector<8x8xf32>
    %206 = vector.extract_strided_slice %156 {offsets = [0, 24], sizes = [8, 8], strides = [1, 1]} : vector<8x32xf32> to vector<8x8xf32>
    %207 = vector.extract_strided_slice %158 {offsets = [0, 24], sizes = [8, 8], strides = [1, 1]} : vector<8x32xf32> to vector<8x8xf32>
    %cst_85 = arith.constant dense<0.000000e+00> : vector<8x8xf32>
    %208 = tpu.matmul %206, %207, %cst_85 {dimension_numbers = #tpu.dot_dimension_numbers<[1], [1], [0], [0], [0, 0, 1, 0], [], []>} : vector<8x8xf32>, vector<8x8xf32>, vector<8x8xf32> -> vector<8x8xf32>
    %cst_86 = arith.constant dense<0xFF800000> : vector<8xf32>
    %209 = vector.multi_reduction <maximumf>, %208, %cst_86 [1] : vector<8x8xf32> to vector<8xf32>
    %210 = vector.shape_cast %209 : vector<8xf32> to vector<8x1xf32>
    %211 = vector.broadcast %210 : vector<8x1xf32> to vector<8x8xf32>
    %212 = arith.subf %208, %211 : vector<8x8xf32>
    %213 = math.exp %212 : vector<8x8xf32>
    %cst_87 = arith.constant dense<0.000000e+00> : vector<8xf32>
    %214 = vector.multi_reduction <add>, %213, %cst_87 [1] : vector<8x8xf32> to vector<8xf32>
    %215 = vector.shape_cast %214 : vector<8xf32> to vector<8x1xf32>
    %216 = tpu.reciprocal %215 {approx = true} : vector<8x1xf32> -> vector<8x1xf32>
    %217 = vector.broadcast %216 : vector<8x1xf32> to vector<8x8xf32>
    %218 = arith.mulf %213, %217 : vector<8x8xf32>
    %219 = vector.extract_strided_slice %160 {offsets = [0, 24], sizes = [8, 8], strides = [1, 1]} : vector<8x32xf32> to vector<8x8xf32>
    %cst_88 = arith.constant dense<0.000000e+00> : vector<8x8xf32>
    %220 = tpu.matmul %218, %219, %cst_88 {dimension_numbers = #tpu.dot_dimension_numbers<[1], [0], [0], [1], [0, 0, 1, 1], [], []>} : vector<8x8xf32>, vector<8x8xf32>, vector<8x8xf32> -> vector<8x8xf32>
    %221 = tpu.concatenate %175, %190, %205, %220 in 1 : vector<8x8xf32>, vector<8x8xf32>, vector<8x8xf32>, vector<8x8xf32> -> vector<8x32xf32>
    %c0_89 = arith.constant 0 : index
    %c0_90 = arith.constant 0 : index
    %222 = vector.load %arg14[%c0_89, %c0_90] : memref<32x32xf32, #tpu.memory_space<vmem>>, vector<32x32xf32>
    %cst_91 = arith.constant dense<0.000000e+00> : vector<8x32xf32>
    %223 = tpu.matmul %221, %222, %cst_91 {dimension_numbers = #tpu.dot_dimension_numbers<[1], [0], [0], [1], [0, 0, 1, 1], [], []>} : vector<8x32xf32>, vector<32x32xf32>, vector<8x32xf32> -> vector<8x32xf32>
    %224 = vector.broadcast %13 : vector<1x32xf32> to vector<8x32xf32>
    %225 = arith.addf %223, %224 : vector<8x32xf32>
    %226 = arith.addf %225, %132 : vector<8x32xf32>
    %cst_92 = arith.constant dense<0.000000e+00> : vector<8xf32>
    %227 = vector.multi_reduction <add>, %226, %cst_92 [1] : vector<8x32xf32> to vector<8xf32>
    %228 = vector.shape_cast %227 : vector<8xf32> to vector<8x1xf32>
    %cst_93 = arith.constant 3.200000e+01 : f32
    %229 = vector.broadcast %cst_93 : f32 to vector<8x1xf32>
    %230 = arith.divf %228, %229 : vector<8x1xf32>
    %231 = vector.broadcast %230 : vector<8x1xf32> to vector<8x32xf32>
    %232 = arith.subf %226, %231 : vector<8x32xf32>
    %233 = arith.mulf %232, %232 : vector<8x32xf32>
    %cst_94 = arith.constant dense<0.000000e+00> : vector<8xf32>
    %234 = vector.multi_reduction <add>, %233, %cst_94 [1] : vector<8x32xf32> to vector<8xf32>
    %235 = vector.shape_cast %234 : vector<8xf32> to vector<8x1xf32>
    %cst_95 = arith.constant 3.200000e+01 : f32
    %236 = vector.broadcast %cst_95 : f32 to vector<8x1xf32>
    %237 = arith.divf %235, %236 : vector<8x1xf32>
    %238 = vector.broadcast %230 : vector<8x1xf32> to vector<8x32xf32>
    %239 = arith.subf %226, %238 : vector<8x32xf32>
    %cst_96 = arith.constant 9.99999974E-6 : f32
    %240 = vector.broadcast %cst_96 : f32 to vector<8x1xf32>
    %241 = arith.addf %237, %240 : vector<8x1xf32>
    %242 = math.rsqrt %241 : vector<8x1xf32>
    %243 = vector.broadcast %242 : vector<8x1xf32> to vector<8x32xf32>
    %244 = arith.mulf %239, %243 : vector<8x32xf32>
    %245 = vector.broadcast %10 : vector<1x32xf32> to vector<8x32xf32>
    %246 = arith.mulf %244, %245 : vector<8x32xf32>
    %247 = vector.broadcast %11 : vector<1x32xf32> to vector<8x32xf32>
    %248 = arith.addf %246, %247 : vector<8x32xf32>
    %c0_97 = arith.constant 0 : index
    %c0_98 = arith.constant 0 : index
    %249 = vector.load %arg15[%c0_97, %c0_98] : memref<32x128xf32, #tpu.memory_space<vmem>>, vector<32x128xf32>
    %cst_99 = arith.constant dense<0.000000e+00> : vector<8x128xf32>
    %250 = tpu.matmul %248, %249, %cst_99 {dimension_numbers = #tpu.dot_dimension_numbers<[1], [0], [0], [1], [0, 0, 1, 1], [], []>} : vector<8x32xf32>, vector<32x128xf32>, vector<8x128xf32> -> vector<8x128xf32>
    %251 = vector.broadcast %15 : vector<1x128xf32> to vector<8x128xf32>
    %252 = arith.addf %250, %251 : vector<8x128xf32>
    %c0_100 = arith.constant 0 : index
    %c0_101 = arith.constant 0 : index
    %253 = vector.load %arg16[%c0_100, %c0_101] : memref<32x128xf32, #tpu.memory_space<vmem>>, vector<32x128xf32>
    %cst_102 = arith.constant dense<0.000000e+00> : vector<8x128xf32>
    %254 = tpu.matmul %248, %253, %cst_102 {dimension_numbers = #tpu.dot_dimension_numbers<[1], [0], [0], [1], [0, 0, 1, 1], [], []>} : vector<8x32xf32>, vector<32x128xf32>, vector<8x128xf32> -> vector<8x128xf32>
    %255 = vector.broadcast %16 : vector<1x128xf32> to vector<8x128xf32>
    %256 = arith.addf %254, %255 : vector<8x128xf32>
    %cst_103 = arith.constant 5.000000e-01 : f32
    %257 = vector.broadcast %cst_103 : f32 to vector<8x128xf32>
    %258 = arith.mulf %257, %256 : vector<8x128xf32>
    %cst_104 = arith.constant 0.707106769 : f32
    %259 = vector.broadcast %cst_104 : f32 to vector<8x128xf32>
    %260 = arith.mulf %256, %259 : vector<8x128xf32>
    %261 = math.erf %260 : vector<8x128xf32>
    %cst_105 = arith.constant 1.000000e+00 : f32
    %262 = vector.broadcast %cst_105 : f32 to vector<8x128xf32>
    %263 = arith.addf %262, %261 : vector<8x128xf32>
    %264 = arith.mulf %258, %263 : vector<8x128xf32>
    %265 = arith.mulf %252, %264 : vector<8x128xf32>
    %c0_106 = arith.constant 0 : index
    %c0_107 = arith.constant 0 : index
    %266 = vector.load %arg17[%c0_106, %c0_107] : memref<128x32xf32, #tpu.memory_space<vmem>>, vector<128x32xf32>
    %cst_108 = arith.constant dense<0.000000e+00> : vector<8x32xf32>
    %267 = tpu.matmul %265, %266, %cst_108 {dimension_numbers = #tpu.dot_dimension_numbers<[1], [0], [0], [1], [0, 0, 1, 1], [], []>} : vector<8x128xf32>, vector<128x32xf32>, vector<8x32xf32> -> vector<8x32xf32>
    %268 = vector.broadcast %14 : vector<1x32xf32> to vector<8x32xf32>
    %269 = arith.addf %267, %268 : vector<8x32xf32>
    %270 = arith.addf %269, %226 : vector<8x32xf32>
    %c0_109 = arith.constant 0 : index
    %c0_110 = arith.constant 0 : index
    %c0_111 = arith.constant 0 : index
    %271 = vector.load %arg18[%c0_109, %c0_110, %c0_111] : memref<1x8x32xf32, #tpu.memory_space<vmem>>, vector<1x8x32xf32>
    %272 = vector.shape_cast %271 : vector<1x8x32xf32> to vector<8x32xf32>
    %273 = vector.shape_cast %270 : vector<8x32xf32> to vector<1x8x32xf32>
    tpu.vector_store %arg18[%c0_109, %c0_110, %c0_111], %273 {strides = array<i32>} : memref<1x8x32xf32, #tpu.memory_space<vmem>>, vector<1x8x32xf32>,
    return
  }
  func.func @transform_0(%arg0: i32, %arg1: i32) -> (i32, i32, i32) {
    %c0_i32 = arith.constant 0 : i32
    %c0_i32_0 = arith.constant 0 : i32
    return %arg0, %arg1, %c0_i32 : i32, i32, i32
  }
  func.func @transform_1(%arg0: i32, %arg1: i32) -> (i32, i32, i32) {
    %c0_i32 = arith.constant 0 : i32
    %c0_i32_0 = arith.constant 0 : i32
    %c0_i32_1 = arith.constant 0 : i32
    return %arg0, %c0_i32, %c0_i32_0 : i32, i32, i32
  }
  func.func @transform_2(%arg0: i32, %arg1: i32) -> (i32, i32, i32) {
    %c0_i32 = arith.constant 0 : i32
    %c0_i32_0 = arith.constant 0 : i32
    %c0_i32_1 = arith.constant 0 : i32
    return %arg0, %c0_i32, %c0_i32_0 : i32, i32, i32
  }
  func.func @transform_3(%arg0: i32, %arg1: i32) -> (i32, i32) {
    %c0_i32 = arith.constant 0 : i32
    %c0_i32_0 = arith.constant 0 : i32
    %c0_i32_1 = arith.constant 0 : i32
    return %c0_i32, %c0_i32_0 : i32, i32
  }
  func.func @transform_4(%arg0: i32, %arg1: i32) -> (i32, i32) {
    %c0_i32 = arith.constant 0 : i32
    %c0_i32_0 = arith.constant 0 : i32
    %c0_i32_1 = arith.constant 0 : i32
    return %c0_i32, %c0_i32_0 : i32, i32
  }
  func.func @transform_5(%arg0: i32, %arg1: i32) -> (i32, i32) {
    %c0_i32 = arith.constant 0 : i32
    %c0_i32_0 = arith.constant 0 : i32
    %c0_i32_1 = arith.constant 0 : i32
    return %c0_i32, %c0_i32_0 : i32, i32
  }
  func.func @transform_6(%arg0: i32, %arg1: i32) -> (i32, i32) {
    %c0_i32 = arith.constant 0 : i32
    %c0_i32_0 = arith.constant 0 : i32
    %c0_i32_1 = arith.constant 0 : i32
    return %c0_i32, %c0_i32_0 : i32, i32
  }
  func.func @transform_7(%arg0: i32, %arg1: i32) -> (i32, i32) {
    %c0_i32 = arith.constant 0 : i32
    %c0_i32_0 = arith.constant 0 : i32
    %c0_i32_1 = arith.constant 0 : i32
    return %c0_i32, %c0_i32_0 : i32, i32
  }
  func.func @transform_8(%arg0: i32, %arg1: i32) -> (i32, i32) {
    %c0_i32 = arith.constant 0 : i32
    %c0_i32_0 = arith.constant 0 : i32
    %c0_i32_1 = arith.constant 0 : i32
    return %c0_i32, %c0_i32_0 : i32, i32
  }
  func.func @transform_9(%arg0: i32, %arg1: i32) -> (i32, i32) {
    %c0_i32 = arith.constant 0 : i32
    %c0_i32_0 = arith.constant 0 : i32
    %c0_i32_1 = arith.constant 0 : i32
    return %c0_i32, %c0_i32_0 : i32, i32
  }
  func.func @transform_10(%arg0: i32, %arg1: i32) -> (i32, i32) {
    %c0_i32 = arith.constant 0 : i32
    %c0_i32_0 = arith.constant 0 : i32
    %c0_i32_1 = arith.constant 0 : i32
    return %c0_i32, %c0_i32_0 : i32, i32
  }
  func.func @transform_11(%arg0: i32, %arg1: i32) -> (i32, i32) {
    %c0_i32 = arith.constant 0 : i32
    %c0_i32_0 = arith.constant 0 : i32
    %c0_i32_1 = arith.constant 0 : i32
    return %c0_i32, %c0_i32_0 : i32, i32
  }
  func.func @transform_12(%arg0: i32, %arg1: i32) -> (i32, i32) {
    %c0_i32 = arith.constant 0 : i32
    %c0_i32_0 = arith.constant 0 : i32
    %c0_i32_1 = arith.constant 0 : i32
    return %c0_i32, %c0_i32_0 : i32, i32
  }
  func.func @transform_13(%arg0: i32, %arg1: i32) -> (i32, i32) {
    %c0_i32 = arith.constant 0 : i32
    %c0_i32_0 = arith.constant 0 : i32
    %c0_i32_1 = arith.constant 0 : i32
    return %c0_i32, %c0_i32_0 : i32, i32
  }
  func.func @transform_14(%arg0: i32, %arg1: i32) -> (i32, i32) {
    %c0_i32 = arith.constant 0 : i32
    %c0_i32_0 = arith.constant 0 : i32
    %c0_i32_1 = arith.constant 0 : i32
    return %c0_i32, %c0_i32_0 : i32, i32
  }
  func.func @transform_15(%arg0: i32, %arg1: i32) -> (i32, i32) {
    %c0_i32 = arith.constant 0 : i32
    %c0_i32_0 = arith.constant 0 : i32
    %c0_i32_1 = arith.constant 0 : i32
    return %c0_i32, %c0_i32_0 : i32, i32
  }
  func.func @transform_16(%arg0: i32, %arg1: i32) -> (i32, i32, i32) {
    %c0_i32 = arith.constant 0 : i32
    %c0_i32_0 = arith.constant 0 : i32
    return %arg0, %arg1, %c0_i32 : i32, i32, i32
  }
}

</mosaic_0001>

<llo_original>
// kernel: tpu_custom_call.1
$region0: #{tpu_custom_call.1}
  #allocation0 [shape = 'u32[]', space=smem, size = 0x4, offset = 0x4, fixed_abs, tag = 'smem constant byte address 0x4 - core index']
  #allocation1 [shape = 'u32[144,128]{1,0:T(1,128)}', space=vmem, size = 0x12000, scoped, tag = 'internal scratch']
  %s0 = inlined_call_operand.vmem [shape: f32[2,16,32], index: 0, kind: input, shape index: {}]
  %s1 = inlined_call_operand.vmem [shape: f32[2,16,32], index: 1, kind: input, shape index: {}]
  %s2 = inlined_call_operand.hbm [shape: f32[2,8,24], index: 2, kind: input, shape index: {}]
  %s3 = inlined_call_operand.hbm [shape: f32[9,32], index: 3, kind: input, shape index: {}]
  %s4 = inlined_call_operand.vmem [shape: f32[2,128], index: 4, kind: input, shape index: {}]
  %s5 = inlined_call_operand.vmem [shape: f32[32,32], index: 5, kind: input, shape index: {}]
  %s6 = inlined_call_operand.vmem [shape: f32[32,32], index: 6, kind: input, shape index: {}]
  %s7 = inlined_call_operand.vmem [shape: f32[32,32], index: 7, kind: input, shape index: {}]
  %s8 = inlined_call_operand.hbm [shape: f32[32,32], index: 8, kind: input, shape index: {}]
  %s9 = inlined_call_operand.hbm [shape: f32[32,32], index: 9, kind: input, shape index: {}]
  %s10 = inlined_call_operand.hbm [shape: f32[24,32], index: 10, kind: input, shape index: {}]
  %s11 = inlined_call_operand.hbm [shape: f32[24,32], index: 11, kind: input, shape index: {}]
  %s12 = inlined_call_operand.hbm [shape: f32[32,32], index: 12, kind: input, shape index: {}]
  %s13 = inlined_call_operand.hbm [shape: f32[32,128], index: 13, kind: input, shape index: {}]
  %s14 = inlined_call_operand.hbm [shape: f32[32,128], index: 14, kind: input, shape index: {}]
  %s15 = inlined_call_operand.vmem [shape: f32[128,32], index: 15, kind: input, shape index: {}]
  %s16 = inlined_call_operand.hbm [shape: f32[2,16,32], index: 16, kind: output, shape index: {}]
  %s17 = sld [smem:[#allocation0]]
  $region133: #{tpu_custom_call.1} parent=0
    _
  %s19 = ssub.s32 1, %s17
  %s20 = scalar_select 0, %s19, %s17
  $region1: #{tpu_custom_call.1} parent=0
    #allocation2 [shape = 'u8[8192]{0}', space=vmem, size = 0x2000, scoped, tag = 'input window, operand 2']
    #allocation3 [shape = 's32[2]{0}', space=sflag, size = 0x8, scoped, tag = 'scoped memory for tpu_custom_call.1']
    #allocation4 [shape = 's32[2]{0}', space=sflag, size = 0x8, scoped, tag = 'scoped memory for tpu_custom_call.1']
    #allocation5 [shape = 'u8[8192]{0}', space=vmem, size = 0x2000, scoped, tag = 'input window, operand 3, single buffered']
    #allocation6 [shape = 's32[1]{0}', space=sflag, size = 0x4, scoped, tag = 'scoped memory for tpu_custom_call.1']
    #allocation7 [shape = 'u8[16384]{0}', space=vmem, size = 0x4000, scoped, tag = 'input window, operand 8, single buffered']
    #allocation8 [shape = 'u8[16384]{0}', space=vmem, size = 0x4000, scoped, tag = 'input window, operand 9, single buffered']
    #allocation9 [shape = 's32[1]{0}', space=sflag, size = 0x4, scoped, tag = 'scoped memory for tpu_custom_call.1']
    #allocation10 [shape = 'u8[12288]{0}', space=vmem, size = 0x3000, scoped, tag = 'input window, operand 10, single buffered']
    #allocation11 [shape = 'u8[12288]{0}', space=vmem, size = 0x3000, scoped, tag = 'input window, operand 11, single buffered']
    #allocation12 [shape = 's32[1]{0}', space=sflag, size = 0x4, scoped, tag = 'scoped memory for tpu_custom_call.1']
    #allocation13 [shape = 'u8[16384]{0}', space=vmem, size = 0x4000, scoped, tag = 'input window, operand 12, single buffered']
    #allocation14 [shape = 'u8[16384]{0}', space=vmem, size = 0x4000, scoped, tag = 'input window, operand 13, single buffered']
    #allocation15 [shape = 's32[1]{0}', space=sflag, size = 0x4, scoped, tag = 'scoped memory for tpu_custom_call.1']
    #allocation16 [shape = 'u8[16384]{0}', space=vmem, size = 0x4000, scoped, tag = 'input window, operand 14, single buffered']
    #allocation17 [shape = 'u8[8192]{0}', space=vmem, size = 0x2000, scoped, tag = 'output window, operand 0']
    %21 = vsyncpa [#allocation3], 0
    %s22 = scalar_lea.sflag [#allocation3], 1
    %23 = vsyncpa %s22, 0
    %24 = vsyncpa [#allocation6], 0
    %25 = vsyncpa [#allocation9], 0
    %26 = vsyncpa [#allocation12], 0
    %27 = vsyncpa [#allocation15], 0
    %28 = vsyncpa [#allocation4], 0
    %s29 = scalar_lea.sflag [#allocation4], 1
    %30 = vsyncpa %s29, 0
    loop: start=0, step=1, limit=6
    $region2: #{tpu_custom_call.1} parent=1 // loop_pre_header
      _
    $region3: #{tpu_custom_call.1} parent=1 // loop_header
      %s32 = sphi 0, %s36
      %p33 = scmp.ge.s32.totalorder %s32, 6
      %s39 = sphi 0, %s51
      %s40 = sphi 0, %s47
      %s41 = sphi 0, %s39
      %s42 = sphi 0, %s40
      %s43 = sphi 0, %s41
      %s44 = sphi 0, %s42
      %s56 = sphi 0, %s58
      %s59 = sphi 0, %s56
      %s60 = sphi 0, %s59
      %s76 = sphi 0, %s60
      %s82 = sphi 0, %s84
      %s85 = sphi 0, %s82
      %s86 = sphi 0, %s85
      %s102 = sphi 0, %s86
      %s108 = sphi 0, %s110
      %s111 = sphi 0, %s108
      %s112 = sphi 0, %s111
      %s128 = sphi 0, %s112
      %s132 = sphi 0, %s132
      %s134 = sphi 0, %s132
      %s135 = sphi 0, %s134
      %s149 = sphi 0, %s135
      %s153 = sphi 0, %s153
      %s155 = sphi 0, %s153
      %s156 = sphi 0, %s155
      %s170 = sphi 0, %s156
      %s174 = sphi 0, %s174
      %s176 = sphi 0, %s174
      %s177 = sphi 0, %s176
      %s191 = sphi 0, %s177
      %s195 = sphi 0, %s195
      %s197 = sphi 0, %s195
      %s198 = sphi 0, %s197
      %s212 = sphi 0, %s198
      %s216 = sphi 0, %s216
      %s218 = sphi 0, %s216
      %s219 = sphi 0, %s218
      %s233 = sphi 0, %s219
      %s237 = sphi 0, %s237
      %s239 = sphi 0, %s237
      %s240 = sphi 0, %s239
      %s254 = sphi 0, %s240
      %s258 = sphi 0, %s258
      %s260 = sphi 0, %s258
      %s261 = sphi 0, %s260
      %s275 = sphi 0, %s261
      %s279 = sphi 0, %s279
      %s281 = sphi 0, %s279
      %s282 = sphi 0, %s281
      %s296 = sphi 0, %s282
      %s300 = sphi 0, %s300
      %s302 = sphi 0, %s300
      %s303 = sphi 0, %s302
      %s317 = sphi 0, %s303
      %s321 = sphi 0, %s321
      %s323 = sphi 0, %s321
      %s324 = sphi 0, %s323
      %s338 = sphi 0, %s324
      %s342 = sphi 0, %s342
      %s344 = sphi 0, %s342
      %s345 = sphi 0, %s344
      %s359 = sphi 0, %s345
      %s363 = sphi 0, %s363
      %s365 = sphi 0, %s363
      %s366 = sphi 0, %s365
      %s380 = sphi 0, %s366
      %s384 = sphi 0, %s384
      %s386 = sphi 0, %s384
      %s387 = sphi 0, %s386
      %s401 = sphi 0, %s387
      %s409 = sphi 0, %s411
      %s412 = sphi 0, %s409
      %s413 = sphi 0, %s412
      %s429 = sphi 0, %s413
    $region4: #{tpu_custom_call.1} parent=1 // loop_header_branch
      %35 = sbr.rel (%p33) target = $region8
    $region5: #{tpu_custom_call.1} parent=1 // loop_body
      %s37 = ssub.s32 %s32, 1
      %s38 = ssub.s32 %s32, 2
      %s45 = sadd.s32 1, %s40
      %p46 = scmp.ge.s32.totalorder %s45, 2
      %s47 = scalar_select %p46, 0, %s45
      %s48 = sadd.s32 1, %s39
      %s49 = scalar_select %p46, %s48, %s39
      %p50 = scmp.ge.s32.totalorder %s49, 2
      %s51 = scalar_select %p50, 0, %s49
      %s52 = ssub.s32 %s39, %s51
      %s53 = ssub.s32 %s40, %s47
      %s54 = sor.u32 %s52, %s53
      %p55 = scmp.eq.s32.totalorder %s54, 0
      %s57 = sadd.s32 %s56, 1
      %s58 = scalar_select %p55, %s56, %s57
      %p61 = pneg %p55
      %p62 = scmp.eq.s32.totalorder %s32, 3
      %p63 = por %p61, %p62
      %p64 = scmp.ne.s32.totalorder %s56, %s59
      %p65 = scmp.eq.s32.totalorder %s32, 0
      %p66 = por %p64, %p65
      %p67 = scmp.ne.s32.totalorder %s56, %s59
      %p68 = scmp.eq.s32.totalorder %s37, 3
      %p69 = por %p67, %p68
      %p70 = scmp.ne.s32.totalorder %s59, %s60
      %p71 = scmp.eq.s32.totalorder %s37, 0
      %p72 = por %p70, %p71
      %p73 = scmp.ne.s32.totalorder %s59, %s60
      %p74 = scmp.eq.s32.totalorder %s38, 3
      %p75 = por %p73, %p74
      %p77 = scmp.ne.s32.totalorder %s60, %s76
      %p78 = scmp.eq.s32.totalorder %s38, 0
      %p79 = por %p77, %p78
      %s80 = ssub.s32 %s39, %s51
      %p81 = scmp.eq.s32.totalorder %s80, 0
      %s83 = sadd.s32 %s82, 1
      %s84 = scalar_select %p81, %s82, %s83
      %p87 = pneg %p81
      %p88 = scmp.eq.s32.totalorder %s32, 3
      %p89 = por %p87, %p88
      %p90 = scmp.ne.s32.totalorder %s82, %s85
      %p91 = scmp.eq.s32.totalorder %s32, 0
      %p92 = por %p90, %p91
      %p93 = scmp.ne.s32.totalorder %s82, %s85
      %p94 = scmp.eq.s32.totalorder %s37, 3
      %p95 = por %p93, %p94
      %p96 = scmp.ne.s32.totalorder %s85, %s86
      %p97 = scmp.eq.s32.totalorder %s37, 0
      %p98 = por %p96, %p97
      %p99 = scmp.ne.s32.totalorder %s85, %s86
      %p100 = scmp.eq.s32.totalorder %s38, 3
      %p101 = por %p99, %p100
      %p103 = scmp.ne.s32.totalorder %s86, %s102
      %p104 = scmp.eq.s32.totalorder %s38, 0
      %p105 = por %p103, %p104
      %s106 = ssub.s32 %s39, %s51
      %p107 = scmp.eq.s32.totalorder %s106, 0
      %s109 = sadd.s32 %s108, 1
      %s110 = scalar_select %p107, %s108, %s109
      %p113 = pneg %p107
      %p114 = scmp.eq.s32.totalorder %s32, 3
      %p115 = por %p113, %p114
      %p116 = scmp.ne.s32.totalorder %s108, %s111
      %p117 = scmp.eq.s32.totalorder %s32, 0
      %p118 = por %p116, %p117
      %p119 = scmp.ne.s32.totalorder %s108, %s111
      %p120 = scmp.eq.s32.totalorder %s37, 3
      %p121 = por %p119, %p120
      %p122 = scmp.ne.s32.totalorder %s111, %s112
      %p123 = scmp.eq.s32.totalorder %s37, 0
      %p124 = por %p122, %p123
      %p125 = scmp.ne.s32.totalorder %s111, %s112
      %p126 = scmp.eq.s32.totalorder %s38, 3
      %p127 = por %p125, %p126
      %p129 = scmp.ne.s32.totalorder %s112, %s128
      %p130 = scmp.eq.s32.totalorder %s38, 0
      %p131 = por %p129, %p130
      %s133 = sadd.s32 %s132, 1
      %p136 = scmp.eq.s32.totalorder %s32, 3
      %p137 = scmp.ne.s32.totalorder %s132, %s134
      %p138 = scmp.eq.s32.totalorder %s32, 0
      %p139 = por %p137, %p138
      %p140 = scmp.ne.s32.totalorder %s132, %s134
      %p141 = scmp.eq.s32.totalorder %s37, 3
      %p142 = por %p140, %p141
      %p143 = scmp.ne.s32.totalorder %s134, %s135
      %p144 = scmp.eq.s32.totalorder %s37, 0
      %p145 = por %p143, %p144
      %p146 = scmp.ne.s32.totalorder %s134, %s135
      %p147 = scmp.eq.s32.totalorder %s38, 3
      %p148 = por %p146, %p147
      %p150 = scmp.ne.s32.totalorder %s135, %s149
      %p151 = scmp.eq.s32.totalorder %s38, 0
      %p152 = por %p150, %p151
      %s154 = sadd.s32 %s153, 1
      %p157 = scmp.eq.s32.totalorder %s32, 3
      %p158 = scmp.ne.s32.totalorder %s153, %s155
      %p159 = scmp.eq.s32.totalorder %s32, 0
      %p160 = por %p158, %p159
      %p161 = scmp.ne.s32.totalorder %s153, %s155
      %p162 = scmp.eq.s32.totalorder %s37, 3
      %p163 = por %p161, %p162
      %p164 = scmp.ne.s32.totalorder %s155, %s156
      %p165 = scmp.eq.s32.totalorder %s37, 0
      %p166 = por %p164, %p165
      %p167 = scmp.ne.s32.totalorder %s155, %s156
      %p168 = scmp.eq.s32.totalorder %s38, 3
      %p169 = por %p167, %p168
      %p171 = scmp.ne.s32.totalorder %s156, %s170
      %p172 = scmp.eq.s32.totalorder %s38, 0
      %p173 = por %p171, %p172
      %s175 = sadd.s32 %s174, 1
      %p178 = scmp.eq.s32.totalorder %s32, 3
      %p179 = scmp.ne.s32.totalorder %s174, %s176
      %p180 = scmp.eq.s32.totalorder %s32, 0
      %p181 = por %p179, %p180
      %p182 = scmp.ne.s32.totalorder %s174, %s176
      %p183 = scmp.eq.s32.totalorder %s37, 3
      %p184 = por %p182, %p183
      %p185 = scmp.ne.s32.totalorder %s176, %s177
      %p186 = scmp.eq.s32.totalorder %s37, 0
      %p187 = por %p185, %p186
      %p188 = scmp.ne.s32.totalorder %s176, %s177
      %p189 = scmp.eq.s32.totalorder %s38, 3
      %p190 = por %p188, %p189
      %p192 = scmp.ne.s32.totalorder %s177, %s191
      %p193 = scmp.eq.s32.totalorder %s38, 0
      %p194 = por %p192, %p193
      %s196 = sadd.s32 %s195, 1
      %p199 = scmp.eq.s32.totalorder %s32, 3
      %p200 = scmp.ne.s32.totalorder %s195, %s197
      %p201 = scmp.eq.s32.totalorder %s32, 0
      %p202 = por %p200, %p201
      %p203 = scmp.ne.s32.totalorder %s195, %s197
      %p204 = scmp.eq.s32.totalorder %s37, 3
      %p205 = por %p203, %p204
      %p206 = scmp.ne.s32.totalorder %s197, %s198
      %p207 = scmp.eq.s32.totalorder %s37, 0
      %p208 = por %p206, %p207
      %p209 = scmp.ne.s32.totalorder %s197, %s198
      %p210 = scmp.eq.s32.totalorder %s38, 3
      %p211 = por %p209, %p210
      %p213 = scmp.ne.s32.totalorder %s198, %s212
      %p214 = scmp.eq.s32.totalorder %s38, 0
      %p215 = por %p213, %p214
      %s217 = sadd.s32 %s216, 1
      %p220 = scmp.eq.s32.totalorder %s32, 3
      %p221 = scmp.ne.s32.totalorder %s216, %s218
      %p222 = scmp.eq.s32.totalorder %s32, 0
      %p223 = por %p221, %p222
      %p224 = scmp.ne.s32.totalorder %s216, %s218
      %p225 = scmp.eq.s32.totalorder %s37, 3
      %p226 = por %p224, %p225
      %p227 = scmp.ne.s32.totalorder %s218, %s219
      %p228 = scmp.eq.s32.totalorder %s37, 0
      %p229 = por %p227, %p228
      %p230 = scmp.ne.s32.totalorder %s218, %s219
      %p231 = scmp.eq.s32.totalorder %s38, 3
      %p232 = por %p230, %p231
      %p234 = scmp.ne.s32.totalorder %s219, %s233
      %p235 = scmp.eq.s32.totalorder %s38, 0
      %p236 = por %p234, %p235
      %s238 = sadd.s32 %s237, 1
      %p241 = scmp.eq.s32.totalorder %s32, 3
      %p242 = scmp.ne.s32.totalorder %s237, %s239
      %p243 = scmp.eq.s32.totalorder %s32, 0
      %p244 = por %p242, %p243
      %p245 = scmp.ne.s32.totalorder %s237, %s239
      %p246 = scmp.eq.s32.totalorder %s37, 3
      %p247 = por %p245, %p246
      %p248 = scmp.ne.s32.totalorder %s239, %s240
      %p249 = scmp.eq.s32.totalorder %s37, 0
      %p250 = por %p248, %p249
      %p251 = scmp.ne.s32.totalorder %s239, %s240
      %p252 = scmp.eq.s32.totalorder %s38, 3
      %p253 = por %p251, %p252
      %p255 = scmp.ne.s32.totalorder %s240, %s254
      %p256 = scmp.eq.s32.totalorder %s38, 0
      %p257 = por %p255, %p256
      %s259 = sadd.s32 %s258, 1
      %p262 = scmp.eq.s32.totalorder %s32, 3
      %p263 = scmp.ne.s32.totalorder %s258, %s260
      %p264 = scmp.eq.s32.totalorder %s32, 0
      %p265 = por %p263, %p264
      %p266 = scmp.ne.s32.totalorder %s258, %s260
      %p267 = scmp.eq.s32.totalorder %s37, 3
      %p268 = por %p266, %p267
      %p269 = scmp.ne.s32.totalorder %s260, %s261
      %p270 = scmp.eq.s32.totalorder %s37, 0
      %p271 = por %p269, %p270
      %p272 = scmp.ne.s32.totalorder %s260, %s261
      %p273 = scmp.eq.s32.totalorder %s38, 3
      %p274 = por %p272, %p273
      %p276 = scmp.ne.s32.totalorder %s261, %s275
      %p277 = scmp.eq.s32.totalorder %s38, 0
      %p278 = por %p276, %p277
      %s280 = sadd.s32 %s279, 1
      %p283 = scmp.eq.s32.totalorder %s32, 3
      %p284 = scmp.ne.s32.totalorder %s279, %s281
      %p285 = scmp.eq.s32.totalorder %s32, 0
      %p286 = por %p284, %p285
      %p287 = scmp.ne.s32.totalorder %s279, %s281
      %p288 = scmp.eq.s32.totalorder %s37, 3
      %p289 = por %p287, %p288
      %p290 = scmp.ne.s32.totalorder %s281, %s282
      %p291 = scmp.eq.s32.totalorder %s37, 0
      %p292 = por %p290, %p291
      %p293 = scmp.ne.s32.totalorder %s281, %s282
      %p294 = scmp.eq.s32.totalorder %s38, 3
      %p295 = por %p293, %p294
      %p297 = scmp.ne.s32.totalorder %s282, %s296
      %p298 = scmp.eq.s32.totalorder %s38, 0
      %p299 = por %p297, %p298
      %s301 = sadd.s32 %s300, 1
      %p304 = scmp.eq.s32.totalorder %s32, 3
      %p305 = scmp.ne.s32.totalorder %s300, %s302
      %p306 = scmp.eq.s32.totalorder %s32, 0
      %p307 = por %p305, %p306
      %p308 = scmp.ne.s32.totalorder %s300, %s302
      %p309 = scmp.eq.s32.totalorder %s37, 3
      %p310 = por %p308, %p309
      %p311 = scmp.ne.s32.totalorder %s302, %s303
      %p312 = scmp.eq.s32.totalorder %s37, 0
      %p313 = por %p311, %p312
      %p314 = scmp.ne.s32.totalorder %s302, %s303
      %p315 = scmp.eq.s32.totalorder %s38, 3
      %p316 = por %p314, %p315
      %p318 = scmp.ne.s32.totalorder %s303, %s317
      %p319 = scmp.eq.s32.totalorder %s38, 0
      %p320 = por %p318, %p319
      %s322 = sadd.s32 %s321, 1
      %p325 = scmp.eq.s32.totalorder %s32, 3
      %p326 = scmp.ne.s32.totalorder %s321, %s323
      %p327 = scmp.eq.s32.totalorder %s32, 0
      %p328 = por %p326, %p327
      %p329 = scmp.ne.s32.totalorder %s321, %s323
      %p330 = scmp.eq.s32.totalorder %s37, 3
      %p331 = por %p329, %p330
      %p332 = scmp.ne.s32.totalorder %s323, %s324
      %p333 = scmp.eq.s32.totalorder %s37, 0
      %p334 = por %p332, %p333
      %p335 = scmp.ne.s32.totalorder %s323, %s324
      %p336 = scmp.eq.s32.totalorder %s38, 3
      %p337 = por %p335, %p336
      %p339 = scmp.ne.s32.totalorder %s324, %s338
      %p340 = scmp.eq.s32.totalorder %s38, 0
      %p341 = por %p339, %p340
      %s343 = sadd.s32 %s342, 1
      %p346 = scmp.eq.s32.totalorder %s32, 3
      %p347 = scmp.ne.s32.totalorder %s342, %s344
      %p348 = scmp.eq.s32.totalorder %s32, 0
      %p349 = por %p347, %p348
      %p350 = scmp.ne.s32.totalorder %s342, %s344
      %p351 = scmp.eq.s32.totalorder %s37, 3
      %p352 = por %p350, %p351
      %p353 = scmp.ne.s32.totalorder %s344, %s345
      %p354 = scmp.eq.s32.totalorder %s37, 0
      %p355 = por %p353, %p354
      %p356 = scmp.ne.s32.totalorder %s344, %s345
      %p357 = scmp.eq.s32.totalorder %s38, 3
      %p358 = por %p356, %p357
      %p360 = scmp.ne.s32.totalorder %s345, %s359
      %p361 = scmp.eq.s32.totalorder %s38, 0
      %p362 = por %p360, %p361
      %s364 = sadd.s32 %s363, 1
      %p367 = scmp.eq.s32.totalorder %s32, 3
      %p368 = scmp.ne.s32.totalorder %s363, %s365
      %p369 = scmp.eq.s32.totalorder %s32, 0
      %p370 = por %p368, %p369
      %p371 = scmp.ne.s32.totalorder %s363, %s365
      %p372 = scmp.eq.s32.totalorder %s37, 3
      %p373 = por %p371, %p372
      %p374 = scmp.ne.s32.totalorder %s365, %s366
      %p375 = scmp.eq.s32.totalorder %s37, 0
      %p376 = por %p374, %p375
      %p377 = scmp.ne.s32.totalorder %s365, %s366
      %p378 = scmp.eq.s32.totalorder %s38, 3
      %p379 = por %p377, %p378
      %p381 = scmp.ne.s32.totalorder %s366, %s380
      %p382 = scmp.eq.s32.totalorder %s38, 0
      %p383 = por %p381, %p382
      %s385 = sadd.s32 %s384, 1
      %p388 = scmp.eq.s32.totalorder %s32, 3
      %p389 = scmp.ne.s32.totalorder %s384, %s386
      %p390 = scmp.eq.s32.totalorder %s32, 0
      %p391 = por %p389, %p390
      %p392 = scmp.ne.s32.totalorder %s384, %s386
      %p393 = scmp.eq.s32.totalorder %s37, 3
      %p394 = por %p392, %p393
      %p395 = scmp.ne.s32.totalorder %s386, %s387
      %p396 = scmp.eq.s32.totalorder %s37, 0
      %p397 = por %p395, %p396
      %p398 = scmp.ne.s32.totalorder %s386, %s387
      %p399 = scmp.eq.s32.totalorder %s38, 3
      %p400 = por %p398, %p399
      %p402 = scmp.ne.s32.totalorder %s387, %s401
      %p403 = scmp.eq.s32.totalorder %s38, 0
      %p404 = por %p402, %p403
      %s405 = ssub.s32 %s39, %s51
      %s406 = ssub.s32 %s40, %s47
      %s407 = sor.u32 %s405, %s406
      %p408 = scmp.eq.s32.totalorder %s407, 0
      %s410 = sadd.s32 %s409, 1
      %s411 = scalar_select %p408, %s409, %s410
      %p414 = pneg %p408
      %p415 = scmp.eq.s32.totalorder %s32, 3
      %p416 = por %p414, %p415
      %p417 = scmp.ne.s32.totalorder %s409, %s412
      %p418 = scmp.eq.s32.totalorder %s32, 0
      %p419 = por %p417, %p418
      %p420 = scmp.ne.s32.totalorder %s409, %s412
      %p421 = scmp.eq.s32.totalorder %s37, 3
      %p422 = por %p420, %p421
      %p423 = scmp.ne.s32.totalorder %s412, %s413
      %p424 = scmp.eq.s32.totalorder %s37, 0
      %p425 = por %p423, %p424
      %p426 = scmp.ne.s32.totalorder %s412, %s413
      %p427 = scmp.eq.s32.totalorder %s38, 3
      %p428 = por %p426, %p427
      %p430 = scmp.ne.s32.totalorder %s413, %s429
      %p431 = scmp.eq.s32.totalorder %s38, 0
      %p432 = por %p430, %p431
      %p433 = scmp.le.s32.totalorder 1, %s32
      %p434 = scmp.lt.s32.totalorder %s32, 5
      %p435 = pnand %p433, %p434
      %p436 = pneg %p435
      // Predicated region
      $region9: #{tpu_custom_call.1} parent=5 // pred_check
        _
      $region10: #{tpu_custom_call.1} parent=5 // pred_check_branch
        %438 = sbr.rel (%p435) target = $region12
      $region11: #{tpu_custom_call.1} parent=5 // pred_region
        %s439 = ssub.s32 %s32, 1
        // Predicated region
        $region13: #{tpu_custom_call.1} parent=11 // pred_check
          %p440 = pneg %p145
        $region14: #{tpu_custom_call.1} parent=11 // pred_check_branch
          %442 = sbr.rel (%p440) target = $region16
        $region15: #{tpu_custom_call.1} parent=11 // pred_region
          %s444 = ssub.s32 256, 256
          %445 = vsyncadd [#allocation6], %s444
          %s446 = sshll.u32 [#allocation5], 4
          %s447 = int_to_ptr.vmem [resolvable:$true] %s446
          %452 = dma.hbm_to_vmem [thread:$0]  %s3, 256, %s447, [#allocation6], 128, 128, 8
        $region16: #{tpu_custom_call.1} parent=11 // pred_fallthru
          _
        // Predicated region
        $region17: #{tpu_custom_call.1} parent=11 // pred_check
          %p453 = pneg %p166
        $region18: #{tpu_custom_call.1} parent=11 // pred_check_branch
          %455 = sbr.rel (%p453) target = $region20
        $region19: #{tpu_custom_call.1} parent=11 // pred_region
          _
        $region20: #{tpu_custom_call.1} parent=11 // pred_fallthru
          _
        // Predicated region
        $region21: #{tpu_custom_call.1} parent=11 // pred_check
          %p456 = pneg %p187
        $region22: #{tpu_custom_call.1} parent=11 // pred_check_branch
          %458 = sbr.rel (%p456) target = $region24
        $region23: #{tpu_custom_call.1} parent=11 // pred_region
          _
        $region24: #{tpu_custom_call.1} parent=11 // pred_fallthru
          _
        // Predicated region
        $region25: #{tpu_custom_call.1} parent=11 // pred_check
          %p459 = pneg %p208
        $region26: #{tpu_custom_call.1} parent=11 // pred_check_branch
          %461 = sbr.rel (%p459) target = $region28
        $region27: #{tpu_custom_call.1} parent=11 // pred_region
          _
        $region28: #{tpu_custom_call.1} parent=11 // pred_fallthru
          _
        // Predicated region
        $region29: #{tpu_custom_call.1} parent=11 // pred_check
          %p462 = pneg %p229
        $region30: #{tpu_custom_call.1} parent=11 // pred_check_branch
          %464 = sbr.rel (%p462) target = $region32
        $region31: #{tpu_custom_call.1} parent=11 // pred_region
          _
        $region32: #{tpu_custom_call.1} parent=11 // pred_fallthru
          _
        // Predicated region
        $region33: #{tpu_custom_call.1} parent=11 // pred_check
          %p465 = pneg %p250
        $region34: #{tpu_custom_call.1} parent=11 // pred_check_branch
          %467 = sbr.rel (%p465) target = $region36
        $region35: #{tpu_custom_call.1} parent=11 // pred_region
          %s469 = ssub.s32 512, 512
          %470 = vsyncadd [#allocation6], %s469
          %s471 = sshll.u32 [#allocation7], 4
          %s472 = int_to_ptr.vmem [resolvable:$true] %s471
          %477 = dma.hbm_to_vmem [thread:$0]  %s8, 512, %s472, [#allocation6], 128, 128, 8
        $region36: #{tpu_custom_call.1} parent=11 // pred_fallthru
          _
        // Predicated region
        $region37: #{tpu_custom_call.1} parent=11 // pred_check
          %p478 = pneg %p271
        $region38: #{tpu_custom_call.1} parent=11 // pred_check_branch
          %480 = sbr.rel (%p478) target = $region40
        $region39: #{tpu_custom_call.1} parent=11 // pred_region
          %s482 = ssub.s32 512, 512
          %483 = vsyncadd [#allocation9], %s482
          %s484 = sshll.u32 [#allocation8], 4
          %s485 = int_to_ptr.vmem [resolvable:$true] %s484
          %490 = dma.hbm_to_vmem [thread:$0]  %s9, 512, %s485, [#allocation9], 128, 128, 8
        $region40: #{tpu_custom_call.1} parent=11 // pred_fallthru
          _
        // Predicated region
        $region41: #{tpu_custom_call.1} parent=11 // pred_check
          %p491 = pneg %p292
        $region42: #{tpu_custom_call.1} parent=11 // pred_check_branch
          %493 = sbr.rel (%p491) target = $region44
        $region43: #{tpu_custom_call.1} parent=11 // pred_region
          %s495 = ssub.s32 384, 384
          %496 = vsyncadd [#allocation9], %s495
          %s497 = sshll.u32 [#allocation10], 4
          %s498 = int_to_ptr.vmem [resolvable:$true] %s497
          %503 = dma.hbm_to_vmem [thread:$0]  %s10, 384, %s498, [#allocation9], 128, 128, 8
        $region44: #{tpu_custom_call.1} parent=11 // pred_fallthru
          _
        // Predicated region
        $region45: #{tpu_custom_call.1} parent=11 // pred_check
          %p504 = pneg %p313
        $region46: #{tpu_custom_call.1} parent=11 // pred_check_branch
          %506 = sbr.rel (%p504) target = $region48
        $region47: #{tpu_custom_call.1} parent=11 // pred_region
          %s508 = ssub.s32 384, 384
          %509 = vsyncadd [#allocation12], %s508
          %s510 = sshll.u32 [#allocation11], 4
          %s511 = int_to_ptr.vmem [resolvable:$true] %s510
          %516 = dma.hbm_to_vmem [thread:$0]  %s11, 384, %s511, [#allocation12], 128, 128, 8
        $region48: #{tpu_custom_call.1} parent=11 // pred_fallthru
          _
        // Predicated region
        $region49: #{tpu_custom_call.1} parent=11 // pred_check
          %p517 = pneg %p334
        $region50: #{tpu_custom_call.1} parent=11 // pred_check_branch
          %519 = sbr.rel (%p517) target = $region52
        $region51: #{tpu_custom_call.1} parent=11 // pred_region
          %s521 = ssub.s32 512, 512
          %522 = vsyncadd [#allocation12], %s521
          %s523 = sshll.u32 [#allocation13], 4
          %s524 = int_to_ptr.vmem [resolvable:$true] %s523
          %529 = dma.hbm_to_vmem [thread:$0]  %s12, 512, %s524, [#allocation12], 128, 128, 8
        $region52: #{tpu_custom_call.1} parent=11 // pred_fallthru
          _
        // Predicated region
        $region53: #{tpu_custom_call.1} parent=11 // pred_check
          %p530 = pneg %p355
        $region54: #{tpu_custom_call.1} parent=11 // pred_check_branch
          %532 = sbr.rel (%p530) target = $region56
        $region55: #{tpu_custom_call.1} parent=11 // pred_region
          %s534 = ssub.s32 512, 512
          %535 = vsyncadd [#allocation15], %s534
          %s536 = sshll.u32 [#allocation14], 4
          %s537 = int_to_ptr.vmem [resolvable:$true] %s536
          %542 = dma.hbm_to_vmem [thread:$0]  %s13, 512, %s537, [#allocation15], 128, 128, 8
        $region56: #{tpu_custom_call.1} parent=11 // pred_fallthru
          _
        // Predicated region
        $region57: #{tpu_custom_call.1} parent=11 // pred_check
          %p543 = pneg %p376
        $region58: #{tpu_custom_call.1} parent=11 // pred_check_branch
          %545 = sbr.rel (%p543) target = $region60
        $region59: #{tpu_custom_call.1} parent=11 // pred_region
          %s547 = ssub.s32 512, 512
          %548 = vsyncadd [#allocation15], %s547
          %s549 = sshll.u32 [#allocation16], 4
          %s550 = int_to_ptr.vmem [resolvable:$true] %s549
          %555 = dma.hbm_to_vmem [thread:$0]  %s14, 512, %s550, [#allocation15], 128, 128, 8
        $region60: #{tpu_custom_call.1} parent=11 // pred_fallthru
          _
        // Predicated region
        $region61: #{tpu_custom_call.1} parent=11 // pred_check
          %p556 = pneg %p397
        $region62: #{tpu_custom_call.1} parent=11 // pred_check_branch
          %558 = sbr.rel (%p556) target = $region64
        $region63: #{tpu_custom_call.1} parent=11 // pred_region
          _
        $region64: #{tpu_custom_call.1} parent=11 // pred_fallthru
          _
      $region12: #{tpu_custom_call.1} parent=5 // pred_fallthru
        _
      %p559 = scmp.lt.s32.totalorder %s32, 4
      // Predicated region
      $region65: #{tpu_custom_call.1} parent=5 // pred_check
        %p560 = pneg %p559
      $region66: #{tpu_custom_call.1} parent=5 // pred_check_branch
        %562 = sbr.rel (%p560) target = $region68
      $region67: #{tpu_custom_call.1} parent=5 // pred_region
        // Predicated region
        $region69: #{tpu_custom_call.1} parent=67 // pred_check
          %p563 = pneg %p66
        $region70: #{tpu_custom_call.1} parent=67 // pred_check_branch
          %565 = sbr.rel (%p563) target = $region72
        $region71: #{tpu_custom_call.1} parent=67 // pred_region
          %p566 = scmp.lt.s32.totalorder %s39, 1
          %s567 = scalar_select %p566, %s39, 1
          %p568 = scmp.lt.s32.totalorder %s40, 1
          %s569 = scalar_select %p568, %s40, 1
          %s570 = smul.addr %s567, 2
          %s571 = sadd.s32 %s569, %s570
          %s572 = smul.addr %s571, 8
          %s573 = scalar_lea.vmem %s0, %s572
        $region72: #{tpu_custom_call.1} parent=67 // pred_fallthru
          _
        // Predicated region
        $region73: #{tpu_custom_call.1} parent=67 // pred_check
          %p574 = pneg %p92
        $region74: #{tpu_custom_call.1} parent=67 // pred_check_branch
          %576 = sbr.rel (%p574) target = $region76
        $region75: #{tpu_custom_call.1} parent=67 // pred_region
          %p577 = scmp.lt.s32.totalorder %s39, 1
          %s578 = scalar_select %p577, %s39, 1
          %s579 = smul.addr %s578, 2
          %s580 = smul.addr %s579, 8
          %s581 = scalar_lea.vmem %s1, %s580
        $region76: #{tpu_custom_call.1} parent=67 // pred_fallthru
          _
        // Predicated region
        $region77: #{tpu_custom_call.1} parent=67 // pred_check
          %p582 = pneg %p118
        $region78: #{tpu_custom_call.1} parent=67 // pred_check_branch
          %584 = sbr.rel (%p582) target = $region80
        $region79: #{tpu_custom_call.1} parent=67 // pred_region
          %s585 = sand.u32 %s108, 1
          %s586 = scalar_lea.sflag [#allocation3], %s585
          %s587 = sand.u32 %s108, 1
          %s588 = smul.addr %s587, 8
          %s589 = scalar_lea.vmem [#allocation2], %s588
          %s591 = ssub.s32 128, 128
          %592 = vsyncadd %s586, %s591
          %s593 = smul.addr %s39, 128
          %s594 = scalar_lea.hbm %s2, %s593
          %s596 = sshll.u32 %s589, 4
          %s597 = int_to_ptr.vmem [resolvable:$true] %s596
          %599 = dma.hbm_to_vmem [thread:$0]  %s594, 128, %s597, %s586
        $region80: #{tpu_custom_call.1} parent=67 // pred_fallthru
          _
      $region68: #{tpu_custom_call.1} parent=5 // pred_fallthru
        _
      %p600 = scmp.le.s32.totalorder 1, %s32
      %p601 = scmp.lt.s32.totalorder %s32, 5
      %p602 = pnand %p600, %p601
      %p603 = pneg %p602
      // Predicated region
      $region81: #{tpu_custom_call.1} parent=5 // pred_check
        _
      $region82: #{tpu_custom_call.1} parent=5 // pred_check_branch
        %605 = sbr.rel (%p602) target = $region84
      $region83: #{tpu_custom_call.1} parent=5 // pred_region
        %s606 = ssub.s32 %s32, 1
        %s607 = sand.u32 %s111, 1
        %s608 = scalar_lea.sflag [#allocation3], %s607
        %s609 = sand.u32 %s111, 1
        %s610 = smul.addr %s609, 8
        %s611 = scalar_lea.vmem [#allocation2], %s610
        // Predicated region
        $region85: #{tpu_custom_call.1} parent=83 // pred_check
          %p612 = pneg %p124
        $region86: #{tpu_custom_call.1} parent=83 // pred_check_branch
          %614 = sbr.rel (%p612) target = $region88
        $region87: #{tpu_custom_call.1} parent=83 // pred_region
          %615 = dma.done %s608, 128
        $region88: #{tpu_custom_call.1} parent=83 // pred_fallthru
          _
        // Predicated region
        $region89: #{tpu_custom_call.1} parent=83 // pred_check
          %p616 = pneg %p145
        $region90: #{tpu_custom_call.1} parent=83 // pred_check_branch
          %618 = sbr.rel (%p616) target = $region92
        $region91: #{tpu_custom_call.1} parent=83 // pred_region
          %619 = dma.done [#allocation6], 256
        $region92: #{tpu_custom_call.1} parent=83 // pred_fallthru
          _
        // Predicated region
        $region93: #{tpu_custom_call.1} parent=83 // pred_check
          %p620 = pneg %p250
        $region94: #{tpu_custom_call.1} parent=83 // pred_check_branch
          %622 = sbr.rel (%p620) target = $region96
        $region95: #{tpu_custom_call.1} parent=83 // pred_region
          %623 = dma.done [#allocation6], 512
        $region96: #{tpu_custom_call.1} parent=83 // pred_fallthru
          _
        // Predicated region
        $region97: #{tpu_custom_call.1} parent=83 // pred_check
          %p624 = pneg %p271
        $region98: #{tpu_custom_call.1} parent=83 // pred_check_branch
          %626 = sbr.rel (%p624) target = $region100
        $region99: #{tpu_custom_call.1} parent=83 // pred_region
          %627 = dma.done [#allocation9], 512
        $region100: #{tpu_custom_call.1} parent=83 // pred_fallthru
          _
        // Predicated region
        $region101: #{tpu_custom_call.1} parent=83 // pred_check
          %p628 = pneg %p292
        $region102: #{tpu_custom_call.1} parent=83 // pred_check_branch
          %630 = sbr.rel (%p628) target = $region104
        $region103: #{tpu_custom_call.1} parent=83 // pred_region
          %631 = dma.done [#allocation9], 384
        $region104: #{tpu_custom_call.1} parent=83 // pred_fallthru
          _
        // Predicated region
        $region105: #{tpu_custom_call.1} parent=83 // pred_check
          %p632 = pneg %p313
        $region106: #{tpu_custom_call.1} parent=83 // pred_check_branch
          %634 = sbr.rel (%p632) target = $region108
        $region107: #{tpu_custom_call.1} parent=83 // pred_region
          %635 = dma.done [#allocation12], 384
        $region108: #{tpu_custom_call.1} parent=83 // pred_fallthru
          _
        // Predicated region
        $region109: #{tpu_custom_call.1} parent=83 // pred_check
          %p636 = pneg %p334
        $region110: #{tpu_custom_call.1} parent=83 // pred_check_branch
          %638 = sbr.rel (%p636) target = $region112
        $region111: #{tpu_custom_call.1} parent=83 // pred_region
          %639 = dma.done [#allocation12], 512
        $region112: #{tpu_custom_call.1} parent=83 // pred_fallthru
          _
        // Predicated region
        $region113: #{tpu_custom_call.1} parent=83 // pred_check
          %p640 = pneg %p355
        $region114: #{tpu_custom_call.1} parent=83 // pred_check_branch
          %642 = sbr.rel (%p640) target = $region116
        $region115: #{tpu_custom_call.1} parent=83 // pred_region
          %643 = dma.done [#allocation15], 512
        $region116: #{tpu_custom_call.1} parent=83 // pred_fallthru
          _
        // Predicated region
        $region117: #{tpu_custom_call.1} parent=83 // pred_check
          %p644 = pneg %p376
        $region118: #{tpu_custom_call.1} parent=83 // pred_check_branch
          %646 = sbr.rel (%p644) target = $region120
        $region119: #{tpu_custom_call.1} parent=83 // pred_region
          %647 = dma.done [#allocation15], 512
        $region120: #{tpu_custom_call.1} parent=83 // pred_fallthru
          _
        %p648 = scmp.lt.s32.totalorder %s41, 1
        %s649 = scalar_select %p648, %s41, 1
        %p650 = scmp.lt.s32.totalorder %s42, 1
        %s651 = scalar_select %p650, %s42, 1
        %s652 = smul.addr %s649, 2
        %s653 = sadd.s32 %s651, %s652
        %s654 = smul.addr %s653, 8
        %s655 = scalar_lea.vmem %s0, %s654
        %p656 = pneg %p72
        %p657 = pneg %p69
        %p658 = scmp.lt.s32.totalorder %s41, 1
        %s659 = scalar_select %p658, %s41, 1
        %s660 = smul.addr %s659, 2
        %s661 = smul.addr %s660, 8
        %s662 = scalar_lea.vmem %s1, %s661
        %p663 = pneg %p98
        %p664 = pneg %p95
        %s665 = sand.u32 %s111, 1
        %s666 = scalar_lea.sflag [#allocation3], %s665
        %s667 = sand.u32 %s111, 1
        %s668 = smul.addr %s667, 8
        %s669 = scalar_lea.vmem [#allocation2], %s668
        %p670 = pneg %p124
        %p671 = pneg %p121
        %p672 = pneg %p145
        %p673 = pneg %p142
        %p674 = pneg %p166
        %p675 = pneg %p163
        %p676 = pneg %p187
        %p677 = pneg %p184
        %p678 = pneg %p208
        %p679 = pneg %p205
        %p680 = pneg %p229
        %p681 = pneg %p226
        %p682 = pneg %p250
        %p683 = pneg %p247
        %p684 = pneg %p271
        %p685 = pneg %p268
        %p686 = pneg %p292
        %p687 = pneg %p289
        %p688 = pneg %p313
        %p689 = pneg %p310
        %p690 = pneg %p334
        %p691 = pneg %p331
        %p692 = pneg %p355
        %p693 = pneg %p352
        %p694 = pneg %p376
        %p695 = pneg %p373
        %p696 = pneg %p397
        %p697 = pneg %p394
        %p698 = pneg %p425
        %p699 = pneg %p422
        %s700 = sand.u32 %s412, 1
        %s701 = scalar_lea.sflag [#allocation4], %s700
        %s702 = sand.u32 %s412, 1
        %s703 = smul.addr %s702, 8
        %s704 = scalar_lea.vmem [#allocation17], %s703
        %p705 = scmp.lt.s32.totalorder %s41, 1
        %s706 = scalar_select %p705, %s41, 1
        %p707 = scmp.lt.s32.totalorder %s42, 1
        %s708 = scalar_select %p707, %s42, 1
        %s709 = smul.addr %s706, 2
        %s710 = sadd.s32 %s708, %s709
        %s711 = smul.addr %s710, 8
        %s712 = scalar_lea.vmem %s0, %s711
        %p713 = scmp.lt.s32.totalorder %s41, 1
        %s714 = scalar_select %p713, %s41, 1
        %s715 = smul.addr %s714, 2
        %s716 = smul.addr %s715, 8
        %s717 = scalar_lea.vmem %s1, %s716
        %v718 = vld [vmem:[%s712] sm:$0xff]
        %v719 = vld [vmem:[%s717] sm:$0xff]
        %v720 = vld [vmem:[%s717 + $0x8] sm:$0xff]
        %v721 = vld [vmem:[%s611] sm:$0xff]
        %v722 = vld [vmem:[#allocation5] sm:$0x1]
        %v723 = vld [vmem:[#allocation5 + $0x1] sm:$0x1]
        %v724 = vld [vmem:[#allocation5 + $0x2] sm:$0x1]
        %v725 = vld [vmem:[#allocation5 + $0x3] sm:$0x1]
        %v726 = vld [vmem:[#allocation5 + $0x4] sm:$0x1]
        %v727 = vld [vmem:[#allocation5 + $0x5] sm:$0x1]
        %v728 = vld [vmem:[#allocation5 + $0x6] sm:$0x1]
        %v729 = vld [vmem:[#allocation5 + $0x7] sm:$0x1]
        %v730 = vld [vmem:[#allocation5 + $0x8] sm:$0x1]
        %v731 = vld [vmem:[%s4] sm:$0x1]
        %v732 = vld [vmem:[%s4 + $0x1] sm:$0x1]
        %vm733 = vcmask 261120
        %v734 = vsel %vm733, %v718, 0.0
        %735 = vadd.xlane.f32.xlu0 %v734
        %v736 = vpop.xlane.xlu0 %735
        %v737 = vrcp.pop 32.0
        %v738 = vmul.f32 %v736, %v737
        %v739 = vsub.f32 %v718, %v738
        %v740 = vmul.f32 %v739, %v739
        %v741 = vsel %vm733, %v740, 0.0
        %742 = vadd.xlane.f32.xlu0 %v741
        %v743 = vpop.xlane.xlu0 %742
        %v744 = vmul.f32 %v743, %v737
        %v745 = vadd.f32 %v744, 1e-05
        %v746 = vrsqrt.pop %v745
        %v747 = vmul.f32 %v739, %v746
        %v748 = vlaneseq
        %v749 = vshrl.u32 %v748, 7
        %v750 = vsub.s32 0, %v749
        %v751 = vrot.slane %v722, %v750
        %v752 = vmul.f32 %v747, %v751
        %v753 = vlaneseq
        %v754 = vshrl.u32 %v753, 7
        %v755 = vsub.s32 0, %v754
        %v756 = vrot.slane %v723, %v755
        %v757 = vadd.f32 %v752, %v756
        %v758 = vsel %vm733, %v719, 0.0
        %759 = vadd.xlane.f32.xlu0 %v758
        %v760 = vpop.xlane.xlu0 %759
        %v761 = vsel %vm733, %v720, 0.0
        %762 = vadd.xlane.f32.xlu0 %v761
        %v763 = vpop.xlane.xlu0 %762
        %v764 = vmul.f32 %v760, %v737
        %v765 = vmul.f32 %v763, %v737
        %v766 = vsub.f32 %v719, %v764
        %v767 = vsub.f32 %v720, %v765
        %v768 = vmul.f32 %v766, %v766
        %v769 = vmul.f32 %v767, %v767
        %v770 = vsel %vm733, %v768, 0.0
        %771 = vadd.xlane.f32.xlu0 %v770
        %v772 = vpop.xlane.xlu0 %771
        %v773 = vsel %vm733, %v769, 0.0
        %774 = vadd.xlane.f32.xlu0 %v773
        %v775 = vpop.xlane.xlu0 %774
        %v776 = vmul.f32 %v772, %v737
        %v777 = vmul.f32 %v775, %v737
        %v778 = vadd.f32 %v776, 1e-05
        %v779 = vadd.f32 %v777, 1e-05
        %v780 = vrsqrt.pop %v778
        %v781 = vrsqrt.pop %v779
        %v782 = vmul.f32 %v766, %v780
        %v783 = vmul.f32 %v767, %v781
        %v784 = vmul.f32 %v782, %v751
        %v785 = vmul.f32 %v783, %v751
        %v786 = vadd.f32 %v784, %v756
        %v787 = vadd.f32 %v785, %v756
        %v788 = vld [vmem:[%s5] sm:$0xff]
        %v789 = vld [vmem:[%s5 + $0x8] sm:$0xff]
        %v790 = vld [vmem:[%s5 + $0x10] sm:$0xff]
        %v791 = vld [vmem:[%s5 + $0x18] sm:$0xff]
        %v793 = vsel %vm733, %v757, 0
        %795 = vmatprep.subr.mxu0 0.0
        %796 = vmatpush1.msra.mxu0 0.0
        %797 = vmatprep.subr.mxu0 0.0
        %798 = vmatpush1.msra.mxu0 0.0
        %799 = vmatprep.subr.mxu0 0.0
        %800 = vmatpush1.msra.mxu0 0.0
        %801 = vmatprep.subr.mxu0 0.0
        %802 = vmatpush1.msra.mxu0 0.0
        %803 = vmatprep.subr.mxu0 0.0
        %804 = vmatpush1.msra.mxu0 0.0
        %805 = vmatprep.subr.mxu0 0.0
        %806 = vmatpush1.msra.mxu0 0.0
        %807 = vmatprep.subr.mxu0 0.0
        %808 = vmatpush1.msra.mxu0 0.0
        %809 = vmatprep.subr.mxu0 0.0
        %810 = vmatpush1.msra.mxu0 0.0
        %811 = vmatprep.subr.mxu0 0.0
        %812 = vmatpush1.msra.mxu0 0.0
        %813 = vmatprep.subr.mxu0 0.0
        %814 = vmatpush1.msra.mxu0 0.0
        %815 = vmatprep.subr.mxu0 0.0
        %816 = vmatpush1.msra.mxu0 0.0
        %817 = vmatprep.subr.mxu0 0.0
        %818 = vmatpush1.msra.mxu0 0.0
        %819 = vmatprep.subr.mxu0 0.0
        %820 = vmatpush1.msra.mxu0 %v791
        %821 = vmatprep.subr.mxu0 0.0
        %822 = vmatpush1.msra.mxu0 %v790
        %823 = vmatprep.subr.mxu0 0.0
        %824 = vmatpush1.msra.mxu0 %v789
        %825 = vmatprep.subr.mxu0 0.0
        %826 = vmatpush1.msra.mxu0 %v788
        %827 = vmatprep.subr.mxu0 0.0
        %828 = vmatpush2.msra.mxu0 0.0
        %829 = vmatprep.subr.mxu0 0.0
        %830 = vmatpush2.msra.mxu0 0.0
        %831 = vmatprep.subr.mxu0 0.0
        %832 = vmatpush2.msra.mxu0 0.0
        %833 = vmatprep.subr.mxu0 0.0
        %834 = vmatpush2.msra.mxu0 0.0
        %835 = vmatprep.subr.mxu0 0.0
        %836 = vmatpush2.msra.mxu0 0.0
        %837 = vmatprep.subr.mxu0 0.0
        %838 = vmatpush2.msra.mxu0 0.0
        %839 = vmatprep.subr.mxu0 0.0
        %840 = vmatpush2.msra.mxu0 0.0
        %841 = vmatprep.subr.mxu0 0.0
        %842 = vmatpush2.msra.mxu0 0.0
        %843 = vmatprep.subr.mxu0 0.0
        %844 = vmatpush2.msra.mxu0 0.0
        %845 = vmatprep.subr.mxu0 0.0
        %846 = vmatpush2.msra.mxu0 0.0
        %847 = vmatprep.subr.mxu0 0.0
        %848 = vmatpush2.msra.mxu0 0.0
        %849 = vmatprep.subr.mxu0 0.0
        %850 = vmatpush2.msra.mxu0 0.0
        %851 = vmatprep.subr.mxu0 0.0
        %852 = vmatpush2.msra.mxu0 0.0
        %853 = vmatprep.subr.mxu0 0.0
        %854 = vmatpush2.msra.mxu0 0.0
        %855 = vmatprep.subr.mxu0 0.0
        %856 = vmatpush2.msra.mxu0 0.0
        %857 = vmatprep.subr.mxu0 0.0
        %858 = vmatpush2.msra.mxu0 0.0
        %859 = vmatprep.mubr.f32.mxu0 0.0
        %860 = vmatmul.mubr.f32.gmra.mxu0 %v793
        %v861 = vpop.f32.mrf.mxu0
        %v862 = vadd.f32 0.0, %v861
        %v863 = vpop.f32.mrf.mxu0
        %864 = vdwg.mxu0
        %v865 = vld [vmem:[%s6] sm:$0xff]
        %v866 = vld [vmem:[%s6 + $0x8] sm:$0xff]
        %v867 = vld [vmem:[%s6 + $0x10] sm:$0xff]
        %v868 = vld [vmem:[%s6 + $0x18] sm:$0xff]
        %v870 = vsel %vm733, %v786, 0
        %v873 = vsel %vm733, %v787, 0
        %875 = vmatprep.subr.mxu0 0.0
        %876 = vmatpush1.msra.mxu0 0.0
        %877 = vmatprep.subr.mxu0 0.0
        %878 = vmatpush1.msra.mxu0 0.0
        %879 = vmatprep.subr.mxu0 0.0
        %880 = vmatpush1.msra.mxu0 0.0
        %881 = vmatprep.subr.mxu0 0.0
        %882 = vmatpush1.msra.mxu0 0.0
        %883 = vmatprep.subr.mxu0 0.0
        %884 = vmatpush1.msra.mxu0 0.0
        %885 = vmatprep.subr.mxu0 0.0
        %886 = vmatpush1.msra.mxu0 0.0
        %887 = vmatprep.subr.mxu0 0.0
        %888 = vmatpush1.msra.mxu0 0.0
        %889 = vmatprep.subr.mxu0 0.0
        %890 = vmatpush1.msra.mxu0 0.0
        %891 = vmatprep.subr.mxu0 0.0
        %892 = vmatpush1.msra.mxu0 0.0
        %893 = vmatprep.subr.mxu0 0.0
        %894 = vmatpush1.msra.mxu0 0.0
        %895 = vmatprep.subr.mxu0 0.0
        %896 = vmatpush1.msra.mxu0 0.0
        %897 = vmatprep.subr.mxu0 0.0
        %898 = vmatpush1.msra.mxu0 0.0
        %899 = vmatprep.subr.mxu0 0.0
        %900 = vmatpush1.msra.mxu0 %v868
        %901 = vmatprep.subr.mxu0 0.0
        %902 = vmatpush1.msra.mxu0 %v867
        %903 = vmatprep.subr.mxu0 0.0
        %904 = vmatpush1.msra.mxu0 %v866
        %905 = vmatprep.subr.mxu0 0.0
        %906 = vmatpush1.msra.mxu0 %v865
        %907 = vmatprep.subr.mxu0 0.0
        %908 = vmatpush2.msra.mxu0 0.0
        %909 = vmatprep.subr.mxu0 0.0
        %910 = vmatpush2.msra.mxu0 0.0
        %911 = vmatprep.subr.mxu0 0.0
        %912 = vmatpush2.msra.mxu0 0.0
        %913 = vmatprep.subr.mxu0 0.0
        %914 = vmatpush2.msra.mxu0 0.0
        %915 = vmatprep.subr.mxu0 0.0
        %916 = vmatpush2.msra.mxu0 0.0
        %917 = vmatprep.subr.mxu0 0.0
        %918 = vmatpush2.msra.mxu0 0.0
        %919 = vmatprep.subr.mxu0 0.0
        %920 = vmatpush2.msra.mxu0 0.0
        %921 = vmatprep.subr.mxu0 0.0
        %922 = vmatpush2.msra.mxu0 0.0
        %923 = vmatprep.subr.mxu0 0.0
        %924 = vmatpush2.msra.mxu0 0.0
        %925 = vmatprep.subr.mxu0 0.0
        %926 = vmatpush2.msra.mxu0 0.0
        %927 = vmatprep.subr.mxu0 0.0
        %928 = vmatpush2.msra.mxu0 0.0
        %929 = vmatprep.subr.mxu0 0.0
        %930 = vmatpush2.msra.mxu0 0.0
        %931 = vmatprep.subr.mxu0 0.0
        %932 = vmatpush2.msra.mxu0 0.0
        %933 = vmatprep.subr.mxu0 0.0
        %934 = vmatpush2.msra.mxu0 0.0
        %935 = vmatprep.subr.mxu0 0.0
        %936 = vmatpush2.msra.mxu0 0.0
        %937 = vmatprep.subr.mxu0 0.0
        %938 = vmatpush2.msra.mxu0 0.0
        %939 = vmatprep.mubr.f32.mxu0 0.0
        %940 = vmatmul.mubr.f32.gmra.mxu0 %v870
        %v941 = vpop.f32.mrf.mxu0
        %v942 = vadd.f32 0.0, %v941
        %v943 = vpop.f32.mrf.mxu0
        %944 = vmatprep.mubr.f32.mxu0 0.0
        %945 = vmatmul.mubr.f32.gmra.mxu0 %v873
        %v946 = vpop.f32.mrf.mxu0
        %v947 = vadd.f32 0.0, %v946
        %v948 = vpop.f32.mrf.mxu0
        %949 = vdwg.mxu0
        %v950 = vld [vmem:[%s7] sm:$0xff]
        %v951 = vld [vmem:[%s7 + $0x8] sm:$0xff]
        %v952 = vld [vmem:[%s7 + $0x10] sm:$0xff]
        %v953 = vld [vmem:[%s7 + $0x18] sm:$0xff]
        %954 = vmatprep.subr.mxu0 0.0
        %955 = vmatpush1.msra.mxu0 0.0
        %956 = vmatprep.subr.mxu0 0.0
        %957 = vmatpush1.msra.mxu0 0.0
        %958 = vmatprep.subr.mxu0 0.0
        %959 = vmatpush1.msra.mxu0 0.0
        %960 = vmatprep.subr.mxu0 0.0
        %961 = vmatpush1.msra.mxu0 0.0
        %962 = vmatprep.subr.mxu0 0.0
        %963 = vmatpush1.msra.mxu0 0.0
        %964 = vmatprep.subr.mxu0 0.0
        %965 = vmatpush1.msra.mxu0 0.0
        %966 = vmatprep.subr.mxu0 0.0
        %967 = vmatpush1.msra.mxu0 0.0
        %968 = vmatprep.subr.mxu0 0.0
        %969 = vmatpush1.msra.mxu0 0.0
        %970 = vmatprep.subr.mxu0 0.0
        %971 = vmatpush1.msra.mxu0 0.0
        %972 = vmatprep.subr.mxu0 0.0
        %973 = vmatpush1.msra.mxu0 0.0
        %974 = vmatprep.subr.mxu0 0.0
        %975 = vmatpush1.msra.mxu0 0.0
        %976 = vmatprep.subr.mxu0 0.0
        %977 = vmatpush1.msra.mxu0 0.0
        %978 = vmatprep.subr.mxu0 0.0
        %979 = vmatpush1.msra.mxu0 %v953
        %980 = vmatprep.subr.mxu0 0.0
        %981 = vmatpush1.msra.mxu0 %v952
        %982 = vmatprep.subr.mxu0 0.0
        %983 = vmatpush1.msra.mxu0 %v951
        %984 = vmatprep.subr.mxu0 0.0
        %985 = vmatpush1.msra.mxu0 %v950
        %986 = vmatprep.subr.mxu0 0.0
        %987 = vmatpush2.msra.mxu0 0.0
        %988 = vmatprep.subr.mxu0 0.0
        %989 = vmatpush2.msra.mxu0 0.0
        %990 = vmatprep.subr.mxu0 0.0
        %991 = vmatpush2.msra.mxu0 0.0
        %992 = vmatprep.subr.mxu0 0.0
        %993 = vmatpush2.msra.mxu0 0.0
        %994 = vmatprep.subr.mxu0 0.0
        %995 = vmatpush2.msra.mxu0 0.0
        %996 = vmatprep.subr.mxu0 0.0
        %997 = vmatpush2.msra.mxu0 0.0
        %998 = vmatprep.subr.mxu0 0.0
        %999 = vmatpush2.msra.mxu0 0.0
        %1000 = vmatprep.subr.mxu0 0.0
        %1001 = vmatpush2.msra.mxu0 0.0
        %1002 = vmatprep.subr.mxu0 0.0
        %1003 = vmatpush2.msra.mxu0 0.0
        %1004 = vmatprep.subr.mxu0 0.0
        %1005 = vmatpush2.msra.mxu0 0.0
        %1006 = vmatprep.subr.mxu0 0.0
        %1007 = vmatpush2.msra.mxu0 0.0
        %1008 = vmatprep.subr.mxu0 0.0
        %1009 = vmatpush2.msra.mxu0 0.0
        %1010 = vmatprep.subr.mxu0 0.0
        %1011 = vmatpush2.msra.mxu0 0.0
        %1012 = vmatprep.subr.mxu0 0.0
        %1013 = vmatpush2.msra.mxu0 0.0
        %1014 = vmatprep.subr.mxu0 0.0
        %1015 = vmatpush2.msra.mxu0 0.0
        %1016 = vmatprep.subr.mxu0 0.0
        %1017 = vmatpush2.msra.mxu0 0.0
        %1018 = vmatprep.mubr.f32.mxu0 0.0
        %1019 = vmatmul.mubr.f32.gmra.mxu0 %v870
        %v1020 = vpop.f32.mrf.mxu0
        %v1021 = vadd.f32 0.0, %v1020
        %v1022 = vpop.f32.mrf.mxu0
        %1023 = vmatprep.mubr.f32.mxu0 0.0
        %1024 = vmatmul.mubr.f32.gmra.mxu0 %v873
        %v1025 = vpop.f32.mrf.mxu0
        %v1026 = vadd.f32 0.0, %v1025
        %v1027 = vpop.f32.mrf.mxu0
        %1028 = vdwg.mxu0
        %vm1029 = vcmask 64512
        %v1031 = vsel %vm1029, %v862, 0
        %v1034 = vsel %vm1029, %v942, 0
        %v1037 = vsel %vm1029, %v947, 0
        %1039 = vmatprep.subr.mxu0 0.0
        %1040 = vmatpush1.xpose.msra.mxu0 0.0
        %1041 = vmatprep.subr.mxu0 0.0
        %1042 = vmatpush1.xpose.msra.mxu0 0.0
        %1043 = vmatprep.subr.mxu0 0.0
        %1044 = vmatpush1.xpose.msra.mxu0 0.0
        %1045 = vmatprep.subr.mxu0 0.0
        %1046 = vmatpush1.xpose.msra.mxu0 0.0
        %1047 = vmatprep.subr.mxu0 0.0
        %1048 = vmatpush1.xpose.msra.mxu0 0.0
        %1049 = vmatprep.subr.mxu0 0.0
        %1050 = vmatpush1.xpose.msra.mxu0 0.0
        %1051 = vmatprep.subr.mxu0 0.0
        %1052 = vmatpush1.xpose.msra.mxu0 0.0
        %1053 = vmatprep.subr.mxu0 0.0
        %1054 = vmatpush1.xpose.msra.mxu0 0.0
        %1055 = vmatprep.subr.mxu0 0.0
        %1056 = vmatpush1.xpose.msra.mxu0 0.0
        %1057 = vmatprep.subr.mxu0 0.0
        %1058 = vmatpush1.xpose.msra.mxu0 0.0
        %1059 = vmatprep.subr.mxu0 0.0
        %1060 = vmatpush1.xpose.msra.mxu0 0.0
        %1061 = vmatprep.subr.mxu0 0.0
        %1062 = vmatpush1.xpose.msra.mxu0 0.0
        %1063 = vmatprep.subr.mxu0 0.0
        %1064 = vmatpush1.xpose.msra.mxu0 0.0
        %1065 = vmatprep.subr.mxu0 0.0
        %1066 = vmatpush1.xpose.msra.mxu0 0.0
        %1067 = vmatprep.subr.mxu0 0.0
        %1068 = vmatpush1.xpose.msra.mxu0 %v1037
        %1069 = vmatprep.subr.mxu0 0.0
        %1070 = vmatpush1.xpose.msra.mxu0 %v1034
        %1071 = vmatprep.subr.mxu0 0.0
        %1072 = vmatpush2.xpose.msra.mxu0 0.0
        %1073 = vmatprep.subr.mxu0 0.0
        %1074 = vmatpush2.xpose.msra.mxu0 0.0
        %1075 = vmatprep.subr.mxu0 0.0
        %1076 = vmatpush2.xpose.msra.mxu0 0.0
        %1077 = vmatprep.subr.mxu0 0.0
        %1078 = vmatpush2.xpose.msra.mxu0 0.0
        %1079 = vmatprep.subr.mxu0 0.0
        %1080 = vmatpush2.xpose.msra.mxu0 0.0
        %1081 = vmatprep.subr.mxu0 0.0
        %1082 = vmatpush2.xpose.msra.mxu0 0.0
        %1083 = vmatprep.subr.mxu0 0.0
        %1084 = vmatpush2.xpose.msra.mxu0 0.0
        %1085 = vmatprep.subr.mxu0 0.0
        %1086 = vmatpush2.xpose.msra.mxu0 0.0
        %1087 = vmatprep.subr.mxu0 0.0
        %1088 = vmatpush2.xpose.msra.mxu0 0.0
        %1089 = vmatprep.subr.mxu0 0.0
        %1090 = vmatpush2.xpose.msra.mxu0 0.0
        %1091 = vmatprep.subr.mxu0 0.0
        %1092 = vmatpush2.xpose.msra.mxu0 0.0
        %1093 = vmatprep.subr.mxu0 0.0
        %1094 = vmatpush2.xpose.msra.mxu0 0.0
        %1095 = vmatprep.subr.mxu0 0.0
        %1096 = vmatpush2.xpose.msra.mxu0 0.0
        %1097 = vmatprep.subr.mxu0 0.0
        %1098 = vmatpush2.xpose.msra.mxu0 0.0
        %1099 = vmatprep.subr.mxu0 0.0
        %1100 = vmatpush2.xpose.msra.mxu0 0.0
        %1101 = vmatprep.subr.mxu0 0.0
        %1102 = vmatpush2.xpose.msra.mxu0 0.0
        %1103 = vmatprep.mubr.f32.mxu0 0.0
        %1104 = vmatmul.mubr.f32.gmra.mxu0 %v1031
        %v1105 = vpop.f32.mrf.mxu0
        %v1106 = vadd.f32 0.0, %v1105
        %v1107 = vpop.f32.mrf.mxu0
        %1108 = vdwg.mxu0
        %vm1109 = vcmask 130048
        %v1110 = vsel %vm1109, %v1106, -inf
        %1111 = vmax.xlane.f32.xlu0 %v1110
        %v1112 = vpop.xlane.xlu0 %1111
        %v1113 = vsub.f32 %v1106, %v1112
        %v1114 = vmul.f32 %v1113, 1.442695
        %v1115 = vpow.pop %v1114
        %v1116 = vsel %vm1109, %v1115, 0.0
        %1117 = vadd.xlane.f32.xlu0 %v1116
        %v1118 = vpop.xlane.xlu0 %1117
        %v1119 = vrcp.pop %v1118
        %v1120 = vmul.f32 %v1115, %v1119
        %v1122 = vsel %vm1109, %v1120, 0
        %1124 = vmatprep.subr.mxu0 0.0
        %1125 = vmatpush1.msra.mxu0 0.0
        %1126 = vmatprep.subr.mxu0 0.0
        %1127 = vmatpush1.msra.mxu0 0.0
        %1128 = vmatprep.subr.mxu0 0.0
        %1129 = vmatpush1.msra.mxu0 0.0
        %1130 = vmatprep.subr.mxu0 0.0
        %1131 = vmatpush1.msra.mxu0 0.0
        %1132 = vmatprep.subr.mxu0 0.0
        %1133 = vmatpush1.msra.mxu0 0.0
        %1134 = vmatprep.subr.mxu0 0.0
        %1135 = vmatpush1.msra.mxu0 0.0
        %1136 = vmatprep.subr.mxu0 0.0
        %1137 = vmatpush1.msra.mxu0 0.0
        %1138 = vmatprep.subr.mxu0 0.0
        %1139 = vmatpush1.msra.mxu0 0.0
        %1140 = vmatprep.subr.mxu0 0.0
        %1141 = vmatpush1.msra.mxu0 0.0
        %1142 = vmatprep.subr.mxu0 0.0
        %1143 = vmatpush1.msra.mxu0 0.0
        %1144 = vmatprep.subr.mxu0 0.0
        %1145 = vmatpush1.msra.mxu0 0.0
        %1146 = vmatprep.subr.mxu0 0.0
        %1147 = vmatpush1.msra.mxu0 0.0
        %1148 = vmatprep.subr.mxu0 0.0
        %1149 = vmatpush1.msra.mxu0 0.0
        %1150 = vmatprep.subr.mxu0 0.0
        %1151 = vmatpush1.msra.mxu0 0.0
        %1152 = vmatprep.subr.mxu0 0.0
        %1153 = vmatpush1.msra.mxu0 %v1026
        %1154 = vmatprep.subr.mxu0 0.0
        %1155 = vmatpush1.msra.mxu0 %v1021
        %1156 = vmatprep.subr.mxu0 0.0
        %1157 = vmatpush2.msra.mxu0 0.0
        %1158 = vmatprep.subr.mxu0 0.0
        %1159 = vmatpush2.msra.mxu0 0.0
        %1160 = vmatprep.subr.mxu0 0.0
        %1161 = vmatpush2.msra.mxu0 0.0
        %1162 = vmatprep.subr.mxu0 0.0
        %1163 = vmatpush2.msra.mxu0 0.0
        %1164 = vmatprep.subr.mxu0 0.0
        %1165 = vmatpush2.msra.mxu0 0.0
        %1166 = vmatprep.subr.mxu0 0.0
        %1167 = vmatpush2.msra.mxu0 0.0
        %1168 = vmatprep.subr.mxu0 0.0
        %1169 = vmatpush2.msra.mxu0 0.0
        %1170 = vmatprep.subr.mxu0 0.0
        %1171 = vmatpush2.msra.mxu0 0.0
        %1172 = vmatprep.subr.mxu0 0.0
        %1173 = vmatpush2.msra.mxu0 0.0
        %1174 = vmatprep.subr.mxu0 0.0
        %1175 = vmatpush2.msra.mxu0 0.0
        %1176 = vmatprep.subr.mxu0 0.0
        %1177 = vmatpush2.msra.mxu0 0.0
        %1178 = vmatprep.subr.mxu0 0.0
        %1179 = vmatpush2.msra.mxu0 0.0
        %1180 = vmatprep.subr.mxu0 0.0
        %1181 = vmatpush2.msra.mxu0 0.0
        %1182 = vmatprep.subr.mxu0 0.0
        %1183 = vmatpush2.msra.mxu0 0.0
        %1184 = vmatprep.subr.mxu0 0.0
        %1185 = vmatpush2.msra.mxu0 0.0
        %1186 = vmatprep.subr.mxu0 0.0
        %1187 = vmatpush2.msra.mxu0 0.0
        %1188 = vmatprep.mubr.f32.mxu0 0.0
        %1189 = vmatmul.mubr.f32.gmra.mxu0 %v1122
        %v1190 = vpop.f32.mrf.mxu0
        %v1191 = vadd.f32 0.0, %v1190
        %v1192 = vpop.f32.mrf.mxu0
        %1193 = vdwg.mxu0
        %1194 = vrot.lane.b32.xlu0 %v862, 120
        %v1195 = vpop.permute.xlu0 %1194
        %1196 = vrot.lane.b32.xlu0 %v942, 120
        %v1197 = vpop.permute.xlu0 %1196
        %1198 = vrot.lane.b32.xlu0 %v947, 120
        %v1199 = vpop.permute.xlu0 %1198
        %v1200 = vsel %vm1029, %v1195, 0
        %v1202 = vsel %vm1029, %v1197, 0
        %v1204 = vsel %vm1029, %v1199, 0
        %1206 = vmatprep.subr.mxu0 0.0
        %1207 = vmatpush1.xpose.msra.mxu0 0.0
        %1208 = vmatprep.subr.mxu0 0.0
        %1209 = vmatpush1.xpose.msra.mxu0 0.0
        %1210 = vmatprep.subr.mxu0 0.0
        %1211 = vmatpush1.xpose.msra.mxu0 0.0
        %1212 = vmatprep.subr.mxu0 0.0
        %1213 = vmatpush1.xpose.msra.mxu0 0.0
        %1214 = vmatprep.subr.mxu0 0.0
        %1215 = vmatpush1.xpose.msra.mxu0 0.0
        %1216 = vmatprep.subr.mxu0 0.0
        %1217 = vmatpush1.xpose.msra.mxu0 0.0
        %1218 = vmatprep.subr.mxu0 0.0
        %1219 = vmatpush1.xpose.msra.mxu0 0.0
        %1220 = vmatprep.subr.mxu0 0.0
        %1221 = vmatpush1.xpose.msra.mxu0 0.0
        %1222 = vmatprep.subr.mxu0 0.0
        %1223 = vmatpush1.xpose.msra.mxu0 0.0
        %1224 = vmatprep.subr.mxu0 0.0
        %1225 = vmatpush1.xpose.msra.mxu0 0.0
        %1226 = vmatprep.subr.mxu0 0.0
        %1227 = vmatpush1.xpose.msra.mxu0 0.0
        %1228 = vmatprep.subr.mxu0 0.0
        %1229 = vmatpush1.xpose.msra.mxu0 0.0
        %1230 = vmatprep.subr.mxu0 0.0
        %1231 = vmatpush1.xpose.msra.mxu0 0.0
        %1232 = vmatprep.subr.mxu0 0.0
        %1233 = vmatpush1.xpose.msra.mxu0 0.0
        %1234 = vmatprep.subr.mxu0 0.0
        %1235 = vmatpush1.xpose.msra.mxu0 %v1204
        %1236 = vmatprep.subr.mxu0 0.0
        %1237 = vmatpush1.xpose.msra.mxu0 %v1202
        %1238 = vmatprep.subr.mxu0 0.0
        %1239 = vmatpush2.xpose.msra.mxu0 0.0
        %1240 = vmatprep.subr.mxu0 0.0
        %1241 = vmatpush2.xpose.msra.mxu0 0.0
        %1242 = vmatprep.subr.mxu0 0.0
        %1243 = vmatpush2.xpose.msra.mxu0 0.0
        %1244 = vmatprep.subr.mxu0 0.0
        %1245 = vmatpush2.xpose.msra.mxu0 0.0
        %1246 = vmatprep.subr.mxu0 0.0
        %1247 = vmatpush2.xpose.msra.mxu0 0.0
        %1248 = vmatprep.subr.mxu0 0.0
        %1249 = vmatpush2.xpose.msra.mxu0 0.0
        %1250 = vmatprep.subr.mxu0 0.0
        %1251 = vmatpush2.xpose.msra.mxu0 0.0
        %1252 = vmatprep.subr.mxu0 0.0
        %1253 = vmatpush2.xpose.msra.mxu0 0.0
        %1254 = vmatprep.subr.mxu0 0.0
        %1255 = vmatpush2.xpose.msra.mxu0 0.0
        %1256 = vmatprep.subr.mxu0 0.0
        %1257 = vmatpush2.xpose.msra.mxu0 0.0
        %1258 = vmatprep.subr.mxu0 0.0
        %1259 = vmatpush2.xpose.msra.mxu0 0.0
        %1260 = vmatprep.subr.mxu0 0.0
        %1261 = vmatpush2.xpose.msra.mxu0 0.0
        %1262 = vmatprep.subr.mxu0 0.0
        %1263 = vmatpush2.xpose.msra.mxu0 0.0
        %1264 = vmatprep.subr.mxu0 0.0
        %1265 = vmatpush2.xpose.msra.mxu0 0.0
        %1266 = vmatprep.subr.mxu0 0.0
        %1267 = vmatpush2.xpose.msra.mxu0 0.0
        %1268 = vmatprep.subr.mxu0 0.0
        %1269 = vmatpush2.xpose.msra.mxu0 0.0
        %1270 = vmatprep.mubr.f32.mxu0 0.0
        %1271 = vmatmul.mubr.f32.gmra.mxu0 %v1200
        %v1272 = vpop.f32.mrf.mxu0
        %v1273 = vadd.f32 0.0, %v1272
        %v1274 = vpop.f32.mrf.mxu0
        %1275 = vdwg.mxu0
        %v1276 = vsel %vm1109, %v1273, -inf
        %1277 = vmax.xlane.f32.xlu0 %v1276
        %v1278 = vpop.xlane.xlu0 %1277
        %v1279 = vsub.f32 %v1273, %v1278
        %v1280 = vmul.f32 %v1279, 1.442695
        %v1281 = vpow.pop %v1280
        %v1282 = vsel %vm1109, %v1281, 0.0
        %1283 = vadd.xlane.f32.xlu0 %v1282
        %v1284 = vpop.xlane.xlu0 %1283
        %v1285 = vrcp.pop %v1284
        %v1286 = vmul.f32 %v1281, %v1285
        %1289 = vrot.lane.b32.xlu0 %v1021, 120
        %v1290 = vpop.permute.xlu0 %1289
        %1291 = vrot.lane.b32.xlu0 %v1026, 120
        %v1292 = vpop.permute.xlu0 %1291
        %v1296 = vsel %vm1109, %v1286, 0
        %1298 = vmatprep.subr.mxu0 0.0
        %1299 = vmatpush1.msra.mxu0 0.0
        %1300 = vmatprep.subr.mxu0 0.0
        %1301 = vmatpush1.msra.mxu0 0.0
        %1302 = vmatprep.subr.mxu0 0.0
        %1303 = vmatpush1.msra.mxu0 0.0
        %1304 = vmatprep.subr.mxu0 0.0
        %1305 = vmatpush1.msra.mxu0 0.0
        %1306 = vmatprep.subr.mxu0 0.0
        %1307 = vmatpush1.msra.mxu0 0.0
        %1308 = vmatprep.subr.mxu0 0.0
        %1309 = vmatpush1.msra.mxu0 0.0
        %1310 = vmatprep.subr.mxu0 0.0
        %1311 = vmatpush1.msra.mxu0 0.0
        %1312 = vmatprep.subr.mxu0 0.0
        %1313 = vmatpush1.msra.mxu0 0.0
        %1314 = vmatprep.subr.mxu0 0.0
        %1315 = vmatpush1.msra.mxu0 0.0
        %1316 = vmatprep.subr.mxu0 0.0
        %1317 = vmatpush1.msra.mxu0 0.0
        %1318 = vmatprep.subr.mxu0 0.0
        %1319 = vmatpush1.msra.mxu0 0.0
        %1320 = vmatprep.subr.mxu0 0.0
        %1321 = vmatpush1.msra.mxu0 0.0
        %1322 = vmatprep.subr.mxu0 0.0
        %1323 = vmatpush1.msra.mxu0 0.0
        %1324 = vmatprep.subr.mxu0 0.0
        %1325 = vmatpush1.msra.mxu0 0.0
        %1326 = vmatprep.subr.mxu0 0.0
        %1327 = vmatpush1.msra.mxu0 %v1292
        %1328 = vmatprep.subr.mxu0 0.0
        %1329 = vmatpush1.msra.mxu0 %v1290
        %1330 = vmatprep.subr.mxu0 0.0
        %1331 = vmatpush2.msra.mxu0 0.0
        %1332 = vmatprep.subr.mxu0 0.0
        %1333 = vmatpush2.msra.mxu0 0.0
        %1334 = vmatprep.subr.mxu0 0.0
        %1335 = vmatpush2.msra.mxu0 0.0
        %1336 = vmatprep.subr.mxu0 0.0
        %1337 = vmatpush2.msra.mxu0 0.0
        %1338 = vmatprep.subr.mxu0 0.0
        %1339 = vmatpush2.msra.mxu0 0.0
        %1340 = vmatprep.subr.mxu0 0.0
        %1341 = vmatpush2.msra.mxu0 0.0
        %1342 = vmatprep.subr.mxu0 0.0
        %1343 = vmatpush2.msra.mxu0 0.0
        %1344 = vmatprep.subr.mxu0 0.0
        %1345 = vmatpush2.msra.mxu0 0.0
        %1346 = vmatprep.subr.mxu0 0.0
        %1347 = vmatpush2.msra.mxu0 0.0
        %1348 = vmatprep.subr.mxu0 0.0
        %1349 = vmatpush2.msra.mxu0 0.0
        %1350 = vmatprep.subr.mxu0 0.0
        %1351 = vmatpush2.msra.mxu0 0.0
        %1352 = vmatprep.subr.mxu0 0.0
        %1353 = vmatpush2.msra.mxu0 0.0
        %1354 = vmatprep.subr.mxu0 0.0
        %1355 = vmatpush2.msra.mxu0 0.0
        %1356 = vmatprep.subr.mxu0 0.0
        %1357 = vmatpush2.msra.mxu0 0.0
        %1358 = vmatprep.subr.mxu0 0.0
        %1359 = vmatpush2.msra.mxu0 0.0
        %1360 = vmatprep.subr.mxu0 0.0
        %1361 = vmatpush2.msra.mxu0 0.0
        %1362 = vmatprep.mubr.f32.mxu0 0.0
        %1363 = vmatmul.mubr.f32.gmra.mxu0 %v1296
        %v1364 = vpop.f32.mrf.mxu0
        %v1365 = vadd.f32 0.0, %v1364
        %v1366 = vpop.f32.mrf.mxu0
        %1367 = vdwg.mxu0
        %1368 = vrot.lane.b32.xlu0 %v862, 112
        %v1369 = vpop.permute.xlu0 %1368
        %1370 = vrot.lane.b32.xlu0 %v942, 112
        %v1371 = vpop.permute.xlu0 %1370
        %1372 = vrot.lane.b32.xlu0 %v947, 112
        %v1373 = vpop.permute.xlu0 %1372
        %v1374 = vsel %vm1029, %v1369, 0
        %v1376 = vsel %vm1029, %v1371, 0
        %v1378 = vsel %vm1029, %v1373, 0
        %1380 = vmatprep.subr.mxu0 0.0
        %1381 = vmatpush1.xpose.msra.mxu0 0.0
        %1382 = vmatprep.subr.mxu0 0.0
        %1383 = vmatpush1.xpose.msra.mxu0 0.0
        %1384 = vmatprep.subr.mxu0 0.0
        %1385 = vmatpush1.xpose.msra.mxu0 0.0
        %1386 = vmatprep.subr.mxu0 0.0
        %1387 = vmatpush1.xpose.msra.mxu0 0.0
        %1388 = vmatprep.subr.mxu0 0.0
        %1389 = vmatpush1.xpose.msra.mxu0 0.0
        %1390 = vmatprep.subr.mxu0 0.0
        %1391 = vmatpush1.xpose.msra.mxu0 0.0
        %1392 = vmatprep.subr.mxu0 0.0
        %1393 = vmatpush1.xpose.msra.mxu0 0.0
        %1394 = vmatprep.subr.mxu0 0.0
        %1395 = vmatpush1.xpose.msra.mxu0 0.0
        %1396 = vmatprep.subr.mxu0 0.0
        %1397 = vmatpush1.xpose.msra.mxu0 0.0
        %1398 = vmatprep.subr.mxu0 0.0
        %1399 = vmatpush1.xpose.msra.mxu0 0.0
        %1400 = vmatprep.subr.mxu0 0.0
        %1401 = vmatpush1.xpose.msra.mxu0 0.0
        %1402 = vmatprep.subr.mxu0 0.0
        %1403 = vmatpush1.xpose.msra.mxu0 0.0
        %1404 = vmatprep.subr.mxu0 0.0
        %1405 = vmatpush1.xpose.msra.mxu0 0.0
        %1406 = vmatprep.subr.mxu0 0.0
        %1407 = vmatpush1.xpose.msra.mxu0 0.0
        %1408 = vmatprep.subr.mxu0 0.0
        %1409 = vmatpush1.xpose.msra.mxu0 %v1378
        %1410 = vmatprep.subr.mxu0 0.0
        %1411 = vmatpush1.xpose.msra.mxu0 %v1376
        %1412 = vmatprep.subr.mxu0 0.0
        %1413 = vmatpush2.xpose.msra.mxu0 0.0
        %1414 = vmatprep.subr.mxu0 0.0
        %1415 = vmatpush2.xpose.msra.mxu0 0.0
        %1416 = vmatprep.subr.mxu0 0.0
        %1417 = vmatpush2.xpose.msra.mxu0 0.0
        %1418 = vmatprep.subr.mxu0 0.0
        %1419 = vmatpush2.xpose.msra.mxu0 0.0
        %1420 = vmatprep.subr.mxu0 0.0
        %1421 = vmatpush2.xpose.msra.mxu0 0.0
        %1422 = vmatprep.subr.mxu0 0.0
        %1423 = vmatpush2.xpose.msra.mxu0 0.0
        %1424 = vmatprep.subr.mxu0 0.0
        %1425 = vmatpush2.xpose.msra.mxu0 0.0
        %1426 = vmatprep.subr.mxu0 0.0
        %1427 = vmatpush2.xpose.msra.mxu0 0.0
        %1428 = vmatprep.subr.mxu0 0.0
        %1429 = vmatpush2.xpose.msra.mxu0 0.0
        %1430 = vmatprep.subr.mxu0 0.0
        %1431 = vmatpush2.xpose.msra.mxu0 0.0
        %1432 = vmatprep.subr.mxu0 0.0
        %1433 = vmatpush2.xpose.msra.mxu0 0.0
        %1434 = vmatprep.subr.mxu0 0.0
        %1435 = vmatpush2.xpose.msra.mxu0 0.0
        %1436 = vmatprep.subr.mxu0 0.0
        %1437 = vmatpush2.xpose.msra.mxu0 0.0
        %1438 = vmatprep.subr.mxu0 0.0
        %1439 = vmatpush2.xpose.msra.mxu0 0.0
        %1440 = vmatprep.subr.mxu0 0.0
        %1441 = vmatpush2.xpose.msra.mxu0 0.0
        %1442 = vmatprep.subr.mxu0 0.0
        %1443 = vmatpush2.xpose.msra.mxu0 0.0
        %1444 = vmatprep.mubr.f32.mxu0 0.0
        %1445 = vmatmul.mubr.f32.gmra.mxu0 %v1374
        %v1446 = vpop.f32.mrf.mxu0
        %v1447 = vadd.f32 0.0, %v1446
        %v1448 = vpop.f32.mrf.mxu0
        %1449 = vdwg.mxu0
        %v1450 = vsel %vm1109, %v1447, -inf
        %1451 = vmax.xlane.f32.xlu0 %v1450
        %v1452 = vpop.xlane.xlu0 %1451
        %v1453 = vsub.f32 %v1447, %v1452
        %v1454 = vmul.f32 %v1453, 1.442695
        %v1455 = vpow.pop %v1454
        %v1456 = vsel %vm1109, %v1455, 0.0
        %1457 = vadd.xlane.f32.xlu0 %v1456
        %v1458 = vpop.xlane.xlu0 %1457
        %v1459 = vrcp.pop %v1458
        %v1460 = vmul.f32 %v1455, %v1459
        %1461 = vrot.lane.b32.xlu0 %v1021, 112
        %v1462 = vpop.permute.xlu0 %1461
        %1463 = vrot.lane.b32.xlu0 %v1026, 112
        %v1464 = vpop.permute.xlu0 %1463
        %v1468 = vsel %vm1109, %v1460, 0
        %1470 = vmatprep.subr.mxu0 0.0
        %1471 = vmatpush1.msra.mxu0 0.0
        %1472 = vmatprep.subr.mxu0 0.0
        %1473 = vmatpush1.msra.mxu0 0.0
        %1474 = vmatprep.subr.mxu0 0.0
        %1475 = vmatpush1.msra.mxu0 0.0
        %1476 = vmatprep.subr.mxu0 0.0
        %1477 = vmatpush1.msra.mxu0 0.0
        %1478 = vmatprep.subr.mxu0 0.0
        %1479 = vmatpush1.msra.mxu0 0.0
        %1480 = vmatprep.subr.mxu0 0.0
        %1481 = vmatpush1.msra.mxu0 0.0
        %1482 = vmatprep.subr.mxu0 0.0
        %1483 = vmatpush1.msra.mxu0 0.0
        %1484 = vmatprep.subr.mxu0 0.0
        %1485 = vmatpush1.msra.mxu0 0.0
        %1486 = vmatprep.subr.mxu0 0.0
        %1487 = vmatpush1.msra.mxu0 0.0
        %1488 = vmatprep.subr.mxu0 0.0
        %1489 = vmatpush1.msra.mxu0 0.0
        %1490 = vmatprep.subr.mxu0 0.0
        %1491 = vmatpush1.msra.mxu0 0.0
        %1492 = vmatprep.subr.mxu0 0.0
        %1493 = vmatpush1.msra.mxu0 0.0
        %1494 = vmatprep.subr.mxu0 0.0
        %1495 = vmatpush1.msra.mxu0 0.0
        %1496 = vmatprep.subr.mxu0 0.0
        %1497 = vmatpush1.msra.mxu0 0.0
        %1498 = vmatprep.subr.mxu0 0.0
        %1499 = vmatpush1.msra.mxu0 %v1464
        %1500 = vmatprep.subr.mxu0 0.0
        %1501 = vmatpush1.msra.mxu0 %v1462
        %1502 = vmatprep.subr.mxu0 0.0
        %1503 = vmatpush2.msra.mxu0 0.0
        %1504 = vmatprep.subr.mxu0 0.0
        %1505 = vmatpush2.msra.mxu0 0.0
        %1506 = vmatprep.subr.mxu0 0.0
        %1507 = vmatpush2.msra.mxu0 0.0
        %1508 = vmatprep.subr.mxu0 0.0
        %1509 = vmatpush2.msra.mxu0 0.0
        %1510 = vmatprep.subr.mxu0 0.0
        %1511 = vmatpush2.msra.mxu0 0.0
        %1512 = vmatprep.subr.mxu0 0.0
        %1513 = vmatpush2.msra.mxu0 0.0
        %1514 = vmatprep.subr.mxu0 0.0
        %1515 = vmatpush2.msra.mxu0 0.0
        %1516 = vmatprep.subr.mxu0 0.0
        %1517 = vmatpush2.msra.mxu0 0.0
        %1518 = vmatprep.subr.mxu0 0.0
        %1519 = vmatpush2.msra.mxu0 0.0
        %1520 = vmatprep.subr.mxu0 0.0
        %1521 = vmatpush2.msra.mxu0 0.0
        %1522 = vmatprep.subr.mxu0 0.0
        %1523 = vmatpush2.msra.mxu0 0.0
        %1524 = vmatprep.subr.mxu0 0.0
        %1525 = vmatpush2.msra.mxu0 0.0
        %1526 = vmatprep.subr.mxu0 0.0
        %1527 = vmatpush2.msra.mxu0 0.0
        %1528 = vmatprep.subr.mxu0 0.0
        %1529 = vmatpush2.msra.mxu0 0.0
        %1530 = vmatprep.subr.mxu0 0.0
        %1531 = vmatpush2.msra.mxu0 0.0
        %1532 = vmatprep.subr.mxu0 0.0
        %1533 = vmatpush2.msra.mxu0 0.0
        %1534 = vmatprep.mubr.f32.mxu0 0.0
        %1535 = vmatmul.mubr.f32.gmra.mxu0 %v1468
        %v1536 = vpop.f32.mrf.mxu0
        %v1537 = vadd.f32 0.0, %v1536
        %v1538 = vpop.f32.mrf.mxu0
        %1539 = vdwg.mxu0
        %1540 = vrot.lane.b32.xlu0 %v862, 104
        %v1541 = vpop.permute.xlu0 %1540
        %1542 = vrot.lane.b32.xlu0 %v942, 104
        %v1543 = vpop.permute.xlu0 %1542
        %1544 = vrot.lane.b32.xlu0 %v947, 104
        %v1545 = vpop.permute.xlu0 %1544
        %v1546 = vsel %vm1029, %v1541, 0
        %v1548 = vsel %vm1029, %v1543, 0
        %v1550 = vsel %vm1029, %v1545, 0
        %1552 = vmatprep.subr.mxu0 0.0
        %1553 = vmatpush1.xpose.msra.mxu0 0.0
        %1554 = vmatprep.subr.mxu0 0.0
        %1555 = vmatpush1.xpose.msra.mxu0 0.0
        %1556 = vmatprep.subr.mxu0 0.0
        %1557 = vmatpush1.xpose.msra.mxu0 0.0
        %1558 = vmatprep.subr.mxu0 0.0
        %1559 = vmatpush1.xpose.msra.mxu0 0.0
        %1560 = vmatprep.subr.mxu0 0.0
        %1561 = vmatpush1.xpose.msra.mxu0 0.0
        %1562 = vmatprep.subr.mxu0 0.0
        %1563 = vmatpush1.xpose.msra.mxu0 0.0
        %1564 = vmatprep.subr.mxu0 0.0
        %1565 = vmatpush1.xpose.msra.mxu0 0.0
        %1566 = vmatprep.subr.mxu0 0.0
        %1567 = vmatpush1.xpose.msra.mxu0 0.0
        %1568 = vmatprep.subr.mxu0 0.0
        %1569 = vmatpush1.xpose.msra.mxu0 0.0
        %1570 = vmatprep.subr.mxu0 0.0
        %1571 = vmatpush1.xpose.msra.mxu0 0.0
        %1572 = vmatprep.subr.mxu0 0.0
        %1573 = vmatpush1.xpose.msra.mxu0 0.0
        %1574 = vmatprep.subr.mxu0 0.0
        %1575 = vmatpush1.xpose.msra.mxu0 0.0
        %1576 = vmatprep.subr.mxu0 0.0
        %1577 = vmatpush1.xpose.msra.mxu0 0.0
        %1578 = vmatprep.subr.mxu0 0.0
        %1579 = vmatpush1.xpose.msra.mxu0 0.0
        %1580 = vmatprep.subr.mxu0 0.0
        %1581 = vmatpush1.xpose.msra.mxu0 %v1550
        %1582 = vmatprep.subr.mxu0 0.0
        %1583 = vmatpush1.xpose.msra.mxu0 %v1548
        %1584 = vmatprep.subr.mxu0 0.0
        %1585 = vmatpush2.xpose.msra.mxu0 0.0
        %1586 = vmatprep.subr.mxu0 0.0
        %1587 = vmatpush2.xpose.msra.mxu0 0.0
        %1588 = vmatprep.subr.mxu0 0.0
        %1589 = vmatpush2.xpose.msra.mxu0 0.0
        %1590 = vmatprep.subr.mxu0 0.0
        %1591 = vmatpush2.xpose.msra.mxu0 0.0
        %1592 = vmatprep.subr.mxu0 0.0
        %1593 = vmatpush2.xpose.msra.mxu0 0.0
        %1594 = vmatprep.subr.mxu0 0.0
        %1595 = vmatpush2.xpose.msra.mxu0 0.0
        %1596 = vmatprep.subr.mxu0 0.0
        %1597 = vmatpush2.xpose.msra.mxu0 0.0
        %1598 = vmatprep.subr.mxu0 0.0
        %1599 = vmatpush2.xpose.msra.mxu0 0.0
        %1600 = vmatprep.subr.mxu0 0.0
        %1601 = vmatpush2.xpose.msra.mxu0 0.0
        %1602 = vmatprep.subr.mxu0 0.0
        %1603 = vmatpush2.xpose.msra.mxu0 0.0
        %1604 = vmatprep.subr.mxu0 0.0
        %1605 = vmatpush2.xpose.msra.mxu0 0.0
        %1606 = vmatprep.subr.mxu0 0.0
        %1607 = vmatpush2.xpose.msra.mxu0 0.0
        %1608 = vmatprep.subr.mxu0 0.0
        %1609 = vmatpush2.xpose.msra.mxu0 0.0
        %1610 = vmatprep.subr.mxu0 0.0
        %1611 = vmatpush2.xpose.msra.mxu0 0.0
        %1612 = vmatprep.subr.mxu0 0.0
        %1613 = vmatpush2.xpose.msra.mxu0 0.0
        %1614 = vmatprep.subr.mxu0 0.0
        %1615 = vmatpush2.xpose.msra.mxu0 0.0
        %1616 = vmatprep.mubr.f32.mxu0 0.0
        %1617 = vmatmul.mubr.f32.gmra.mxu0 %v1546
        %v1618 = vpop.f32.mrf.mxu0
        %v1619 = vadd.f32 0.0, %v1618
        %v1620 = vpop.f32.mrf.mxu0
        %1621 = vdwg.mxu0
        %v1622 = vsel %vm1109, %v1619, -inf
        %1623 = vmax.xlane.f32.xlu0 %v1622
        %v1624 = vpop.xlane.xlu0 %1623
        %v1625 = vsub.f32 %v1619, %v1624
        %v1626 = vmul.f32 %v1625, 1.442695
        %v1627 = vpow.pop %v1626
        %v1628 = vsel %vm1109, %v1627, 0.0
        %1629 = vadd.xlane.f32.xlu0 %v1628
        %v1630 = vpop.xlane.xlu0 %1629
        %v1631 = vrcp.pop %v1630
        %v1632 = vmul.f32 %v1627, %v1631
        %1633 = vrot.lane.b32.xlu0 %v1021, 104
        %v1634 = vpop.permute.xlu0 %1633
        %1635 = vrot.lane.b32.xlu0 %v1026, 104
        %v1636 = vpop.permute.xlu0 %1635
        %v1640 = vsel %vm1109, %v1632, 0
        %1642 = vmatprep.subr.mxu0 0.0
        %1643 = vmatpush1.msra.mxu0 0.0
        %1644 = vmatprep.subr.mxu0 0.0
        %1645 = vmatpush1.msra.mxu0 0.0
        %1646 = vmatprep.subr.mxu0 0.0
        %1647 = vmatpush1.msra.mxu0 0.0
        %1648 = vmatprep.subr.mxu0 0.0
        %1649 = vmatpush1.msra.mxu0 0.0
        %1650 = vmatprep.subr.mxu0 0.0
        %1651 = vmatpush1.msra.mxu0 0.0
        %1652 = vmatprep.subr.mxu0 0.0
        %1653 = vmatpush1.msra.mxu0 0.0
        %1654 = vmatprep.subr.mxu0 0.0
        %1655 = vmatpush1.msra.mxu0 0.0
        %1656 = vmatprep.subr.mxu0 0.0
        %1657 = vmatpush1.msra.mxu0 0.0
        %1658 = vmatprep.subr.mxu0 0.0
        %1659 = vmatpush1.msra.mxu0 0.0
        %1660 = vmatprep.subr.mxu0 0.0
        %1661 = vmatpush1.msra.mxu0 0.0
        %1662 = vmatprep.subr.mxu0 0.0
        %1663 = vmatpush1.msra.mxu0 0.0
        %1664 = vmatprep.subr.mxu0 0.0
        %1665 = vmatpush1.msra.mxu0 0.0
        %1666 = vmatprep.subr.mxu0 0.0
        %1667 = vmatpush1.msra.mxu0 0.0
        %1668 = vmatprep.subr.mxu0 0.0
        %1669 = vmatpush1.msra.mxu0 0.0
        %1670 = vmatprep.subr.mxu0 0.0
        %1671 = vmatpush1.msra.mxu0 %v1636
        %1672 = vmatprep.subr.mxu0 0.0
        %1673 = vmatpush1.msra.mxu0 %v1634
        %1674 = vmatprep.subr.mxu0 0.0
        %1675 = vmatpush2.msra.mxu0 0.0
        %1676 = vmatprep.subr.mxu0 0.0
        %1677 = vmatpush2.msra.mxu0 0.0
        %1678 = vmatprep.subr.mxu0 0.0
        %1679 = vmatpush2.msra.mxu0 0.0
        %1680 = vmatprep.subr.mxu0 0.0
        %1681 = vmatpush2.msra.mxu0 0.0
        %1682 = vmatprep.subr.mxu0 0.0
        %1683 = vmatpush2.msra.mxu0 0.0
        %1684 = vmatprep.subr.mxu0 0.0
        %1685 = vmatpush2.msra.mxu0 0.0
        %1686 = vmatprep.subr.mxu0 0.0
        %1687 = vmatpush2.msra.mxu0 0.0
        %1688 = vmatprep.subr.mxu0 0.0
        %1689 = vmatpush2.msra.mxu0 0.0
        %1690 = vmatprep.subr.mxu0 0.0
        %1691 = vmatpush2.msra.mxu0 0.0
        %1692 = vmatprep.subr.mxu0 0.0
        %1693 = vmatpush2.msra.mxu0 0.0
        %1694 = vmatprep.subr.mxu0 0.0
        %1695 = vmatpush2.msra.mxu0 0.0
        %1696 = vmatprep.subr.mxu0 0.0
        %1697 = vmatpush2.msra.mxu0 0.0
        %1698 = vmatprep.subr.mxu0 0.0
        %1699 = vmatpush2.msra.mxu0 0.0
        %1700 = vmatprep.subr.mxu0 0.0
        %1701 = vmatpush2.msra.mxu0 0.0
        %1702 = vmatprep.subr.mxu0 0.0
        %1703 = vmatpush2.msra.mxu0 0.0
        %1704 = vmatprep.subr.mxu0 0.0
        %1705 = vmatpush2.msra.mxu0 0.0
        %1706 = vmatprep.mubr.f32.mxu0 0.0
        %1707 = vmatmul.mubr.f32.gmra.mxu0 %v1640
        %v1708 = vpop.f32.mrf.mxu0
        %v1709 = vadd.f32 0.0, %v1708
        %v1710 = vpop.f32.mrf.mxu0
        %1711 = vdwg.mxu0
        %1713 = vrot.lane.b32.xlu0 %v1365, 8
        %v1714 = vpop.permute.xlu0 %1713
        %1717 = vrot.lane.b32.xlu0 %v1537, 16
        %v1718 = vpop.permute.xlu0 %1717
        %1721 = vrot.lane.b32.xlu0 %v1709, 24
        %v1722 = vpop.permute.xlu0 %1721
        %v1724 = vsel %vm1029, %v1191, %v1714
        %v1725 = vsel %vm1109, %v1724, %v1718
        %vm1726 = vcmask 195584
        %v1727 = vsel %vm1726, %v1725, %v1722
        %v1728 = vld [vmem:[#allocation7] sm:$0xff]
        %v1729 = vld [vmem:[#allocation7 + $0x8] sm:$0xff]
        %v1730 = vld [vmem:[#allocation7 + $0x10] sm:$0xff]
        %v1731 = vld [vmem:[#allocation7 + $0x18] sm:$0xff]
        %v1732 = vlaneseq
        %v1733 = vshrl.u32 %v1732, 7
        %v1734 = vsub.s32 0, %v1733
        %v1735 = vrot.slane %v728, %v1734
        %v1737 = vsel %vm733, %v1727, 0
        %1739 = vmatprep.subr.mxu0 0.0
        %1740 = vmatpush1.msra.mxu0 0.0
        %1741 = vmatprep.subr.mxu0 0.0
        %1742 = vmatpush1.msra.mxu0 0.0
        %1743 = vmatprep.subr.mxu0 0.0
        %1744 = vmatpush1.msra.mxu0 0.0
        %1745 = vmatprep.subr.mxu0 0.0
        %1746 = vmatpush1.msra.mxu0 0.0
        %1747 = vmatprep.subr.mxu0 0.0
        %1748 = vmatpush1.msra.mxu0 0.0
        %1749 = vmatprep.subr.mxu0 0.0
        %1750 = vmatpush1.msra.mxu0 0.0
        %1751 = vmatprep.subr.mxu0 0.0
        %1752 = vmatpush1.msra.mxu0 0.0
        %1753 = vmatprep.subr.mxu0 0.0
        %1754 = vmatpush1.msra.mxu0 0.0
        %1755 = vmatprep.subr.mxu0 0.0
        %1756 = vmatpush1.msra.mxu0 0.0
        %1757 = vmatprep.subr.mxu0 0.0
        %1758 = vmatpush1.msra.mxu0 0.0
        %1759 = vmatprep.subr.mxu0 0.0
        %1760 = vmatpush1.msra.mxu0 0.0
        %1761 = vmatprep.subr.mxu0 0.0
        %1762 = vmatpush1.msra.mxu0 0.0
        %1763 = vmatprep.subr.mxu0 0.0
        %1764 = vmatpush1.msra.mxu0 %v1731
        %1765 = vmatprep.subr.mxu0 0.0
        %1766 = vmatpush1.msra.mxu0 %v1730
        %1767 = vmatprep.subr.mxu0 0.0
        %1768 = vmatpush1.msra.mxu0 %v1729
        %1769 = vmatprep.subr.mxu0 0.0
        %1770 = vmatpush1.msra.mxu0 %v1728
        %1771 = vmatprep.subr.mxu0 0.0
        %1772 = vmatpush2.msra.mxu0 0.0
        %1773 = vmatprep.subr.mxu0 0.0
        %1774 = vmatpush2.msra.mxu0 0.0
        %1775 = vmatprep.subr.mxu0 0.0
        %1776 = vmatpush2.msra.mxu0 0.0
        %1777 = vmatprep.subr.mxu0 0.0
        %1778 = vmatpush2.msra.mxu0 0.0
        %1779 = vmatprep.subr.mxu0 0.0
        %1780 = vmatpush2.msra.mxu0 0.0
        %1781 = vmatprep.subr.mxu0 0.0
        %1782 = vmatpush2.msra.mxu0 0.0
        %1783 = vmatprep.subr.mxu0 0.0
        %1784 = vmatpush2.msra.mxu0 0.0
        %1785 = vmatprep.subr.mxu0 0.0
        %1786 = vmatpush2.msra.mxu0 0.0
        %1787 = vmatprep.subr.mxu0 0.0
        %1788 = vmatpush2.msra.mxu0 0.0
        %1789 = vmatprep.subr.mxu0 0.0
        %1790 = vmatpush2.msra.mxu0 0.0
        %1791 = vmatprep.subr.mxu0 0.0
        %1792 = vmatpush2.msra.mxu0 0.0
        %1793 = vmatprep.subr.mxu0 0.0
        %1794 = vmatpush2.msra.mxu0 0.0
        %1795 = vmatprep.subr.mxu0 0.0
        %1796 = vmatpush2.msra.mxu0 0.0
        %1797 = vmatprep.subr.mxu0 0.0
        %1798 = vmatpush2.msra.mxu0 0.0
        %1799 = vmatprep.subr.mxu0 0.0
        %1800 = vmatpush2.msra.mxu0 0.0
        %1801 = vmatprep.subr.mxu0 0.0
        %1802 = vmatpush2.msra.mxu0 0.0
        %1803 = vmatprep.mubr.f32.mxu0 0.0
        %1804 = vmatmul.mubr.f32.gmra.mxu0 %v1737
        %v1805 = vpop.f32.mrf.mxu0
        %v1806 = vadd.f32 %v1735, %v1805
        %v1807 = vpop.f32.mrf.mxu0
        %1808 = vdwg.mxu0
        %v1809 = vadd.f32 %v1806, %v718
        %v1810 = vsel %vm733, %v1809, 0.0
        %1811 = vadd.xlane.f32.xlu0 %v1810
        %v1812 = vpop.xlane.xlu0 %1811
        %v1813 = vmul.f32 %v1812, %v737
        %v1814 = vsub.f32 %v1809, %v1813
        %v1815 = vmul.f32 %v1814, %v1814
        %v1816 = vsel %vm733, %v1815, 0.0
        %1817 = vadd.xlane.f32.xlu0 %v1816
        %v1818 = vpop.xlane.xlu0 %1817
        %v1819 = vmul.f32 %v1818, %v737
        %v1820 = vadd.f32 %v1819, 1e-05
        %v1821 = vrsqrt.pop %v1820
        %v1822 = vmul.f32 %v1814, %v1821
        %v1823 = vlaneseq
        %v1824 = vshrl.u32 %v1823, 7
        %v1825 = vsub.s32 0, %v1824
        %v1826 = vrot.slane %v724, %v1825
        %v1827 = vmul.f32 %v1822, %v1826
        %v1828 = vlaneseq
        %v1829 = vshrl.u32 %v1828, 7
        %v1830 = vsub.s32 0, %v1829
        %v1831 = vrot.slane %v725, %v1830
        %v1832 = vadd.f32 %v1827, %v1831
        %v1833 = vld [vmem:[#allocation8] sm:$0xff]
        %v1834 = vld [vmem:[#allocation8 + $0x8] sm:$0xff]
        %v1835 = vld [vmem:[#allocation8 + $0x10] sm:$0xff]
        %v1836 = vld [vmem:[#allocation8 + $0x18] sm:$0xff]
        %v1838 = vsel %vm733, %v1832, 0
        %1840 = vmatprep.subr.mxu0 0.0
        %1841 = vmatpush1.msra.mxu0 0.0
        %1842 = vmatprep.subr.mxu0 0.0
        %1843 = vmatpush1.msra.mxu0 0.0
        %1844 = vmatprep.subr.mxu0 0.0
        %1845 = vmatpush1.msra.mxu0 0.0
        %1846 = vmatprep.subr.mxu0 0.0
        %1847 = vmatpush1.msra.mxu0 0.0
        %1848 = vmatprep.subr.mxu0 0.0
        %1849 = vmatpush1.msra.mxu0 0.0
        %1850 = vmatprep.subr.mxu0 0.0
        %1851 = vmatpush1.msra.mxu0 0.0
        %1852 = vmatprep.subr.mxu0 0.0
        %1853 = vmatpush1.msra.mxu0 0.0
        %1854 = vmatprep.subr.mxu0 0.0
        %1855 = vmatpush1.msra.mxu0 0.0
        %1856 = vmatprep.subr.mxu0 0.0
        %1857 = vmatpush1.msra.mxu0 0.0
        %1858 = vmatprep.subr.mxu0 0.0
        %1859 = vmatpush1.msra.mxu0 0.0
        %1860 = vmatprep.subr.mxu0 0.0
        %1861 = vmatpush1.msra.mxu0 0.0
        %1862 = vmatprep.subr.mxu0 0.0
        %1863 = vmatpush1.msra.mxu0 0.0
        %1864 = vmatprep.subr.mxu0 0.0
        %1865 = vmatpush1.msra.mxu0 %v1836
        %1866 = vmatprep.subr.mxu0 0.0
        %1867 = vmatpush1.msra.mxu0 %v1835
        %1868 = vmatprep.subr.mxu0 0.0
        %1869 = vmatpush1.msra.mxu0 %v1834
        %1870 = vmatprep.subr.mxu0 0.0
        %1871 = vmatpush1.msra.mxu0 %v1833
        %1872 = vmatprep.subr.mxu0 0.0
        %1873 = vmatpush2.msra.mxu0 0.0
        %1874 = vmatprep.subr.mxu0 0.0
        %1875 = vmatpush2.msra.mxu0 0.0
        %1876 = vmatprep.subr.mxu0 0.0
        %1877 = vmatpush2.msra.mxu0 0.0
        %1878 = vmatprep.subr.mxu0 0.0
        %1879 = vmatpush2.msra.mxu0 0.0
        %1880 = vmatprep.subr.mxu0 0.0
        %1881 = vmatpush2.msra.mxu0 0.0
        %1882 = vmatprep.subr.mxu0 0.0
        %1883 = vmatpush2.msra.mxu0 0.0
        %1884 = vmatprep.subr.mxu0 0.0
        %1885 = vmatpush2.msra.mxu0 0.0
        %1886 = vmatprep.subr.mxu0 0.0
        %1887 = vmatpush2.msra.mxu0 0.0
        %1888 = vmatprep.subr.mxu0 0.0
        %1889 = vmatpush2.msra.mxu0 0.0
        %1890 = vmatprep.subr.mxu0 0.0
        %1891 = vmatpush2.msra.mxu0 0.0
        %1892 = vmatprep.subr.mxu0 0.0
        %1893 = vmatpush2.msra.mxu0 0.0
        %1894 = vmatprep.subr.mxu0 0.0
        %1895 = vmatpush2.msra.mxu0 0.0
        %1896 = vmatprep.subr.mxu0 0.0
        %1897 = vmatpush2.msra.mxu0 0.0
        %1898 = vmatprep.subr.mxu0 0.0
        %1899 = vmatpush2.msra.mxu0 0.0
        %1900 = vmatprep.subr.mxu0 0.0
        %1901 = vmatpush2.msra.mxu0 0.0
        %1902 = vmatprep.subr.mxu0 0.0
        %1903 = vmatpush2.msra.mxu0 0.0
        %1904 = vmatprep.mubr.f32.mxu0 0.0
        %1905 = vmatmul.mubr.f32.gmra.mxu0 %v1838
        %v1906 = vpop.f32.mrf.mxu0
        %v1907 = vadd.f32 0.0, %v1906
        %v1908 = vpop.f32.mrf.mxu0
        %1909 = vdwg.mxu0
        %v1910 = vld [vmem:[#allocation10] sm:$0xff]
        %v1911 = vld [vmem:[#allocation10 + $0x8] sm:$0xff]
        %v1912 = vld [vmem:[#allocation10 + $0x10] sm:$0xff]
        %v1914 = vsel %vm1726, %v721, 0
        %1916 = vmatprep.subr.mxu0 0.0
        %1917 = vmatpush1.msra.mxu0 0.0
        %1918 = vmatprep.subr.mxu0 0.0
        %1919 = vmatpush1.msra.mxu0 0.0
        %1920 = vmatprep.subr.mxu0 0.0
        %1921 = vmatpush1.msra.mxu0 0.0
        %1922 = vmatprep.subr.mxu0 0.0
        %1923 = vmatpush1.msra.mxu0 0.0
        %1924 = vmatprep.subr.mxu0 0.0
        %1925 = vmatpush1.msra.mxu0 0.0
        %1926 = vmatprep.subr.mxu0 0.0
        %1927 = vmatpush1.msra.mxu0 0.0
        %1928 = vmatprep.subr.mxu0 0.0
        %1929 = vmatpush1.msra.mxu0 0.0
        %1930 = vmatprep.subr.mxu0 0.0
        %1931 = vmatpush1.msra.mxu0 0.0
        %1932 = vmatprep.subr.mxu0 0.0
        %1933 = vmatpush1.msra.mxu0 0.0
        %1934 = vmatprep.subr.mxu0 0.0
        %1935 = vmatpush1.msra.mxu0 0.0
        %1936 = vmatprep.subr.mxu0 0.0
        %1937 = vmatpush1.msra.mxu0 0.0
        %1938 = vmatprep.subr.mxu0 0.0
        %1939 = vmatpush1.msra.mxu0 0.0
        %1940 = vmatprep.subr.mxu0 0.0
        %1941 = vmatpush1.msra.mxu0 0.0
        %1942 = vmatprep.subr.mxu0 0.0
        %1943 = vmatpush1.msra.mxu0 %v1912
        %1944 = vmatprep.subr.mxu0 0.0
        %1945 = vmatpush1.msra.mxu0 %v1911
        %1946 = vmatprep.subr.mxu0 0.0
        %1947 = vmatpush1.msra.mxu0 %v1910
        %1948 = vmatprep.subr.mxu0 0.0
        %1949 = vmatpush2.msra.mxu0 0.0
        %1950 = vmatprep.subr.mxu0 0.0
        %1951 = vmatpush2.msra.mxu0 0.0
        %1952 = vmatprep.subr.mxu0 0.0
        %1953 = vmatpush2.msra.mxu0 0.0
        %1954 = vmatprep.subr.mxu0 0.0
        %1955 = vmatpush2.msra.mxu0 0.0
        %1956 = vmatprep.subr.mxu0 0.0
        %1957 = vmatpush2.msra.mxu0 0.0
        %1958 = vmatprep.subr.mxu0 0.0
        %1959 = vmatpush2.msra.mxu0 0.0
        %1960 = vmatprep.subr.mxu0 0.0
        %1961 = vmatpush2.msra.mxu0 0.0
        %1962 = vmatprep.subr.mxu0 0.0
        %1963 = vmatpush2.msra.mxu0 0.0
        %1964 = vmatprep.subr.mxu0 0.0
        %1965 = vmatpush2.msra.mxu0 0.0
        %1966 = vmatprep.subr.mxu0 0.0
        %1967 = vmatpush2.msra.mxu0 0.0
        %1968 = vmatprep.subr.mxu0 0.0
        %1969 = vmatpush2.msra.mxu0 0.0
        %1970 = vmatprep.subr.mxu0 0.0
        %1971 = vmatpush2.msra.mxu0 0.0
        %1972 = vmatprep.subr.mxu0 0.0
        %1973 = vmatpush2.msra.mxu0 0.0
        %1974 = vmatprep.subr.mxu0 0.0
        %1975 = vmatpush2.msra.mxu0 0.0
        %1976 = vmatprep.subr.mxu0 0.0
        %1977 = vmatpush2.msra.mxu0 0.0
        %1978 = vmatprep.subr.mxu0 0.0
        %1979 = vmatpush2.msra.mxu0 0.0
        %1980 = vmatprep.mubr.f32.mxu0 0.0
        %1981 = vmatmul.mubr.f32.gmra.mxu0 %v1914
        %v1982 = vpop.f32.mrf.mxu0
        %v1983 = vadd.f32 0.0, %v1982
        %v1984 = vpop.f32.mrf.mxu0
        %1985 = vdwg.mxu0
        %v1986 = vld [vmem:[#allocation11] sm:$0xff]
        %v1987 = vld [vmem:[#allocation11 + $0x8] sm:$0xff]
        %v1988 = vld [vmem:[#allocation11 + $0x10] sm:$0xff]
        %1989 = vmatprep.subr.mxu0 0.0
        %1990 = vmatpush1.msra.mxu0 0.0
        %1991 = vmatprep.subr.mxu0 0.0
        %1992 = vmatpush1.msra.mxu0 0.0
        %1993 = vmatprep.subr.mxu0 0.0
        %1994 = vmatpush1.msra.mxu0 0.0
        %1995 = vmatprep.subr.mxu0 0.0
        %1996 = vmatpush1.msra.mxu0 0.0
        %1997 = vmatprep.subr.mxu0 0.0
        %1998 = vmatpush1.msra.mxu0 0.0
        %1999 = vmatprep.subr.mxu0 0.0
        %2000 = vmatpush1.msra.mxu0 0.0
        %2001 = vmatprep.subr.mxu0 0.0
        %2002 = vmatpush1.msra.mxu0 0.0
        %2003 = vmatprep.subr.mxu0 0.0
        %2004 = vmatpush1.msra.mxu0 0.0
        %2005 = vmatprep.subr.mxu0 0.0
        %2006 = vmatpush1.msra.mxu0 0.0
        %2007 = vmatprep.subr.mxu0 0.0
        %2008 = vmatpush1.msra.mxu0 0.0
        %2009 = vmatprep.subr.mxu0 0.0
        %2010 = vmatpush1.msra.mxu0 0.0
        %2011 = vmatprep.subr.mxu0 0.0
        %2012 = vmatpush1.msra.mxu0 0.0
        %2013 = vmatprep.subr.mxu0 0.0
        %2014 = vmatpush1.msra.mxu0 0.0
        %2015 = vmatprep.subr.mxu0 0.0
        %2016 = vmatpush1.msra.mxu0 %v1988
        %2017 = vmatprep.subr.mxu0 0.0
        %2018 = vmatpush1.msra.mxu0 %v1987
        %2019 = vmatprep.subr.mxu0 0.0
        %2020 = vmatpush1.msra.mxu0 %v1986
        %2021 = vmatprep.subr.mxu0 0.0
        %2022 = vmatpush2.msra.mxu0 0.0
        %2023 = vmatprep.subr.mxu0 0.0
        %2024 = vmatpush2.msra.mxu0 0.0
        %2025 = vmatprep.subr.mxu0 0.0
        %2026 = vmatpush2.msra.mxu0 0.0
        %2027 = vmatprep.subr.mxu0 0.0
        %2028 = vmatpush2.msra.mxu0 0.0
        %2029 = vmatprep.subr.mxu0 0.0
        %2030 = vmatpush2.msra.mxu0 0.0
        %2031 = vmatprep.subr.mxu0 0.0
        %2032 = vmatpush2.msra.mxu0 0.0
        %2033 = vmatprep.subr.mxu0 0.0
        %2034 = vmatpush2.msra.mxu0 0.0
        %2035 = vmatprep.subr.mxu0 0.0
        %2036 = vmatpush2.msra.mxu0 0.0
        %2037 = vmatprep.subr.mxu0 0.0
        %2038 = vmatpush2.msra.mxu0 0.0
        %2039 = vmatprep.subr.mxu0 0.0
        %2040 = vmatpush2.msra.mxu0 0.0
        %2041 = vmatprep.subr.mxu0 0.0
        %2042 = vmatpush2.msra.mxu0 0.0
        %2043 = vmatprep.subr.mxu0 0.0
        %2044 = vmatpush2.msra.mxu0 0.0
        %2045 = vmatprep.subr.mxu0 0.0
        %2046 = vmatpush2.msra.mxu0 0.0
        %2047 = vmatprep.subr.mxu0 0.0
        %2048 = vmatpush2.msra.mxu0 0.0
        %2049 = vmatprep.subr.mxu0 0.0
        %2050 = vmatpush2.msra.mxu0 0.0
        %2051 = vmatprep.subr.mxu0 0.0
        %2052 = vmatpush2.msra.mxu0 0.0
        %2053 = vmatprep.mubr.f32.mxu0 0.0
        %2054 = vmatmul.mubr.f32.gmra.mxu0 %v1914
        %v2055 = vpop.f32.mrf.mxu0
        %v2056 = vadd.f32 0.0, %v2055
        %v2057 = vpop.f32.mrf.mxu0
        %2058 = vdwg.mxu0
        %v2060 = vsel %vm1029, %v1907, 0
        %v2063 = vsel %vm1029, %v1983, 0
        %2065 = vmatprep.subr.mxu0 0.0
        %2066 = vmatpush1.xpose.msra.mxu0 0.0
        %2067 = vmatprep.subr.mxu0 0.0
        %2068 = vmatpush1.xpose.msra.mxu0 0.0
        %2069 = vmatprep.subr.mxu0 0.0
        %2070 = vmatpush1.xpose.msra.mxu0 0.0
        %2071 = vmatprep.subr.mxu0 0.0
        %2072 = vmatpush1.xpose.msra.mxu0 0.0
        %2073 = vmatprep.subr.mxu0 0.0
        %2074 = vmatpush1.xpose.msra.mxu0 0.0
        %2075 = vmatprep.subr.mxu0 0.0
        %2076 = vmatpush1.xpose.msra.mxu0 0.0
        %2077 = vmatprep.subr.mxu0 0.0
        %2078 = vmatpush1.xpose.msra.mxu0 0.0
        %2079 = vmatprep.subr.mxu0 0.0
        %2080 = vmatpush1.xpose.msra.mxu0 0.0
        %2081 = vmatprep.subr.mxu0 0.0
        %2082 = vmatpush1.xpose.msra.mxu0 0.0
        %2083 = vmatprep.subr.mxu0 0.0
        %2084 = vmatpush1.xpose.msra.mxu0 0.0
        %2085 = vmatprep.subr.mxu0 0.0
        %2086 = vmatpush1.xpose.msra.mxu0 0.0
        %2087 = vmatprep.subr.mxu0 0.0
        %2088 = vmatpush1.xpose.msra.mxu0 0.0
        %2089 = vmatprep.subr.mxu0 0.0
        %2090 = vmatpush1.xpose.msra.mxu0 0.0
        %2091 = vmatprep.subr.mxu0 0.0
        %2092 = vmatpush1.xpose.msra.mxu0 0.0
        %2093 = vmatprep.subr.mxu0 0.0
        %2094 = vmatpush1.xpose.msra.mxu0 0.0
        %2095 = vmatprep.subr.mxu0 0.0
        %2096 = vmatpush1.xpose.msra.mxu0 %v2063
        %2097 = vmatprep.subr.mxu0 0.0
        %2098 = vmatpush2.xpose.msra.mxu0 0.0
        %2099 = vmatprep.subr.mxu0 0.0
        %2100 = vmatpush2.xpose.msra.mxu0 0.0
        %2101 = vmatprep.subr.mxu0 0.0
        %2102 = vmatpush2.xpose.msra.mxu0 0.0
        %2103 = vmatprep.subr.mxu0 0.0
        %2104 = vmatpush2.xpose.msra.mxu0 0.0
        %2105 = vmatprep.subr.mxu0 0.0
        %2106 = vmatpush2.xpose.msra.mxu0 0.0
        %2107 = vmatprep.subr.mxu0 0.0
        %2108 = vmatpush2.xpose.msra.mxu0 0.0
        %2109 = vmatprep.subr.mxu0 0.0
        %2110 = vmatpush2.xpose.msra.mxu0 0.0
        %2111 = vmatprep.subr.mxu0 0.0
        %2112 = vmatpush2.xpose.msra.mxu0 0.0
        %2113 = vmatprep.subr.mxu0 0.0
        %2114 = vmatpush2.xpose.msra.mxu0 0.0
        %2115 = vmatprep.subr.mxu0 0.0
        %2116 = vmatpush2.xpose.msra.mxu0 0.0
        %2117 = vmatprep.subr.mxu0 0.0
        %2118 = vmatpush2.xpose.msra.mxu0 0.0
        %2119 = vmatprep.subr.mxu0 0.0
        %2120 = vmatpush2.xpose.msra.mxu0 0.0
        %2121 = vmatprep.subr.mxu0 0.0
        %2122 = vmatpush2.xpose.msra.mxu0 0.0
        %2123 = vmatprep.subr.mxu0 0.0
        %2124 = vmatpush2.xpose.msra.mxu0 0.0
        %2125 = vmatprep.subr.mxu0 0.0
        %2126 = vmatpush2.xpose.msra.mxu0 0.0
        %2127 = vmatprep.subr.mxu0 0.0
        %2128 = vmatpush2.xpose.msra.mxu0 0.0
        %2129 = vmatprep.mubr.f32.mxu0 0.0
        %2130 = vmatmul.mubr.f32.gmra.mxu0 %v2060
        %v2131 = vpop.f32.mrf.mxu0
        %v2132 = vadd.f32 0.0, %v2131
        %v2133 = vpop.f32.mrf.mxu0
        %2134 = vdwg.mxu0
        %v2135 = vsel %vm1029, %v2132, -inf
        %2136 = vmax.xlane.f32.xlu0 %v2135
        %v2137 = vpop.xlane.xlu0 %2136
        %v2138 = vsub.f32 %v2132, %v2137
        %v2139 = vmul.f32 %v2138, 1.442695
        %v2140 = vpow.pop %v2139
        %v2141 = vsel %vm1029, %v2140, 0.0
        %2142 = vadd.xlane.f32.xlu0 %v2141
        %v2143 = vpop.xlane.xlu0 %2142
        %v2144 = vrcp.pop %v2143
        %v2145 = vmul.f32 %v2140, %v2144
        %v2147 = vsel %vm1029, %v2145, 0
        %2149 = vmatprep.subr.mxu0 0.0
        %2150 = vmatpush1.msra.mxu0 0.0
        %2151 = vmatprep.subr.mxu0 0.0
        %2152 = vmatpush1.msra.mxu0 0.0
        %2153 = vmatprep.subr.mxu0 0.0
        %2154 = vmatpush1.msra.mxu0 0.0
        %2155 = vmatprep.subr.mxu0 0.0
        %2156 = vmatpush1.msra.mxu0 0.0
        %2157 = vmatprep.subr.mxu0 0.0
        %2158 = vmatpush1.msra.mxu0 0.0
        %2159 = vmatprep.subr.mxu0 0.0
        %2160 = vmatpush1.msra.mxu0 0.0
        %2161 = vmatprep.subr.mxu0 0.0
        %2162 = vmatpush1.msra.mxu0 0.0
        %2163 = vmatprep.subr.mxu0 0.0
        %2164 = vmatpush1.msra.mxu0 0.0
        %2165 = vmatprep.subr.mxu0 0.0
        %2166 = vmatpush1.msra.mxu0 0.0
        %2167 = vmatprep.subr.mxu0 0.0
        %2168 = vmatpush1.msra.mxu0 0.0
        %2169 = vmatprep.subr.mxu0 0.0
        %2170 = vmatpush1.msra.mxu0 0.0
        %2171 = vmatprep.subr.mxu0 0.0
        %2172 = vmatpush1.msra.mxu0 0.0
        %2173 = vmatprep.subr.mxu0 0.0
        %2174 = vmatpush1.msra.mxu0 0.0
        %2175 = vmatprep.subr.mxu0 0.0
        %2176 = vmatpush1.msra.mxu0 0.0
        %2177 = vmatprep.subr.mxu0 0.0
        %2178 = vmatpush1.msra.mxu0 0.0
        %2179 = vmatprep.subr.mxu0 0.0
        %2180 = vmatpush1.msra.mxu0 %v2056
        %2181 = vmatprep.subr.mxu0 0.0
        %2182 = vmatpush2.msra.mxu0 0.0
        %2183 = vmatprep.subr.mxu0 0.0
        %2184 = vmatpush2.msra.mxu0 0.0
        %2185 = vmatprep.subr.mxu0 0.0
        %2186 = vmatpush2.msra.mxu0 0.0
        %2187 = vmatprep.subr.mxu0 0.0
        %2188 = vmatpush2.msra.mxu0 0.0
        %2189 = vmatprep.subr.mxu0 0.0
        %2190 = vmatpush2.msra.mxu0 0.0
        %2191 = vmatprep.subr.mxu0 0.0
        %2192 = vmatpush2.msra.mxu0 0.0
        %2193 = vmatprep.subr.mxu0 0.0
        %2194 = vmatpush2.msra.mxu0 0.0
        %2195 = vmatprep.subr.mxu0 0.0
        %2196 = vmatpush2.msra.mxu0 0.0
        %2197 = vmatprep.subr.mxu0 0.0
        %2198 = vmatpush2.msra.mxu0 0.0
        %2199 = vmatprep.subr.mxu0 0.0
        %2200 = vmatpush2.msra.mxu0 0.0
        %2201 = vmatprep.subr.mxu0 0.0
        %2202 = vmatpush2.msra.mxu0 0.0
        %2203 = vmatprep.subr.mxu0 0.0
        %2204 = vmatpush2.msra.mxu0 0.0
        %2205 = vmatprep.subr.mxu0 0.0
        %2206 = vmatpush2.msra.mxu0 0.0
        %2207 = vmatprep.subr.mxu0 0.0
        %2208 = vmatpush2.msra.mxu0 0.0
        %2209 = vmatprep.subr.mxu0 0.0
        %2210 = vmatpush2.msra.mxu0 0.0
        %2211 = vmatprep.subr.mxu0 0.0
        %2212 = vmatpush2.msra.mxu0 0.0
        %2213 = vmatprep.mubr.f32.mxu0 0.0
        %2214 = vmatmul.mubr.f32.gmra.mxu0 %v2147
        %v2215 = vpop.f32.mrf.mxu0
        %v2216 = vadd.f32 0.0, %v2215
        %v2217 = vpop.f32.mrf.mxu0
        %2218 = vdwg.mxu0
        %2219 = vrot.lane.b32.xlu0 %v1907, 120
        %v2220 = vpop.permute.xlu0 %2219
        %2221 = vrot.lane.b32.xlu0 %v1983, 120
        %v2222 = vpop.permute.xlu0 %2221
        %v2223 = vsel %vm1029, %v2220, 0
        %v2225 = vsel %vm1029, %v2222, 0
        %2227 = vmatprep.subr.mxu0 0.0
        %2228 = vmatpush1.xpose.msra.mxu0 0.0
        %2229 = vmatprep.subr.mxu0 0.0
        %2230 = vmatpush1.xpose.msra.mxu0 0.0
        %2231 = vmatprep.subr.mxu0 0.0
        %2232 = vmatpush1.xpose.msra.mxu0 0.0
        %2233 = vmatprep.subr.mxu0 0.0
        %2234 = vmatpush1.xpose.msra.mxu0 0.0
        %2235 = vmatprep.subr.mxu0 0.0
        %2236 = vmatpush1.xpose.msra.mxu0 0.0
        %2237 = vmatprep.subr.mxu0 0.0
        %2238 = vmatpush1.xpose.msra.mxu0 0.0
        %2239 = vmatprep.subr.mxu0 0.0
        %2240 = vmatpush1.xpose.msra.mxu0 0.0
        %2241 = vmatprep.subr.mxu0 0.0
        %2242 = vmatpush1.xpose.msra.mxu0 0.0
        %2243 = vmatprep.subr.mxu0 0.0
        %2244 = vmatpush1.xpose.msra.mxu0 0.0
        %2245 = vmatprep.subr.mxu0 0.0
        %2246 = vmatpush1.xpose.msra.mxu0 0.0
        %2247 = vmatprep.subr.mxu0 0.0
        %2248 = vmatpush1.xpose.msra.mxu0 0.0
        %2249 = vmatprep.subr.mxu0 0.0
        %2250 = vmatpush1.xpose.msra.mxu0 0.0
        %2251 = vmatprep.subr.mxu0 0.0
        %2252 = vmatpush1.xpose.msra.mxu0 0.0
        %2253 = vmatprep.subr.mxu0 0.0
        %2254 = vmatpush1.xpose.msra.mxu0 0.0
        %2255 = vmatprep.subr.mxu0 0.0
        %2256 = vmatpush1.xpose.msra.mxu0 0.0
        %2257 = vmatprep.subr.mxu0 0.0
        %2258 = vmatpush1.xpose.msra.mxu0 %v2225
        %2259 = vmatprep.subr.mxu0 0.0
        %2260 = vmatpush2.xpose.msra.mxu0 0.0
        %2261 = vmatprep.subr.mxu0 0.0
        %2262 = vmatpush2.xpose.msra.mxu0 0.0
        %2263 = vmatprep.subr.mxu0 0.0
        %2264 = vmatpush2.xpose.msra.mxu0 0.0
        %2265 = vmatprep.subr.mxu0 0.0
        %2266 = vmatpush2.xpose.msra.mxu0 0.0
        %2267 = vmatprep.subr.mxu0 0.0
        %2268 = vmatpush2.xpose.msra.mxu0 0.0
        %2269 = vmatprep.subr.mxu0 0.0
        %2270 = vmatpush2.xpose.msra.mxu0 0.0
        %2271 = vmatprep.subr.mxu0 0.0
        %2272 = vmatpush2.xpose.msra.mxu0 0.0
        %2273 = vmatprep.subr.mxu0 0.0
        %2274 = vmatpush2.xpose.msra.mxu0 0.0
        %2275 = vmatprep.subr.mxu0 0.0
        %2276 = vmatpush2.xpose.msra.mxu0 0.0
        %2277 = vmatprep.subr.mxu0 0.0
        %2278 = vmatpush2.xpose.msra.mxu0 0.0
        %2279 = vmatprep.subr.mxu0 0.0
        %2280 = vmatpush2.xpose.msra.mxu0 0.0
        %2281 = vmatprep.subr.mxu0 0.0
        %2282 = vmatpush2.xpose.msra.mxu0 0.0
        %2283 = vmatprep.subr.mxu0 0.0
        %2284 = vmatpush2.xpose.msra.mxu0 0.0
        %2285 = vmatprep.subr.mxu0 0.0
        %2286 = vmatpush2.xpose.msra.mxu0 0.0
        %2287 = vmatprep.subr.mxu0 0.0
        %2288 = vmatpush2.xpose.msra.mxu0 0.0
        %2289 = vmatprep.subr.mxu0 0.0
        %2290 = vmatpush2.xpose.msra.mxu0 0.0
        %2291 = vmatprep.mubr.f32.mxu0 0.0
        %2292 = vmatmul.mubr.f32.gmra.mxu0 %v2223
        %v2293 = vpop.f32.mrf.mxu0
        %v2294 = vadd.f32 0.0, %v2293
        %v2295 = vpop.f32.mrf.mxu0
        %2296 = vdwg.mxu0
        %v2297 = vsel %vm1029, %v2294, -inf
        %2298 = vmax.xlane.f32.xlu0 %v2297
        %v2299 = vpop.xlane.xlu0 %2298
        %v2300 = vsub.f32 %v2294, %v2299
        %v2301 = vmul.f32 %v2300, 1.442695
        %v2302 = vpow.pop %v2301
        %v2303 = vsel %vm1029, %v2302, 0.0
        %2304 = vadd.xlane.f32.xlu0 %v2303
        %v2305 = vpop.xlane.xlu0 %2304
        %v2306 = vrcp.pop %v2305
        %v2307 = vmul.f32 %v2302, %v2306
        %2309 = vrot.lane.b32.xlu0 %v2056, 120
        %v2310 = vpop.permute.xlu0 %2309
        %v2313 = vsel %vm1029, %v2307, 0
        %2315 = vmatprep.subr.mxu0 0.0
        %2316 = vmatpush1.msra.mxu0 0.0
        %2317 = vmatprep.subr.mxu0 0.0
        %2318 = vmatpush1.msra.mxu0 0.0
        %2319 = vmatprep.subr.mxu0 0.0
        %2320 = vmatpush1.msra.mxu0 0.0
        %2321 = vmatprep.subr.mxu0 0.0
        %2322 = vmatpush1.msra.mxu0 0.0
        %2323 = vmatprep.subr.mxu0 0.0
        %2324 = vmatpush1.msra.mxu0 0.0
        %2325 = vmatprep.subr.mxu0 0.0
        %2326 = vmatpush1.msra.mxu0 0.0
        %2327 = vmatprep.subr.mxu0 0.0
        %2328 = vmatpush1.msra.mxu0 0.0
        %2329 = vmatprep.subr.mxu0 0.0
        %2330 = vmatpush1.msra.mxu0 0.0
        %2331 = vmatprep.subr.mxu0 0.0
        %2332 = vmatpush1.msra.mxu0 0.0
        %2333 = vmatprep.subr.mxu0 0.0
        %2334 = vmatpush1.msra.mxu0 0.0
        %2335 = vmatprep.subr.mxu0 0.0
        %2336 = vmatpush1.msra.mxu0 0.0
        %2337 = vmatprep.subr.mxu0 0.0
        %2338 = vmatpush1.msra.mxu0 0.0
        %2339 = vmatprep.subr.mxu0 0.0
        %2340 = vmatpush1.msra.mxu0 0.0
        %2341 = vmatprep.subr.mxu0 0.0
        %2342 = vmatpush1.msra.mxu0 0.0
        %2343 = vmatprep.subr.mxu0 0.0
        %2344 = vmatpush1.msra.mxu0 0.0
        %2345 = vmatprep.subr.mxu0 0.0
        %2346 = vmatpush1.msra.mxu0 %v2310
        %2347 = vmatprep.subr.mxu0 0.0
        %2348 = vmatpush2.msra.mxu0 0.0
        %2349 = vmatprep.subr.mxu0 0.0
        %2350 = vmatpush2.msra.mxu0 0.0
        %2351 = vmatprep.subr.mxu0 0.0
        %2352 = vmatpush2.msra.mxu0 0.0
        %2353 = vmatprep.subr.mxu0 0.0
        %2354 = vmatpush2.msra.mxu0 0.0
        %2355 = vmatprep.subr.mxu0 0.0
        %2356 = vmatpush2.msra.mxu0 0.0
        %2357 = vmatprep.subr.mxu0 0.0
        %2358 = vmatpush2.msra.mxu0 0.0
        %2359 = vmatprep.subr.mxu0 0.0
        %2360 = vmatpush2.msra.mxu0 0.0
        %2361 = vmatprep.subr.mxu0 0.0
        %2362 = vmatpush2.msra.mxu0 0.0
        %2363 = vmatprep.subr.mxu0 0.0
        %2364 = vmatpush2.msra.mxu0 0.0
        %2365 = vmatprep.subr.mxu0 0.0
        %2366 = vmatpush2.msra.mxu0 0.0
        %2367 = vmatprep.subr.mxu0 0.0
        %2368 = vmatpush2.msra.mxu0 0.0
        %2369 = vmatprep.subr.mxu0 0.0
        %2370 = vmatpush2.msra.mxu0 0.0
        %2371 = vmatprep.subr.mxu0 0.0
        %2372 = vmatpush2.msra.mxu0 0.0
        %2373 = vmatprep.subr.mxu0 0.0
        %2374 = vmatpush2.msra.mxu0 0.0
        %2375 = vmatprep.subr.mxu0 0.0
        %2376 = vmatpush2.msra.mxu0 0.0
        %2377 = vmatprep.subr.mxu0 0.0
        %2378 = vmatpush2.msra.mxu0 0.0
        %2379 = vmatprep.mubr.f32.mxu0 0.0
        %2380 = vmatmul.mubr.f32.gmra.mxu0 %v2313
        %v2381 = vpop.f32.mrf.mxu0
        %v2382 = vadd.f32 0.0, %v2381
        %v2383 = vpop.f32.mrf.mxu0
        %2384 = vdwg.mxu0
        %2385 = vrot.lane.b32.xlu0 %v1907, 112
        %v2386 = vpop.permute.xlu0 %2385
        %2387 = vrot.lane.b32.xlu0 %v1983, 112
        %v2388 = vpop.permute.xlu0 %2387
        %v2389 = vsel %vm1029, %v2386, 0
        %v2391 = vsel %vm1029, %v2388, 0
        %2393 = vmatprep.subr.mxu0 0.0
        %2394 = vmatpush1.xpose.msra.mxu0 0.0
        %2395 = vmatprep.subr.mxu0 0.0
        %2396 = vmatpush1.xpose.msra.mxu0 0.0
        %2397 = vmatprep.subr.mxu0 0.0
        %2398 = vmatpush1.xpose.msra.mxu0 0.0
        %2399 = vmatprep.subr.mxu0 0.0
        %2400 = vmatpush1.xpose.msra.mxu0 0.0
        %2401 = vmatprep.subr.mxu0 0.0
        %2402 = vmatpush1.xpose.msra.mxu0 0.0
        %2403 = vmatprep.subr.mxu0 0.0
        %2404 = vmatpush1.xpose.msra.mxu0 0.0
        %2405 = vmatprep.subr.mxu0 0.0
        %2406 = vmatpush1.xpose.msra.mxu0 0.0
        %2407 = vmatprep.subr.mxu0 0.0
        %2408 = vmatpush1.xpose.msra.mxu0 0.0
        %2409 = vmatprep.subr.mxu0 0.0
        %2410 = vmatpush1.xpose.msra.mxu0 0.0
        %2411 = vmatprep.subr.mxu0 0.0
        %2412 = vmatpush1.xpose.msra.mxu0 0.0
        %2413 = vmatprep.subr.mxu0 0.0
        %2414 = vmatpush1.xpose.msra.mxu0 0.0
        %2415 = vmatprep.subr.mxu0 0.0
        %2416 = vmatpush1.xpose.msra.mxu0 0.0
        %2417 = vmatprep.subr.mxu0 0.0
        %2418 = vmatpush1.xpose.msra.mxu0 0.0
        %2419 = vmatprep.subr.mxu0 0.0
        %2420 = vmatpush1.xpose.msra.mxu0 0.0
        %2421 = vmatprep.subr.mxu0 0.0
        %2422 = vmatpush1.xpose.msra.mxu0 0.0
        %2423 = vmatprep.subr.mxu0 0.0
        %2424 = vmatpush1.xpose.msra.mxu0 %v2391
        %2425 = vmatprep.subr.mxu0 0.0
        %2426 = vmatpush2.xpose.msra.mxu0 0.0
        %2427 = vmatprep.subr.mxu0 0.0
        %2428 = vmatpush2.xpose.msra.mxu0 0.0
        %2429 = vmatprep.subr.mxu0 0.0
        %2430 = vmatpush2.xpose.msra.mxu0 0.0
        %2431 = vmatprep.subr.mxu0 0.0
        %2432 = vmatpush2.xpose.msra.mxu0 0.0
        %2433 = vmatprep.subr.mxu0 0.0
        %2434 = vmatpush2.xpose.msra.mxu0 0.0
        %2435 = vmatprep.subr.mxu0 0.0
        %2436 = vmatpush2.xpose.msra.mxu0 0.0
        %2437 = vmatprep.subr.mxu0 0.0
        %2438 = vmatpush2.xpose.msra.mxu0 0.0
        %2439 = vmatprep.subr.mxu0 0.0
        %2440 = vmatpush2.xpose.msra.mxu0 0.0
        %2441 = vmatprep.subr.mxu0 0.0
        %2442 = vmatpush2.xpose.msra.mxu0 0.0
        %2443 = vmatprep.subr.mxu0 0.0
        %2444 = vmatpush2.xpose.msra.mxu0 0.0
        %2445 = vmatprep.subr.mxu0 0.0
        %2446 = vmatpush2.xpose.msra.mxu0 0.0
        %2447 = vmatprep.subr.mxu0 0.0
        %2448 = vmatpush2.xpose.msra.mxu0 0.0
        %2449 = vmatprep.subr.mxu0 0.0
        %2450 = vmatpush2.xpose.msra.mxu0 0.0
        %2451 = vmatprep.subr.mxu0 0.0
        %2452 = vmatpush2.xpose.msra.mxu0 0.0
        %2453 = vmatprep.subr.mxu0 0.0
        %2454 = vmatpush2.xpose.msra.mxu0 0.0
        %2455 = vmatprep.subr.mxu0 0.0
        %2456 = vmatpush2.xpose.msra.mxu0 0.0
        %2457 = vmatprep.mubr.f32.mxu0 0.0
        %2458 = vmatmul.mubr.f32.gmra.mxu0 %v2389
        %v2459 = vpop.f32.mrf.mxu0
        %v2460 = vadd.f32 0.0, %v2459
        %v2461 = vpop.f32.mrf.mxu0
        %2462 = vdwg.mxu0
        %v2463 = vsel %vm1029, %v2460, -inf
        %2464 = vmax.xlane.f32.xlu0 %v2463
        %v2465 = vpop.xlane.xlu0 %2464
        %v2466 = vsub.f32 %v2460, %v2465
        %v2467 = vmul.f32 %v2466, 1.442695
        %v2468 = vpow.pop %v2467
        %v2469 = vsel %vm1029, %v2468, 0.0
        %2470 = vadd.xlane.f32.xlu0 %v2469
        %v2471 = vpop.xlane.xlu0 %2470
        %v2472 = vrcp.pop %v2471
        %v2473 = vmul.f32 %v2468, %v2472
        %2474 = vrot.lane.b32.xlu0 %v2056, 112
        %v2475 = vpop.permute.xlu0 %2474
        %v2478 = vsel %vm1029, %v2473, 0
        %2480 = vmatprep.subr.mxu0 0.0
        %2481 = vmatpush1.msra.mxu0 0.0
        %2482 = vmatprep.subr.mxu0 0.0
        %2483 = vmatpush1.msra.mxu0 0.0
        %2484 = vmatprep.subr.mxu0 0.0
        %2485 = vmatpush1.msra.mxu0 0.0
        %2486 = vmatprep.subr.mxu0 0.0
        %2487 = vmatpush1.msra.mxu0 0.0
        %2488 = vmatprep.subr.mxu0 0.0
        %2489 = vmatpush1.msra.mxu0 0.0
        %2490 = vmatprep.subr.mxu0 0.0
        %2491 = vmatpush1.msra.mxu0 0.0
        %2492 = vmatprep.subr.mxu0 0.0
        %2493 = vmatpush1.msra.mxu0 0.0
        %2494 = vmatprep.subr.mxu0 0.0
        %2495 = vmatpush1.msra.mxu0 0.0
        %2496 = vmatprep.subr.mxu0 0.0
        %2497 = vmatpush1.msra.mxu0 0.0
        %2498 = vmatprep.subr.mxu0 0.0
        %2499 = vmatpush1.msra.mxu0 0.0
        %2500 = vmatprep.subr.mxu0 0.0
        %2501 = vmatpush1.msra.mxu0 0.0
        %2502 = vmatprep.subr.mxu0 0.0
        %2503 = vmatpush1.msra.mxu0 0.0
        %2504 = vmatprep.subr.mxu0 0.0
        %2505 = vmatpush1.msra.mxu0 0.0
        %2506 = vmatprep.subr.mxu0 0.0
        %2507 = vmatpush1.msra.mxu0 0.0
        %2508 = vmatprep.subr.mxu0 0.0
        %2509 = vmatpush1.msra.mxu0 0.0
        %2510 = vmatprep.subr.mxu0 0.0
        %2511 = vmatpush1.msra.mxu0 %v2475
        %2512 = vmatprep.subr.mxu0 0.0
        %2513 = vmatpush2.msra.mxu0 0.0
        %2514 = vmatprep.subr.mxu0 0.0
        %2515 = vmatpush2.msra.mxu0 0.0
        %2516 = vmatprep.subr.mxu0 0.0
        %2517 = vmatpush2.msra.mxu0 0.0
        %2518 = vmatprep.subr.mxu0 0.0
        %2519 = vmatpush2.msra.mxu0 0.0
        %2520 = vmatprep.subr.mxu0 0.0
        %2521 = vmatpush2.msra.mxu0 0.0
        %2522 = vmatprep.subr.mxu0 0.0
        %2523 = vmatpush2.msra.mxu0 0.0
        %2524 = vmatprep.subr.mxu0 0.0
        %2525 = vmatpush2.msra.mxu0 0.0
        %2526 = vmatprep.subr.mxu0 0.0
        %2527 = vmatpush2.msra.mxu0 0.0
        %2528 = vmatprep.subr.mxu0 0.0
        %2529 = vmatpush2.msra.mxu0 0.0
        %2530 = vmatprep.subr.mxu0 0.0
        %2531 = vmatpush2.msra.mxu0 0.0
        %2532 = vmatprep.subr.mxu0 0.0
        %2533 = vmatpush2.msra.mxu0 0.0
        %2534 = vmatprep.subr.mxu0 0.0
        %2535 = vmatpush2.msra.mxu0 0.0
        %2536 = vmatprep.subr.mxu0 0.0
        %2537 = vmatpush2.msra.mxu0 0.0
        %2538 = vmatprep.subr.mxu0 0.0
        %2539 = vmatpush2.msra.mxu0 0.0
        %2540 = vmatprep.subr.mxu0 0.0
        %2541 = vmatpush2.msra.mxu0 0.0
        %2542 = vmatprep.subr.mxu0 0.0
        %2543 = vmatpush2.msra.mxu0 0.0
        %2544 = vmatprep.mubr.f32.mxu0 0.0
        %2545 = vmatmul.mubr.f32.gmra.mxu0 %v2478
        %v2546 = vpop.f32.mrf.mxu0
        %v2547 = vadd.f32 0.0, %v2546
        %v2548 = vpop.f32.mrf.mxu0
        %2549 = vdwg.mxu0
        %2550 = vrot.lane.b32.xlu0 %v1907, 104
        %v2551 = vpop.permute.xlu0 %2550
        %2552 = vrot.lane.b32.xlu0 %v1983, 104
        %v2553 = vpop.permute.xlu0 %2552
        %v2554 = vsel %vm1029, %v2551, 0
        %v2556 = vsel %vm1029, %v2553, 0
        %2558 = vmatprep.subr.mxu0 0.0
        %2559 = vmatpush1.xpose.msra.mxu0 0.0
        %2560 = vmatprep.subr.mxu0 0.0
        %2561 = vmatpush1.xpose.msra.mxu0 0.0
        %2562 = vmatprep.subr.mxu0 0.0
        %2563 = vmatpush1.xpose.msra.mxu0 0.0
        %2564 = vmatprep.subr.mxu0 0.0
        %2565 = vmatpush1.xpose.msra.mxu0 0.0
        %2566 = vmatprep.subr.mxu0 0.0
        %2567 = vmatpush1.xpose.msra.mxu0 0.0
        %2568 = vmatprep.subr.mxu0 0.0
        %2569 = vmatpush1.xpose.msra.mxu0 0.0
        %2570 = vmatprep.subr.mxu0 0.0
        %2571 = vmatpush1.xpose.msra.mxu0 0.0
        %2572 = vmatprep.subr.mxu0 0.0
        %2573 = vmatpush1.xpose.msra.mxu0 0.0
        %2574 = vmatprep.subr.mxu0 0.0
        %2575 = vmatpush1.xpose.msra.mxu0 0.0
        %2576 = vmatprep.subr.mxu0 0.0
        %2577 = vmatpush1.xpose.msra.mxu0 0.0
        %2578 = vmatprep.subr.mxu0 0.0
        %2579 = vmatpush1.xpose.msra.mxu0 0.0
        %2580 = vmatprep.subr.mxu0 0.0
        %2581 = vmatpush1.xpose.msra.mxu0 0.0
        %2582 = vmatprep.subr.mxu0 0.0
        %2583 = vmatpush1.xpose.msra.mxu0 0.0
        %2584 = vmatprep.subr.mxu0 0.0
        %2585 = vmatpush1.xpose.msra.mxu0 0.0
        %2586 = vmatprep.subr.mxu0 0.0
        %2587 = vmatpush1.xpose.msra.mxu0 0.0
        %2588 = vmatprep.subr.mxu0 0.0
        %2589 = vmatpush1.xpose.msra.mxu0 %v2556
        %2590 = vmatprep.subr.mxu0 0.0
        %2591 = vmatpush2.xpose.msra.mxu0 0.0
        %2592 = vmatprep.subr.mxu0 0.0
        %2593 = vmatpush2.xpose.msra.mxu0 0.0
        %2594 = vmatprep.subr.mxu0 0.0
        %2595 = vmatpush2.xpose.msra.mxu0 0.0
        %2596 = vmatprep.subr.mxu0 0.0
        %2597 = vmatpush2.xpose.msra.mxu0 0.0
        %2598 = vmatprep.subr.mxu0 0.0
        %2599 = vmatpush2.xpose.msra.mxu0 0.0
        %2600 = vmatprep.subr.mxu0 0.0
        %2601 = vmatpush2.xpose.msra.mxu0 0.0
        %2602 = vmatprep.subr.mxu0 0.0
        %2603 = vmatpush2.xpose.msra.mxu0 0.0
        %2604 = vmatprep.subr.mxu0 0.0
        %2605 = vmatpush2.xpose.msra.mxu0 0.0
        %2606 = vmatprep.subr.mxu0 0.0
        %2607 = vmatpush2.xpose.msra.mxu0 0.0
        %2608 = vmatprep.subr.mxu0 0.0
        %2609 = vmatpush2.xpose.msra.mxu0 0.0
        %2610 = vmatprep.subr.mxu0 0.0
        %2611 = vmatpush2.xpose.msra.mxu0 0.0
        %2612 = vmatprep.subr.mxu0 0.0
        %2613 = vmatpush2.xpose.msra.mxu0 0.0
        %2614 = vmatprep.subr.mxu0 0.0
        %2615 = vmatpush2.xpose.msra.mxu0 0.0
        %2616 = vmatprep.subr.mxu0 0.0
        %2617 = vmatpush2.xpose.msra.mxu0 0.0
        %2618 = vmatprep.subr.mxu0 0.0
        %2619 = vmatpush2.xpose.msra.mxu0 0.0
        %2620 = vmatprep.subr.mxu0 0.0
        %2621 = vmatpush2.xpose.msra.mxu0 0.0
        %2622 = vmatprep.mubr.f32.mxu0 0.0
        %2623 = vmatmul.mubr.f32.gmra.mxu0 %v2554
        %v2624 = vpop.f32.mrf.mxu0
        %v2625 = vadd.f32 0.0, %v2624
        %v2626 = vpop.f32.mrf.mxu0
        %2627 = vdwg.mxu0
        %v2628 = vsel %vm1029, %v2625, -inf
        %2629 = vmax.xlane.f32.xlu0 %v2628
        %v2630 = vpop.xlane.xlu0 %2629
        %v2631 = vsub.f32 %v2625, %v2630
        %v2632 = vmul.f32 %v2631, 1.442695
        %v2633 = vpow.pop %v2632
        %v2634 = vsel %vm1029, %v2633, 0.0
        %2635 = vadd.xlane.f32.xlu0 %v2634
        %v2636 = vpop.xlane.xlu0 %2635
        %v2637 = vrcp.pop %v2636
        %v2638 = vmul.f32 %v2633, %v2637
        %2639 = vrot.lane.b32.xlu0 %v2056, 104
        %v2640 = vpop.permute.xlu0 %2639
        %v2643 = vsel %vm1029, %v2638, 0
        %2645 = vmatprep.subr.mxu0 0.0
        %2646 = vmatpush1.msra.mxu0 0.0
        %2647 = vmatprep.subr.mxu0 0.0
        %2648 = vmatpush1.msra.mxu0 0.0
        %2649 = vmatprep.subr.mxu0 0.0
        %2650 = vmatpush1.msra.mxu0 0.0
        %2651 = vmatprep.subr.mxu0 0.0
        %2652 = vmatpush1.msra.mxu0 0.0
        %2653 = vmatprep.subr.mxu0 0.0
        %2654 = vmatpush1.msra.mxu0 0.0
        %2655 = vmatprep.subr.mxu0 0.0
        %2656 = vmatpush1.msra.mxu0 0.0
        %2657 = vmatprep.subr.mxu0 0.0
        %2658 = vmatpush1.msra.mxu0 0.0
        %2659 = vmatprep.subr.mxu0 0.0
        %2660 = vmatpush1.msra.mxu0 0.0
        %2661 = vmatprep.subr.mxu0 0.0
        %2662 = vmatpush1.msra.mxu0 0.0
        %2663 = vmatprep.subr.mxu0 0.0
        %2664 = vmatpush1.msra.mxu0 0.0
        %2665 = vmatprep.subr.mxu0 0.0
        %2666 = vmatpush1.msra.mxu0 0.0
        %2667 = vmatprep.subr.mxu0 0.0
        %2668 = vmatpush1.msra.mxu0 0.0
        %2669 = vmatprep.subr.mxu0 0.0
        %2670 = vmatpush1.msra.mxu0 0.0
        %2671 = vmatprep.subr.mxu0 0.0
        %2672 = vmatpush1.msra.mxu0 0.0
        %2673 = vmatprep.subr.mxu0 0.0
        %2674 = vmatpush1.msra.mxu0 0.0
        %2675 = vmatprep.subr.mxu0 0.0
        %2676 = vmatpush1.msra.mxu0 %v2640
        %2677 = vmatprep.subr.mxu0 0.0
        %2678 = vmatpush2.msra.mxu0 0.0
        %2679 = vmatprep.subr.mxu0 0.0
        %2680 = vmatpush2.msra.mxu0 0.0
        %2681 = vmatprep.subr.mxu0 0.0
        %2682 = vmatpush2.msra.mxu0 0.0
        %2683 = vmatprep.subr.mxu0 0.0
        %2684 = vmatpush2.msra.mxu0 0.0
        %2685 = vmatprep.subr.mxu0 0.0
        %2686 = vmatpush2.msra.mxu0 0.0
        %2687 = vmatprep.subr.mxu0 0.0
        %2688 = vmatpush2.msra.mxu0 0.0
        %2689 = vmatprep.subr.mxu0 0.0
        %2690 = vmatpush2.msra.mxu0 0.0
        %2691 = vmatprep.subr.mxu0 0.0
        %2692 = vmatpush2.msra.mxu0 0.0
        %2693 = vmatprep.subr.mxu0 0.0
        %2694 = vmatpush2.msra.mxu0 0.0
        %2695 = vmatprep.subr.mxu0 0.0
        %2696 = vmatpush2.msra.mxu0 0.0
        %2697 = vmatprep.subr.mxu0 0.0
        %2698 = vmatpush2.msra.mxu0 0.0
        %2699 = vmatprep.subr.mxu0 0.0
        %2700 = vmatpush2.msra.mxu0 0.0
        %2701 = vmatprep.subr.mxu0 0.0
        %2702 = vmatpush2.msra.mxu0 0.0
        %2703 = vmatprep.subr.mxu0 0.0
        %2704 = vmatpush2.msra.mxu0 0.0
        %2705 = vmatprep.subr.mxu0 0.0
        %2706 = vmatpush2.msra.mxu0 0.0
        %2707 = vmatprep.subr.mxu0 0.0
        %2708 = vmatpush2.msra.mxu0 0.0
        %2709 = vmatprep.mubr.f32.mxu0 0.0
        %2710 = vmatmul.mubr.f32.gmra.mxu0 %v2643
        %v2711 = vpop.f32.mrf.mxu0
        %v2712 = vadd.f32 0.0, %v2711
        %v2713 = vpop.f32.mrf.mxu0
        %2714 = vdwg.mxu0
        %2716 = vrot.lane.b32.xlu0 %v2382, 8
        %v2717 = vpop.permute.xlu0 %2716
        %2720 = vrot.lane.b32.xlu0 %v2547, 16
        %v2721 = vpop.permute.xlu0 %2720
        %2724 = vrot.lane.b32.xlu0 %v2712, 24
        %v2725 = vpop.permute.xlu0 %2724
        %v2727 = vsel %vm1029, %v2216, %v2717
        %v2728 = vsel %vm1109, %v2727, %v2721
        %v2729 = vsel %vm1726, %v2728, %v2725
        %v2730 = vld [vmem:[#allocation13] sm:$0xff]
        %v2731 = vld [vmem:[#allocation13 + $0x8] sm:$0xff]
        %v2732 = vld [vmem:[#allocation13 + $0x10] sm:$0xff]
        %v2733 = vld [vmem:[#allocation13 + $0x18] sm:$0xff]
        %v2734 = vlaneseq
        %v2735 = vshrl.u32 %v2734, 7
        %v2736 = vsub.s32 0, %v2735
        %v2737 = vrot.slane %v729, %v2736
        %v2739 = vsel %vm733, %v2729, 0
        %2741 = vmatprep.subr.mxu0 0.0
        %2742 = vmatpush1.msra.mxu0 0.0
        %2743 = vmatprep.subr.mxu0 0.0
        %2744 = vmatpush1.msra.mxu0 0.0
        %2745 = vmatprep.subr.mxu0 0.0
        %2746 = vmatpush1.msra.mxu0 0.0
        %2747 = vmatprep.subr.mxu0 0.0
        %2748 = vmatpush1.msra.mxu0 0.0
        %2749 = vmatprep.subr.mxu0 0.0
        %2750 = vmatpush1.msra.mxu0 0.0
        %2751 = vmatprep.subr.mxu0 0.0
        %2752 = vmatpush1.msra.mxu0 0.0
        %2753 = vmatprep.subr.mxu0 0.0
        %2754 = vmatpush1.msra.mxu0 0.0
        %2755 = vmatprep.subr.mxu0 0.0
        %2756 = vmatpush1.msra.mxu0 0.0
        %2757 = vmatprep.subr.mxu0 0.0
        %2758 = vmatpush1.msra.mxu0 0.0
        %2759 = vmatprep.subr.mxu0 0.0
        %2760 = vmatpush1.msra.mxu0 0.0
        %2761 = vmatprep.subr.mxu0 0.0
        %2762 = vmatpush1.msra.mxu0 0.0
        %2763 = vmatprep.subr.mxu0 0.0
        %2764 = vmatpush1.msra.mxu0 0.0
        %2765 = vmatprep.subr.mxu0 0.0
        %2766 = vmatpush1.msra.mxu0 %v2733
        %2767 = vmatprep.subr.mxu0 0.0
        %2768 = vmatpush1.msra.mxu0 %v2732
        %2769 = vmatprep.subr.mxu0 0.0
        %2770 = vmatpush1.msra.mxu0 %v2731
        %2771 = vmatprep.subr.mxu0 0.0
        %2772 = vmatpush1.msra.mxu0 %v2730
        %2773 = vmatprep.subr.mxu0 0.0
        %2774 = vmatpush2.msra.mxu0 0.0
        %2775 = vmatprep.subr.mxu0 0.0
        %2776 = vmatpush2.msra.mxu0 0.0
        %2777 = vmatprep.subr.mxu0 0.0
        %2778 = vmatpush2.msra.mxu0 0.0
        %2779 = vmatprep.subr.mxu0 0.0
        %2780 = vmatpush2.msra.mxu0 0.0
        %2781 = vmatprep.subr.mxu0 0.0
        %2782 = vmatpush2.msra.mxu0 0.0
        %2783 = vmatprep.subr.mxu0 0.0
        %2784 = vmatpush2.msra.mxu0 0.0
        %2785 = vmatprep.subr.mxu0 0.0
        %2786 = vmatpush2.msra.mxu0 0.0
        %2787 = vmatprep.subr.mxu0 0.0
        %2788 = vmatpush2.msra.mxu0 0.0
        %2789 = vmatprep.subr.mxu0 0.0
        %2790 = vmatpush2.msra.mxu0 0.0
        %2791 = vmatprep.subr.mxu0 0.0
        %2792 = vmatpush2.msra.mxu0 0.0
        %2793 = vmatprep.subr.mxu0 0.0
        %2794 = vmatpush2.msra.mxu0 0.0
        %2795 = vmatprep.subr.mxu0 0.0
        %2796 = vmatpush2.msra.mxu0 0.0
        %2797 = vmatprep.subr.mxu0 0.0
        %2798 = vmatpush2.msra.mxu0 0.0
        %2799 = vmatprep.subr.mxu0 0.0
        %2800 = vmatpush2.msra.mxu0 0.0
        %2801 = vmatprep.subr.mxu0 0.0
        %2802 = vmatpush2.msra.mxu0 0.0
        %2803 = vmatprep.subr.mxu0 0.0
        %2804 = vmatpush2.msra.mxu0 0.0
        %2805 = vmatprep.mubr.f32.mxu0 0.0
        %2806 = vmatmul.mubr.f32.gmra.mxu0 %v2739
        %v2807 = vpop.f32.mrf.mxu0
        %v2808 = vadd.f32 %v2737, %v2807
        %v2809 = vpop.f32.mrf.mxu0
        %2810 = vdwg.mxu0
        %v2811 = vadd.f32 %v2808, %v1809
        %v2812 = vsel %vm733, %v2811, 0.0
        %2813 = vadd.xlane.f32.xlu0 %v2812
        %v2814 = vpop.xlane.xlu0 %2813
        %v2815 = vmul.f32 %v2814, %v737
        %v2816 = vsub.f32 %v2811, %v2815
        %v2817 = vmul.f32 %v2816, %v2816
        %v2818 = vsel %vm733, %v2817, 0.0
        %2819 = vadd.xlane.f32.xlu0 %v2818
        %v2820 = vpop.xlane.xlu0 %2819
        %v2821 = vmul.f32 %v2820, %v737
        %v2822 = vadd.f32 %v2821, 1e-05
        %v2823 = vrsqrt.pop %v2822
        %v2824 = vmul.f32 %v2816, %v2823
        %v2825 = vlaneseq
        %v2826 = vshrl.u32 %v2825, 7
        %v2827 = vsub.s32 0, %v2826
        %v2828 = vrot.slane %v726, %v2827
        %v2829 = vmul.f32 %v2824, %v2828
        %v2830 = vlaneseq
        %v2831 = vshrl.u32 %v2830, 7
        %v2832 = vsub.s32 0, %v2831
        %v2833 = vrot.slane %v727, %v2832
        %v2834 = vadd.f32 %v2829, %v2833
        %v2835 = vld [vmem:[#allocation14] sm:$0xff]
        %v2836 = vld [vmem:[#allocation14 + $0x8] sm:$0xff]
        %v2837 = vld [vmem:[#allocation14 + $0x10] sm:$0xff]
        %v2838 = vld [vmem:[#allocation14 + $0x18] sm:$0xff]
        %v2839 = vlaneseq
        %v2840 = vshrl.u32 %v2839, 7
        %v2841 = vsub.s32 0, %v2840
        %v2842 = vrot.slane %v731, %v2841
        %v2844 = vsel %vm733, %v2834, 0
        %2846 = vmatprep.subr.mxu0 0.0
        %2847 = vmatpush1.msra.mxu0 0.0
        %2848 = vmatprep.subr.mxu0 0.0
        %2849 = vmatpush1.msra.mxu0 0.0
        %2850 = vmatprep.subr.mxu0 0.0
        %2851 = vmatpush1.msra.mxu0 0.0
        %2852 = vmatprep.subr.mxu0 0.0
        %2853 = vmatpush1.msra.mxu0 0.0
        %2854 = vmatprep.subr.mxu0 0.0
        %2855 = vmatpush1.msra.mxu0 0.0
        %2856 = vmatprep.subr.mxu0 0.0
        %2857 = vmatpush1.msra.mxu0 0.0
        %2858 = vmatprep.subr.mxu0 0.0
        %2859 = vmatpush1.msra.mxu0 0.0
        %2860 = vmatprep.subr.mxu0 0.0
        %2861 = vmatpush1.msra.mxu0 0.0
        %2862 = vmatprep.subr.mxu0 0.0
        %2863 = vmatpush1.msra.mxu0 0.0
        %2864 = vmatprep.subr.mxu0 0.0
        %2865 = vmatpush1.msra.mxu0 0.0
        %2866 = vmatprep.subr.mxu0 0.0
        %2867 = vmatpush1.msra.mxu0 0.0
        %2868 = vmatprep.subr.mxu0 0.0
        %2869 = vmatpush1.msra.mxu0 0.0
        %2870 = vmatprep.subr.mxu0 0.0
        %2871 = vmatpush1.msra.mxu0 %v2838
        %2872 = vmatprep.subr.mxu0 0.0
        %2873 = vmatpush1.msra.mxu0 %v2837
        %2874 = vmatprep.subr.mxu0 0.0
        %2875 = vmatpush1.msra.mxu0 %v2836
        %2876 = vmatprep.subr.mxu0 0.0
        %2877 = vmatpush1.msra.mxu0 %v2835
        %2878 = vmatprep.subr.mxu0 0.0
        %2879 = vmatpush2.msra.mxu0 0.0
        %2880 = vmatprep.subr.mxu0 0.0
        %2881 = vmatpush2.msra.mxu0 0.0
        %2882 = vmatprep.subr.mxu0 0.0
        %2883 = vmatpush2.msra.mxu0 0.0
        %2884 = vmatprep.subr.mxu0 0.0
        %2885 = vmatpush2.msra.mxu0 0.0
        %2886 = vmatprep.subr.mxu0 0.0
        %2887 = vmatpush2.msra.mxu0 0.0
        %2888 = vmatprep.subr.mxu0 0.0
        %2889 = vmatpush2.msra.mxu0 0.0
        %2890 = vmatprep.subr.mxu0 0.0
        %2891 = vmatpush2.msra.mxu0 0.0
        %2892 = vmatprep.subr.mxu0 0.0
        %2893 = vmatpush2.msra.mxu0 0.0
        %2894 = vmatprep.subr.mxu0 0.0
        %2895 = vmatpush2.msra.mxu0 0.0
        %2896 = vmatprep.subr.mxu0 0.0
        %2897 = vmatpush2.msra.mxu0 0.0
        %2898 = vmatprep.subr.mxu0 0.0
        %2899 = vmatpush2.msra.mxu0 0.0
        %2900 = vmatprep.subr.mxu0 0.0
        %2901 = vmatpush2.msra.mxu0 0.0
        %2902 = vmatprep.subr.mxu0 0.0
        %2903 = vmatpush2.msra.mxu0 0.0
        %2904 = vmatprep.subr.mxu0 0.0
        %2905 = vmatpush2.msra.mxu0 0.0
        %2906 = vmatprep.subr.mxu0 0.0
        %2907 = vmatpush2.msra.mxu0 0.0
        %2908 = vmatprep.subr.mxu0 0.0
        %2909 = vmatpush2.msra.mxu0 0.0
        %2910 = vmatprep.mubr.f32.mxu0 0.0
        %2911 = vmatmul.mubr.f32.gmra.mxu0 %v2844
        %v2912 = vpop.f32.mrf.mxu0
        %v2913 = vadd.f32 %v2842, %v2912
        %v2914 = vpop.f32.mrf.mxu0
        %2915 = vdwg.mxu0
        %v2916 = vld [vmem:[#allocation16] sm:$0xff]
        %v2917 = vld [vmem:[#allocation16 + $0x8] sm:$0xff]
        %v2918 = vld [vmem:[#allocation16 + $0x10] sm:$0xff]
        %v2919 = vld [vmem:[#allocation16 + $0x18] sm:$0xff]
        %v2920 = vlaneseq
        %v2921 = vshrl.u32 %v2920, 7
        %v2922 = vsub.s32 0, %v2921
        %v2923 = vrot.slane %v732, %v2922
        %2924 = vmatprep.subr.mxu0 0.0
        %2925 = vmatpush1.msra.mxu0 0.0
        %2926 = vmatprep.subr.mxu0 0.0
        %2927 = vmatpush1.msra.mxu0 0.0
        %2928 = vmatprep.subr.mxu0 0.0
        %2929 = vmatpush1.msra.mxu0 0.0
        %2930 = vmatprep.subr.mxu0 0.0
        %2931 = vmatpush1.msra.mxu0 0.0
        %2932 = vmatprep.subr.mxu0 0.0
        %2933 = vmatpush1.msra.mxu0 0.0
        %2934 = vmatprep.subr.mxu0 0.0
        %2935 = vmatpush1.msra.mxu0 0.0
        %2936 = vmatprep.subr.mxu0 0.0
        %2937 = vmatpush1.msra.mxu0 0.0
        %2938 = vmatprep.subr.mxu0 0.0
        %2939 = vmatpush1.msra.mxu0 0.0
        %2940 = vmatprep.subr.mxu0 0.0
        %2941 = vmatpush1.msra.mxu0 0.0
        %2942 = vmatprep.subr.mxu0 0.0
        %2943 = vmatpush1.msra.mxu0 0.0
        %2944 = vmatprep.subr.mxu0 0.0
        %2945 = vmatpush1.msra.mxu0 0.0
        %2946 = vmatprep.subr.mxu0 0.0
        %2947 = vmatpush1.msra.mxu0 0.0
        %2948 = vmatprep.subr.mxu0 0.0
        %2949 = vmatpush1.msra.mxu0 %v2919
        %2950 = vmatprep.subr.mxu0 0.0
        %2951 = vmatpush1.msra.mxu0 %v2918
        %2952 = vmatprep.subr.mxu0 0.0
        %2953 = vmatpush1.msra.mxu0 %v2917
        %2954 = vmatprep.subr.mxu0 0.0
        %2955 = vmatpush1.msra.mxu0 %v2916
        %2956 = vmatprep.subr.mxu0 0.0
        %2957 = vmatpush2.msra.mxu0 0.0
        %2958 = vmatprep.subr.mxu0 0.0
        %2959 = vmatpush2.msra.mxu0 0.0
        %2960 = vmatprep.subr.mxu0 0.0
        %2961 = vmatpush2.msra.mxu0 0.0
        %2962 = vmatprep.subr.mxu0 0.0
        %2963 = vmatpush2.msra.mxu0 0.0
        %2964 = vmatprep.subr.mxu0 0.0
        %2965 = vmatpush2.msra.mxu0 0.0
        %2966 = vmatprep.subr.mxu0 0.0
        %2967 = vmatpush2.msra.mxu0 0.0
        %2968 = vmatprep.subr.mxu0 0.0
        %2969 = vmatpush2.msra.mxu0 0.0
        %2970 = vmatprep.subr.mxu0 0.0
        %2971 = vmatpush2.msra.mxu0 0.0
        %2972 = vmatprep.subr.mxu0 0.0
        %2973 = vmatpush2.msra.mxu0 0.0
        %2974 = vmatprep.subr.mxu0 0.0
        %2975 = vmatpush2.msra.mxu0 0.0
        %2976 = vmatprep.subr.mxu0 0.0
        %2977 = vmatpush2.msra.mxu0 0.0
        %2978 = vmatprep.subr.mxu0 0.0
        %2979 = vmatpush2.msra.mxu0 0.0
        %2980 = vmatprep.subr.mxu0 0.0
        %2981 = vmatpush2.msra.mxu0 0.0
        %2982 = vmatprep.subr.mxu0 0.0
        %2983 = vmatpush2.msra.mxu0 0.0
        %2984 = vmatprep.subr.mxu0 0.0
        %2985 = vmatpush2.msra.mxu0 0.0
        %2986 = vmatprep.subr.mxu0 0.0
        %2987 = vmatpush2.msra.mxu0 0.0
        %2988 = vmatprep.mubr.f32.mxu0 0.0
        %2989 = vmatmul.mubr.f32.gmra.mxu0 %v2844
        %v2990 = vpop.f32.mrf.mxu0
        %v2991 = vadd.f32 %v2923, %v2990
        %v2992 = vpop.f32.mrf.mxu0
        %2993 = vdwg.mxu0
        %v2994 = vmul.f32 %v2991, 0.5
        %v2995 = vmul.f32 %v2991, 0.70710677
        %v2996 = verf.f32.pop %v2995
        %v2997 = vadd.f32 %v2996, 1.0
        %v2998 = vmul.f32 %v2994, %v2997
        %v2999 = vmul.f32 %v2913, %v2998
        %v3000 = vld [vmem:[%s15] sm:$0xff]
        %v3001 = vld [vmem:[%s15 + $0x8] sm:$0xff]
        %v3002 = vld [vmem:[%s15 + $0x10] sm:$0xff]
        %v3003 = vld [vmem:[%s15 + $0x18] sm:$0xff]
        %v3004 = vld [vmem:[%s15 + $0x20] sm:$0xff]
        %v3005 = vld [vmem:[%s15 + $0x28] sm:$0xff]
        %v3006 = vld [vmem:[%s15 + $0x30] sm:$0xff]
        %v3007 = vld [vmem:[%s15 + $0x38] sm:$0xff]
        %v3008 = vld [vmem:[%s15 + $0x40] sm:$0xff]
        %v3009 = vld [vmem:[%s15 + $0x48] sm:$0xff]
        %v3010 = vld [vmem:[%s15 + $0x50] sm:$0xff]
        %v3011 = vld [vmem:[%s15 + $0x58] sm:$0xff]
        %v3012 = vld [vmem:[%s15 + $0x60] sm:$0xff]
        %v3013 = vld [vmem:[%s15 + $0x68] sm:$0xff]
        %v3014 = vld [vmem:[%s15 + $0x70] sm:$0xff]
        %v3015 = vld [vmem:[%s15 + $0x78] sm:$0xff]
        %v3016 = vlaneseq
        %v3017 = vshrl.u32 %v3016, 7
        %v3018 = vsub.s32 0, %v3017
        %v3019 = vrot.slane %v730, %v3018
        %3020 = vmatprep.subr.mxu0 0.0
        %3021 = vmatpush1.msra.mxu0 %v3015
        %3022 = vmatprep.subr.mxu0 0.0
        %3023 = vmatpush1.msra.mxu0 %v3014
        %3024 = vmatprep.subr.mxu0 0.0
        %3025 = vmatpush1.msra.mxu0 %v3013
        %3026 = vmatprep.subr.mxu0 0.0
        %3027 = vmatpush1.msra.mxu0 %v3012
        %3028 = vmatprep.subr.mxu0 0.0
        %3029 = vmatpush1.msra.mxu0 %v3011
        %3030 = vmatprep.subr.mxu0 0.0
        %3031 = vmatpush1.msra.mxu0 %v3010
        %3032 = vmatprep.subr.mxu0 0.0
        %3033 = vmatpush1.msra.mxu0 %v3009
        %3034 = vmatprep.subr.mxu0 0.0
        %3035 = vmatpush1.msra.mxu0 %v3008
        %3036 = vmatprep.subr.mxu0 0.0
        %3037 = vmatpush1.msra.mxu0 %v3007
        %3038 = vmatprep.subr.mxu0 0.0
        %3039 = vmatpush1.msra.mxu0 %v3006
        %3040 = vmatprep.subr.mxu0 0.0
        %3041 = vmatpush1.msra.mxu0 %v3005
        %3042 = vmatprep.subr.mxu0 0.0
        %3043 = vmatpush1.msra.mxu0 %v3004
        %3044 = vmatprep.subr.mxu0 0.0
        %3045 = vmatpush1.msra.mxu0 %v3003
        %3046 = vmatprep.subr.mxu0 0.0
        %3047 = vmatpush1.msra.mxu0 %v3002
        %3048 = vmatprep.subr.mxu0 0.0
        %3049 = vmatpush1.msra.mxu0 %v3001
        %3050 = vmatprep.subr.mxu0 0.0
        %3051 = vmatpush1.msra.mxu0 %v3000
        %3052 = vmatprep.subr.mxu0 0.0
        %3053 = vmatpush2.msra.mxu0 0.0
        %3054 = vmatprep.subr.mxu0 0.0
        %3055 = vmatpush2.msra.mxu0 0.0
        %3056 = vmatprep.subr.mxu0 0.0
        %3057 = vmatpush2.msra.mxu0 0.0
        %3058 = vmatprep.subr.mxu0 0.0
        %3059 = vmatpush2.msra.mxu0 0.0
        %3060 = vmatprep.subr.mxu0 0.0
        %3061 = vmatpush2.msra.mxu0 0.0
        %3062 = vmatprep.subr.mxu0 0.0
        %3063 = vmatpush2.msra.mxu0 0.0
        %3064 = vmatprep.subr.mxu0 0.0
        %3065 = vmatpush2.msra.mxu0 0.0
        %3066 = vmatprep.subr.mxu0 0.0
        %3067 = vmatpush2.msra.mxu0 0.0
        %3068 = vmatprep.subr.mxu0 0.0
        %3069 = vmatpush2.msra.mxu0 0.0
        %3070 = vmatprep.subr.mxu0 0.0
        %3071 = vmatpush2.msra.mxu0 0.0
        %3072 = vmatprep.subr.mxu0 0.0
        %3073 = vmatpush2.msra.mxu0 0.0
        %3074 = vmatprep.subr.mxu0 0.0
        %3075 = vmatpush2.msra.mxu0 0.0
        %3076 = vmatprep.subr.mxu0 0.0
        %3077 = vmatpush2.msra.mxu0 0.0
        %3078 = vmatprep.subr.mxu0 0.0
        %3079 = vmatpush2.msra.mxu0 0.0
        %3080 = vmatprep.subr.mxu0 0.0
        %3081 = vmatpush2.msra.mxu0 0.0
        %3082 = vmatprep.subr.mxu0 0.0
        %3083 = vmatpush2.msra.mxu0 0.0
        %3084 = vmatprep.mubr.f32.mxu0 0.0
        %3085 = vmatmul.mubr.f32.gmra.mxu0 %v2999
        %v3086 = vpop.f32.mrf.mxu0
        %v3087 = vadd.f32 %v3019, %v3086
        %v3088 = vpop.f32.mrf.mxu0
        %3089 = vdwg.mxu0
        %v3090 = vadd.f32 %v3087, %v2811
        %3091 = vst.msk [vmem:[%s704] sm:$0xff] %vm733, %v3090
        %s3092 = sand.u32 %s412, 1
        %s3093 = scalar_lea.sflag [#allocation4], %s3092
        %s3094 = sand.u32 %s412, 1
        %s3095 = smul.addr %s3094, 8
        %s3096 = scalar_lea.vmem [#allocation17], %s3095
        // Predicated region
        $region121: #{tpu_custom_call.1} parent=83 // pred_check
          %p3097 = pneg %p422
        $region122: #{tpu_custom_call.1} parent=83 // pred_check_branch
          %3099 = sbr.rel (%p3097) target = $region124
        $region123: #{tpu_custom_call.1} parent=83 // pred_region
          %s3101 = ssub.s32 128, 128
          %3102 = vsyncadd %s3093, %s3101
          %s3103 = smul.addr %s41, 2
          %s3104 = sadd.s32 %s42, %s3103
          %s3105 = smul.addr %s3104, 128
          %s3106 = scalar_lea.hbm %s16, %s3105
          %s3108 = sshll.u32 %s3096, 4
          %s3109 = int_to_ptr.vmem [resolvable:$true] %s3108
          %3111 = dma.vmem_to_hbm [thread:$0]  %s3109, 128, %s3106, %s3093
        $region124: #{tpu_custom_call.1} parent=83 // pred_fallthru
          _
      $region84: #{tpu_custom_call.1} parent=5 // pred_fallthru
        _
      %p3112 = scmp.le.s32.totalorder 2, %s32
      // Predicated region
      $region125: #{tpu_custom_call.1} parent=5 // pred_check
        %p3113 = pneg %p3112
      $region126: #{tpu_custom_call.1} parent=5 // pred_check_branch
        %3115 = sbr.rel (%p3113) target = $region128
      $region127: #{tpu_custom_call.1} parent=5 // pred_region
        %s3116 = ssub.s32 %s32, 2
        // Predicated region
        $region129: #{tpu_custom_call.1} parent=127 // pred_check
          %p3117 = pneg %p428
        $region130: #{tpu_custom_call.1} parent=127 // pred_check_branch
          %3119 = sbr.rel (%p3117) target = $region132
        $region131: #{tpu_custom_call.1} parent=127 // pred_region
          %s3120 = sand.u32 %s413, 1
          %s3121 = scalar_lea.sflag [#allocation4], %s3120
          %s3122 = sand.u32 %s413, 1
          %s3123 = smul.addr %s3122, 8
          %s3124 = scalar_lea.vmem [#allocation17], %s3123
          %3125 = dma.done %s3121, 128
        $region132: #{tpu_custom_call.1} parent=127 // pred_fallthru
          _
      $region128: #{tpu_custom_call.1} parent=5 // pred_fallthru
        _
    $region6: #{tpu_custom_call.1} parent=1 // loop_footer
      %s36 = sadd.s32 1, %s32
    $region7: #{tpu_custom_call.1} parent=1 // loop_footer_branch
      %31 = sbr.rel target = $region3
    $region8: #{tpu_custom_call.1} parent=1 // loop_exit
      _
    %3126 = vsyncpa [#allocation3], 1
    %s3127 = scalar_lea.sflag [#allocation3], 1
    %3128 = vsyncpa %s3127, 1
    %3129 = vsyncpa [#allocation6], 1
    %3130 = vsyncpa [#allocation9], 1
    %3131 = vsyncpa [#allocation12], 1
    %3132 = vsyncpa [#allocation15], 1
    %3133 = vsyncpa [#allocation4], 1
    %s3134 = scalar_lea.sflag [#allocation4], 1
    %3135 = vsyncpa %s3134, 1

</llo_original>
